<compile_context>
chip_gen: v7x
topology: tpu7x:2x2x1
jax: 0.10.0
libtpu: 0.0.40
codegen_flags: <defaults>
</compile_context>

<pallas_src>
import functools

import jax
import jax.numpy as jnp
from jax import lax
from jax.experimental import pallas as pl
from jax.experimental.pallas import tpu as pltpu

F32 = jnp.float32

# ---------------- config (mirrors opt.*) ----------------
BATCH = 8
S_SHAPE = (BATCH, 4, 4, 4)      # f_s  (NCHW)
T_SHAPE = (BATCH, 8, 4, 4)      # f_t  (NCHW)
S_DIM = 4 * 4 * 4               # opt.s_dim  (flattened)
T_DIM = 8 * 4 * 4               # opt.t_dim  (flattened)
FEAT_DIM = 128                  # opt.feat_dim
N_DATA = 64                     # opt.n_data
NCE_K = 16                      # opt.nce_k
HKD_WEIGHT = 1.0                # opt.hkd_weight
OT_WEIGHT = 1.0                 # opt.ot_weight
OT_GAMMA = 1.0                  # opt.ot_gamma
OT_EPS = 1e-6                   # opt.ot_eps
OT_ITER = 20                    # opt.ot_iter
TEMP = 0.07                     # T in forward

_VMEM = pltpu.MemorySpace.VMEM
_SMEM = pltpu.MemorySpace.SMEM


# ------------------------------------------------------------------
# Fused kernel: embed -> NCE CE loss -> cost matrix -> sinkhorn -> OT loss
# ------------------------------------------------------------------
def _emdot_fused_kernel(xs_ref, xt_ref, ws_ref, bs_ref, wt_ref, bt_ref,
                        ml_ref, mab_ref, idx_ref, cid_ref,
                        tol_ref, le_ref, lot_ref, p_ref, m_ref,
                        *, temp, gamma, eps, maxiters, hkd_weight, ot_weight):
    B = xs_ref.shape[0]
    n_data = ml_ref.shape[0]
    K = cid_ref.shape[1]
    dims = (((1,), (1,)), ((), ()))          # A @ B^T (contract last dims)

    # ---- Embed: x @ W + b, then L2 row-normalize (pow(2).sum.pow(0.5)) ----
    ys = jnp.dot(xs_ref[...], ws_ref[...], preferred_element_type=F32) + bs_ref[...]
    f_es = ys * lax.rsqrt(jnp.sum(ys * ys, axis=1, keepdims=True))
    yt = jnp.dot(xt_ref[...], wt_ref[...], preferred_element_type=F32) + bt_ref[...]
    f_et = yt * lax.rsqrt(jnp.sum(yt * yt, axis=1, keepdims=True))

    # ---- NCE logits on the MXU: full similarity against both memory banks --
    # rows 0..B-1 -> f_es, rows B..2B-1 -> f_et
    fcat = jnp.concatenate([f_es, f_et], axis=0)                       # (2B, F)
    logits_l = lax.dot_general(fcat, ml_ref[...], dims,
                               preferred_element_type=F32)             # (2B, N)
    logits_ab = lax.dot_general(fcat, mab_ref[...], dims,
                                preferred_element_type=F32)            # (2B, N)

    # In-kernel selection of positive / K negative columns (no XLA gather).
    col = lax.broadcasted_iota(jnp.int32, (B, n_data), 1)              # (B, N)
    pos_mask = (col == idx_ref[...]).astype(F32)                       # (B, N)
    coln = lax.broadcasted_iota(jnp.int32, (K, n_data), 1)             # (K, N)
    neg_mask = (coln[None, :, :] == cid_ref[...][:, :, None]).astype(F32)  # (B,K,N)

    # out_s: pos = <memory_ab[idx], f_es>, neg = memory_l[contrast_idx] @ f_es
    # out_t: pos = <memory_l[idx],  f_et>, neg = memory_ab[contrast_idx] @ f_et
    pos_s = jnp.sum(logits_ab[:B] * pos_mask, axis=1, keepdims=True)   # (B, 1)
    pos_t = jnp.sum(logits_l[B:] * pos_mask, axis=1, keepdims=True)    # (B, 1)
    neg_s = jnp.sum(logits_l[:B][:, None, :] * neg_mask, axis=-1)      # (B, K)
    neg_t = jnp.sum(logits_ab[B:][:, None, :] * neg_mask, axis=-1)     # (B, K)

    inv_t = 1.0 / temp
    pos = jnp.concatenate([pos_s, pos_t], axis=0) * inv_t              # (2B, 1)
    neg = jnp.concatenate([neg_s, neg_t], axis=0) * inv_t              # (2B, K)

    # cross-entropy with target 0 == logsumexp(logits) - logits[:, 0]
    mmax = jnp.maximum(pos, jnp.max(neg, axis=1, keepdims=True))       # (2B, 1)
    se = jnp.exp(pos - mmax) + jnp.sum(jnp.exp(neg - mmax), axis=1, keepdims=True)
    lse = mmax + jnp.log(se)
    loss_e = jnp.sum(lse - pos) / B        # = CE(out_s).mean + CE(out_t).mean

    # ---- cost matrix: X = cat(f_et, f_es); Nst = cos(X)[0:n, n:]; zscore ----
    # F.normalize(p=2, dim=1) clamps the norm at 1e-12 (== clamp sumsq at 1e-24)
    tn = f_et * lax.rsqrt(jnp.maximum(jnp.sum(f_et * f_et, 1, keepdims=True), 1e-24))
    sn = f_es * lax.rsqrt(jnp.maximum(jnp.sum(f_es * f_es, 1, keepdims=True), 1e-24))
    nst = lax.dot_general(tn, sn, dims, preferred_element_type=F32)    # (B, B)
    mcost = 1.0 - nst
    n_el = B * B
    mean = jnp.sum(mcost) / n_el
    var = jnp.sum((mcost - mean) ** 2) / (n_el - 1)                    # unbiased std
    mz = (mcost - mean) * lax.rsqrt(var)
    m_ref[...] = mz

    # ---- sinkhorn (maxiters fully unrolled) + doubly_normalize + ||P-I||_F --
    r = 1.0 / B
    c = 1.0 / B
    P = jnp.exp(-gamma * (mz - jnp.min(mz, axis=1, keepdims=True)))
    done = jnp.zeros((), F32)              # 0/1 "already broke out" flag
    for _ in range(maxiters):
        alpha = jnp.sum(P, axis=1, keepdims=True)
        P1 = P / alpha * r
        beta = jnp.sum(P1, axis=0, keepdims=True)
        conv = (jnp.max(jnp.abs(beta - c)) <= eps).astype(F32)
        # note: entries of P stay strictly positive (exp(..) with row-min
        # subtracted), so alpha/beta never vanish and P1/beta is safe; if
        # converged this iteration keep the row-normalized P1 (reference break)
        P2 = conv * P1 + (1.0 - conv) * (P1 / beta * c)
        P = done * P + (1.0 - done) * P2
        done = jnp.maximum(done, conv)

    # doubly_normalize: row-normalize then column-normalize
    P = P / jnp.sum(P, axis=1, keepdims=True)
    P = P / jnp.sum(P, axis=0, keepdims=True)

    rid = lax.broadcasted_iota(jnp.int32, (B, B), 0)
    cid_eye = lax.broadcasted_iota(jnp.int32, (B, B), 1)
    diff = P - (rid == cid_eye).astype(F32)
    loss_ot = jnp.sqrt(jnp.sum(diff * diff))   # torch.norm(.., 2) == Frobenius

    p_ref[...] = P
    le_ref[0, 0] = loss_e
    lot_ref[0, 0] = loss_ot
    tol_ref[0, 0] = hkd_weight * loss_e + ot_weight * loss_ot


# ------------------------------------------------------------------
# EMDOTLoss.forward wrapper (single pallas_call, everything fused)
# ------------------------------------------------------------------
def emdot_forward(params, f_s, f_t, idx, contrast_idx):
    bsz = f_s.shape[0]
    xs = f_s.reshape(bsz, -1)
    xt = f_t.reshape(bsz, -1)
    idx2 = idx.reshape(bsz, 1).astype(jnp.int32)
    cid = contrast_idx.astype(jnp.int32)                 # (B, K)

    kernel = functools.partial(
        _emdot_fused_kernel,
        temp=TEMP, gamma=OT_GAMMA, eps=OT_EPS, maxiters=OT_ITER,
        hkd_weight=HKD_WEIGHT, ot_weight=OT_WEIGHT)

    loss_tol, loss_e, loss_ot, P, M = pl.pallas_call(
        kernel,
        out_shape=(jax.ShapeDtypeStruct((1, 1), F32),      # loss_tol
                   jax.ShapeDtypeStruct((1, 1), F32),      # loss_e
                   jax.ShapeDtypeStruct((1, 1), F32),      # loss_ot
                   jax.ShapeDtypeStruct((bsz, bsz), F32),  # P
                   jax.ShapeDtypeStruct((bsz, bsz), F32)), # M
        in_specs=[pl.BlockSpec(memory_space=_VMEM)] * 10,
        out_specs=(pl.BlockSpec(memory_space=_SMEM),
                   pl.BlockSpec(memory_space=_SMEM),
                   pl.BlockSpec(memory_space=_SMEM),
                   pl.BlockSpec(memory_space=_VMEM),
                   pl.BlockSpec(memory_space=_VMEM)),
    )(xs, xt,
      params["ws"], params["bs"].reshape(1, -1),
      params["wt"], params["bt"].reshape(1, -1),
      params["memory_l"], params["memory_ab"],
      idx2, cid)

    # TODO(synk): NCEAverage.update (momentum write-back into memory_l /
    # memory_ab) is a stateful buffer mutation that does not affect the
    # returned values; omitted.
    return loss_tol[0, 0], loss_e[0, 0], loss_ot[0, 0], P, M


# ------------------------------------------------------------------
if __name__ == "__main__":
    key = jax.random.PRNGKey(0)
    ks = jax.random.split(key, 8)

    f_s = jax.random.normal(ks[0], S_SHAPE, dtype=F32)
    f_t = jax.random.normal(ks[1], T_SHAPE, dtype=F32)

    # Deterministic synthetic parameter init (shapes follow Embed / NCEAverage)
    ws = jax.random.normal(ks[2], (S_DIM, FEAT_DIM), dtype=F32) / jnp.sqrt(S_DIM)
    bs = jnp.zeros((FEAT_DIM,), F32)
    wt = jax.random.normal(ks[3], (T_DIM, FEAT_DIM), dtype=F32) / jnp.sqrt(T_DIM)
    bt = jnp.zeros((FEAT_DIM,), F32)

    stdv = 1.0 / (FEAT_DIM / 3.0) ** 0.5
    memory_l = jax.random.uniform(ks[4], (N_DATA, FEAT_DIM), F32, -stdv, stdv)
    memory_ab = jax.random.uniform(ks[5], (N_DATA, FEAT_DIM), F32, -stdv, stdv)

    idx = jnp.arange(BATCH, dtype=jnp.int32)
    contrast_idx = jax.random.randint(ks[6], (BATCH, NCE_K), 0, N_DATA, dtype=jnp.int32)

    params = dict(ws=ws, bs=bs, wt=wt, bt=bt,
                  memory_l=memory_l, memory_ab=memory_ab)

    fwd = jax.jit(emdot_forward)
    out = fwd(params, f_s, f_t, idx, contrast_idx)
    out = jax.block_until_ready(out)
    loss_tol, loss_e, loss_ot, P, M = out
    assert P.shape == (BATCH, BATCH) and M.shape == (BATCH, BATCH)
    assert bool(jnp.isfinite(loss_tol)) and bool(jnp.isfinite(loss_e)) and bool(jnp.isfinite(loss_ot))
    print("KERNEL_OK")
</pallas_src>

<mosaic_0001>
module attributes {stable_mosaic.version = 11 : i64} {
  func.func @_emdot_fused_kernel(%arg0: memref<8x64xf32, #tpu.memory_space<vmem>>, %arg1: memref<8x128xf32, #tpu.memory_space<vmem>>, %arg2: memref<64x128xf32, #tpu.memory_space<vmem>>, %arg3: memref<1x128xf32, #tpu.memory_space<vmem>>, %arg4: memref<128x128xf32, #tpu.memory_space<vmem>>, %arg5: memref<1x128xf32, #tpu.memory_space<vmem>>, %arg6: memref<64x128xf32, #tpu.memory_space<vmem>>, %arg7: memref<64x128xf32, #tpu.memory_space<vmem>>, %arg8: memref<8x1xi32, #tpu.memory_space<vmem>>, %arg9: memref<8x16xi32, #tpu.memory_space<vmem>>, %arg10: memref<1x1xf32, #tpu.memory_space<smem>>, %arg11: memref<1x1xf32, #tpu.memory_space<smem>>, %arg12: memref<1x1xf32, #tpu.memory_space<smem>>, %arg13: memref<8x8xf32, #tpu.memory_space<vmem>>, %arg14: memref<8x8xf32, #tpu.memory_space<vmem>>) attributes {dimension_semantics = [], scalar_prefetch = 0 : i64, scratch_operands = 0 : i64, tpu.core_type = #tpu.core_type<tc>} {
    %c0 = arith.constant 0 : index
    %c0_0 = arith.constant 0 : index
    %0 = vector.load %arg0[%c0, %c0_0] : memref<8x64xf32, #tpu.memory_space<vmem>>, vector<8x64xf32>
    %c0_1 = arith.constant 0 : index
    %c0_2 = arith.constant 0 : index
    %1 = vector.load %arg2[%c0_1, %c0_2] : memref<64x128xf32, #tpu.memory_space<vmem>>, vector<64x128xf32>
    %cst = arith.constant dense<0.000000e+00> : vector<8x128xf32>
    %2 = tpu.matmul %0, %1, %cst {dimension_numbers = #tpu.dot_dimension_numbers<[1], [0], [0], [1], [0, 0, 1, 1], [], []>} : vector<8x64xf32>, vector<64x128xf32>, vector<8x128xf32> -> vector<8x128xf32>
    %c0_3 = arith.constant 0 : index
    %c0_4 = arith.constant 0 : index
    %3 = vector.load %arg3[%c0_3, %c0_4] : memref<1x128xf32, #tpu.memory_space<vmem>>, vector<1x128xf32>
    %4 = vector.broadcast %3 : vector<1x128xf32> to vector<8x128xf32>
    %5 = arith.addf %2, %4 : vector<8x128xf32>
    %6 = arith.mulf %5, %5 : vector<8x128xf32>
    %cst_5 = arith.constant dense<0.000000e+00> : vector<8xf32>
    %7 = vector.multi_reduction <add>, %6, %cst_5 [1] : vector<8x128xf32> to vector<8xf32>
    %8 = vector.shape_cast %7 : vector<8xf32> to vector<8x1xf32>
    %9 = math.rsqrt %8 : vector<8x1xf32>
    %10 = vector.broadcast %9 : vector<8x1xf32> to vector<8x128xf32>
    %11 = arith.mulf %5, %10 : vector<8x128xf32>
    %c0_6 = arith.constant 0 : index
    %c0_7 = arith.constant 0 : index
    %12 = vector.load %arg1[%c0_6, %c0_7] : memref<8x128xf32, #tpu.memory_space<vmem>>, vector<8x128xf32>
    %c0_8 = arith.constant 0 : index
    %c0_9 = arith.constant 0 : index
    %13 = vector.load %arg4[%c0_8, %c0_9] : memref<128x128xf32, #tpu.memory_space<vmem>>, vector<128x128xf32>
    %cst_10 = arith.constant dense<0.000000e+00> : vector<8x128xf32>
    %14 = tpu.matmul %12, %13, %cst_10 {dimension_numbers = #tpu.dot_dimension_numbers<[1], [0], [0], [1], [0, 0, 1, 1], [], []>} : vector<8x128xf32>, vector<128x128xf32>, vector<8x128xf32> -> vector<8x128xf32>
    %c0_11 = arith.constant 0 : index
    %c0_12 = arith.constant 0 : index
    %15 = vector.load %arg5[%c0_11, %c0_12] : memref<1x128xf32, #tpu.memory_space<vmem>>, vector<1x128xf32>
    %16 = vector.broadcast %15 : vector<1x128xf32> to vector<8x128xf32>
    %17 = arith.addf %14, %16 : vector<8x128xf32>
    %18 = arith.mulf %17, %17 : vector<8x128xf32>
    %cst_13 = arith.constant dense<0.000000e+00> : vector<8xf32>
    %19 = vector.multi_reduction <add>, %18, %cst_13 [1] : vector<8x128xf32> to vector<8xf32>
    %20 = vector.shape_cast %19 : vector<8xf32> to vector<8x1xf32>
    %21 = math.rsqrt %20 : vector<8x1xf32>
    %22 = vector.broadcast %21 : vector<8x1xf32> to vector<8x128xf32>
    %23 = arith.mulf %17, %22 : vector<8x128xf32>
    %24 = tpu.concatenate %11, %23 in 0 : vector<8x128xf32>, vector<8x128xf32> -> vector<16x128xf32>
    %c0_14 = arith.constant 0 : index
    %c0_15 = arith.constant 0 : index
    %25 = vector.load %arg6[%c0_14, %c0_15] : memref<64x128xf32, #tpu.memory_space<vmem>>, vector<64x128xf32>
    %cst_16 = arith.constant dense<0.000000e+00> : vector<16x64xf32>
    %26 = tpu.matmul %24, %25, %cst_16 {dimension_numbers = #tpu.dot_dimension_numbers<[1], [1], [0], [0], [0, 0, 1, 0], [], []>} : vector<16x128xf32>, vector<64x128xf32>, vector<16x64xf32> -> vector<16x64xf32>
    %c0_17 = arith.constant 0 : index
    %c0_18 = arith.constant 0 : index
    %27 = vector.load %arg7[%c0_17, %c0_18] : memref<64x128xf32, #tpu.memory_space<vmem>>, vector<64x128xf32>
    %cst_19 = arith.constant dense<0.000000e+00> : vector<16x64xf32>
    %28 = tpu.matmul %24, %27, %cst_19 {dimension_numbers = #tpu.dot_dimension_numbers<[1], [1], [0], [0], [0, 0, 1, 0], [], []>} : vector<16x128xf32>, vector<64x128xf32>, vector<16x64xf32> -> vector<16x64xf32>
    %29 = tpu.iota {dimensions = array<i32: 1>} : vector<8x64xi32>
    %c0_20 = arith.constant 0 : index
    %c0_21 = arith.constant 0 : index
    %30 = vector.load %arg8[%c0_20, %c0_21] : memref<8x1xi32, #tpu.memory_space<vmem>>, vector<8x1xi32>
    %31 = vector.broadcast %30 : vector<8x1xi32> to vector<8x64xi32>
    %32 = arith.cmpi eq, %29, %31 : vector<8x64xi32>
    %33 = arith.extui %32 : vector<8x64xi1> to vector<8x64xi32>
    %34 = arith.sitofp %33 : vector<8x64xi32> to vector<8x64xf32>
    %35 = tpu.iota {dimensions = array<i32: 1>} : vector<16x64xi32>
    %36 = vector.shape_cast %35 : vector<16x64xi32> to vector<1x16x64xi32>
    %c0_22 = arith.constant 0 : index
    %c0_23 = arith.constant 0 : index
    %37 = vector.load %arg9[%c0_22, %c0_23] : memref<8x16xi32, #tpu.memory_space<vmem>>, vector<8x16xi32>
    %38 = vector.shape_cast %37 : vector<8x16xi32> to vector<8x16x1xi32>
    %39 = vector.broadcast %36 : vector<1x16x64xi32> to vector<8x16x64xi32>
    %40 = vector.broadcast %38 : vector<8x16x1xi32> to vector<8x16x64xi32>
    %41 = arith.cmpi eq, %39, %40 : vector<8x16x64xi32>
    %42 = arith.extui %41 : vector<8x16x64xi1> to vector<8x16x64xi32>
    %43 = arith.sitofp %42 : vector<8x16x64xi32> to vector<8x16x64xf32>
    %44 = vector.extract_strided_slice %28 {offsets = [0, 0], sizes = [8, 64], strides = [1, 1]} : vector<16x64xf32> to vector<8x64xf32>
    %45 = arith.mulf %44, %34 : vector<8x64xf32>
    %cst_24 = arith.constant dense<0.000000e+00> : vector<8xf32>
    %46 = vector.multi_reduction <add>, %45, %cst_24 [1] : vector<8x64xf32> to vector<8xf32>
    %47 = vector.shape_cast %46 : vector<8xf32> to vector<8x1xf32>
    %48 = vector.extract_strided_slice %26 {offsets = [8, 0], sizes = [8, 64], strides = [1, 1]} : vector<16x64xf32> to vector<8x64xf32>
    %49 = arith.mulf %48, %34 : vector<8x64xf32>
    %cst_25 = arith.constant dense<0.000000e+00> : vector<8xf32>
    %50 = vector.multi_reduction <add>, %49, %cst_25 [1] : vector<8x64xf32> to vector<8xf32>
    %51 = vector.shape_cast %50 : vector<8xf32> to vector<8x1xf32>
    %52 = vector.extract_strided_slice %26 {offsets = [0, 0], sizes = [8, 64], strides = [1, 1]} : vector<16x64xf32> to vector<8x64xf32>
    %53 = vector.shape_cast %52 : vector<8x64xf32> to vector<8x1x64xf32>
    %54 = vector.broadcast %53 : vector<8x1x64xf32> to vector<8x16x64xf32>
    %55 = arith.mulf %54, %43 : vector<8x16x64xf32>
    %cst_26 = arith.constant dense<0.000000e+00> : vector<8x16xf32>
    %56 = vector.multi_reduction <add>, %55, %cst_26 [2] : vector<8x16x64xf32> to vector<8x16xf32>
    %57 = vector.extract_strided_slice %28 {offsets = [8, 0], sizes = [8, 64], strides = [1, 1]} : vector<16x64xf32> to vector<8x64xf32>
    %58 = vector.shape_cast %57 : vector<8x64xf32> to vector<8x1x64xf32>
    %59 = vector.broadcast %58 : vector<8x1x64xf32> to vector<8x16x64xf32>
    %60 = arith.mulf %59, %43 : vector<8x16x64xf32>
    %cst_27 = arith.constant dense<0.000000e+00> : vector<8x16xf32>
    %61 = vector.multi_reduction <add>, %60, %cst_27 [2] : vector<8x16x64xf32> to vector<8x16xf32>
    %62 = tpu.concatenate %47, %51 in 0 : vector<8x1xf32>, vector<8x1xf32> -> vector<16x1xf32>
    %cst_28 = arith.constant 14.2857141 : f32
    %63 = vector.broadcast %cst_28 : f32 to vector<16x1xf32>
    %64 = arith.mulf %62, %63 : vector<16x1xf32>
    %65 = tpu.concatenate %56, %61 in 0 : vector<8x16xf32>, vector<8x16xf32> -> vector<16x16xf32>
    %cst_29 = arith.constant 14.2857141 : f32
    %66 = vector.broadcast %cst_29 : f32 to vector<16x16xf32>
    %67 = arith.mulf %65, %66 : vector<16x16xf32>
    %cst_30 = arith.constant dense<0xFF800000> : vector<16xf32>
    %68 = vector.multi_reduction <maximumf>, %67, %cst_30 [1] : vector<16x16xf32> to vector<16xf32>
    %69 = vector.shape_cast %68 : vector<16xf32> to vector<16x1xf32>
    %70 = arith.maximumf %64, %69 : vector<16x1xf32>
    %71 = arith.subf %64, %70 : vector<16x1xf32>
    %72 = math.exp %71 : vector<16x1xf32>
    %73 = vector.broadcast %70 : vector<16x1xf32> to vector<16x16xf32>
    %74 = arith.subf %67, %73 : vector<16x16xf32>
    %75 = math.exp %74 : vector<16x16xf32>
    %cst_31 = arith.constant dense<0.000000e+00> : vector<16xf32>
    %76 = vector.multi_reduction <add>, %75, %cst_31 [1] : vector<16x16xf32> to vector<16xf32>
    %77 = vector.shape_cast %76 : vector<16xf32> to vector<16x1xf32>
    %78 = arith.addf %72, %77 : vector<16x1xf32>
    %79 = math.log %78 : vector<16x1xf32>
    %80 = arith.addf %70, %79 : vector<16x1xf32>
    %81 = arith.subf %80, %64 : vector<16x1xf32>
    %82 = vector.shape_cast %81 : vector<16x1xf32> to vector<1x16x1xf32>
    %cst_32 = arith.constant dense<0.000000e+00> : vector<1xf32>
    %83 = vector.multi_reduction <add>, %82, %cst_32 [1, 2] : vector<1x16x1xf32> to vector<1xf32>
    %84 = vector.shape_cast %83 : vector<1xf32> to vector<1x1x1xf32>
    %85 = vector.extract %84[0, 0, 0] : f32 from vector<1x1x1xf32>
    %cst_33 = arith.constant 8.000000e+00 : f32
    %86 = arith.divf %85, %cst_33 : f32
    %87 = arith.mulf %23, %23 : vector<8x128xf32>
    %cst_34 = arith.constant dense<0.000000e+00> : vector<8xf32>
    %88 = vector.multi_reduction <add>, %87, %cst_34 [1] : vector<8x128xf32> to vector<8xf32>
    %89 = vector.shape_cast %88 : vector<8xf32> to vector<8x1xf32>
    %cst_35 = arith.constant 1.000000e-24 : f32
    %90 = vector.broadcast %cst_35 : f32 to vector<8x1xf32>
    %91 = arith.maximumf %89, %90 : vector<8x1xf32>
    %92 = math.rsqrt %91 : vector<8x1xf32>
    %93 = vector.broadcast %92 : vector<8x1xf32> to vector<8x128xf32>
    %94 = arith.mulf %23, %93 : vector<8x128xf32>
    %95 = arith.mulf %11, %11 : vector<8x128xf32>
    %cst_36 = arith.constant dense<0.000000e+00> : vector<8xf32>
    %96 = vector.multi_reduction <add>, %95, %cst_36 [1] : vector<8x128xf32> to vector<8xf32>
    %97 = vector.shape_cast %96 : vector<8xf32> to vector<8x1xf32>
    %cst_37 = arith.constant 1.000000e-24 : f32
    %98 = vector.broadcast %cst_37 : f32 to vector<8x1xf32>
    %99 = arith.maximumf %97, %98 : vector<8x1xf32>
    %100 = math.rsqrt %99 : vector<8x1xf32>
    %101 = vector.broadcast %100 : vector<8x1xf32> to vector<8x128xf32>
    %102 = arith.mulf %11, %101 : vector<8x128xf32>
    %cst_38 = arith.constant dense<0.000000e+00> : vector<8x8xf32>
    %103 = tpu.matmul %94, %102, %cst_38 {dimension_numbers = #tpu.dot_dimension_numbers<[1], [1], [0], [0], [0, 0, 1, 0], [], []>} : vector<8x128xf32>, vector<8x128xf32>, vector<8x8xf32> -> vector<8x8xf32>
    %cst_39 = arith.constant 1.000000e+00 : f32
    %104 = vector.broadcast %cst_39 : f32 to vector<8x8xf32>
    %105 = arith.subf %104, %103 : vector<8x8xf32>
    %106 = vector.shape_cast %105 : vector<8x8xf32> to vector<1x8x8xf32>
    %cst_40 = arith.constant dense<0.000000e+00> : vector<1xf32>
    %107 = vector.multi_reduction <add>, %106, %cst_40 [1, 2] : vector<1x8x8xf32> to vector<1xf32>
    %108 = vector.shape_cast %107 : vector<1xf32> to vector<1x1x1xf32>
    %109 = vector.extract %108[0, 0, 0] : f32 from vector<1x1x1xf32>
    %cst_41 = arith.constant 6.400000e+01 : f32
    %110 = arith.divf %109, %cst_41 : f32
    %111 = vector.broadcast %110 : f32 to vector<8x8xf32>
    %112 = arith.subf %105, %111 : vector<8x8xf32>
    %113 = arith.mulf %112, %112 : vector<8x8xf32>
    %114 = vector.shape_cast %113 : vector<8x8xf32> to vector<1x8x8xf32>
    %cst_42 = arith.constant dense<0.000000e+00> : vector<1xf32>
    %115 = vector.multi_reduction <add>, %114, %cst_42 [1, 2] : vector<1x8x8xf32> to vector<1xf32>
    %116 = vector.shape_cast %115 : vector<1xf32> to vector<1x1x1xf32>
    %117 = vector.extract %116[0, 0, 0] : f32 from vector<1x1x1xf32>
    %cst_43 = arith.constant 6.300000e+01 : f32
    %118 = arith.divf %117, %cst_43 : f32
    %119 = vector.broadcast %110 : f32 to vector<8x8xf32>
    %120 = arith.subf %105, %119 : vector<8x8xf32>
    %121 = math.rsqrt %118 : f32
    %122 = vector.broadcast %121 : f32 to vector<8x8xf32>
    %123 = arith.mulf %120, %122 : vector<8x8xf32>
    %c0_44 = arith.constant 0 : index
    %c0_45 = arith.constant 0 : index
    %124 = vector.load %arg14[%c0_44, %c0_45] : memref<8x8xf32, #tpu.memory_space<vmem>>, vector<8x8xf32>
    tpu.vector_store %arg14[%c0_44, %c0_45], %123 {strides = array<i32>} : memref<8x8xf32, #tpu.memory_space<vmem>>, vector<8x8xf32>,
    %cst_46 = arith.constant dense<0x7F800000> : vector<8xf32>
    %125 = vector.multi_reduction <minimumf>, %123, %cst_46 [1] : vector<8x8xf32> to vector<8xf32>
    %126 = vector.shape_cast %125 : vector<8xf32> to vector<8x1xf32>
    %127 = vector.broadcast %126 : vector<8x1xf32> to vector<8x8xf32>
    %128 = arith.subf %123, %127 : vector<8x8xf32>
    %cst_47 = arith.constant -1.000000e+00 : f32
    %129 = vector.broadcast %cst_47 : f32 to vector<8x8xf32>
    %130 = arith.mulf %129, %128 : vector<8x8xf32>
    %131 = math.exp %130 : vector<8x8xf32>
    %cst_48 = arith.constant dense<0.000000e+00> : vector<8xf32>
    %132 = vector.multi_reduction <add>, %131, %cst_48 [1] : vector<8x8xf32> to vector<8xf32>
    %133 = vector.shape_cast %132 : vector<8xf32> to vector<8x1xf32>
    %134 = vector.broadcast %133 : vector<8x1xf32> to vector<8x8xf32>
    %135 = arith.divf %131, %134 : vector<8x8xf32>
    %cst_49 = arith.constant 1.250000e-01 : f32
    %136 = vector.broadcast %cst_49 : f32 to vector<8x8xf32>
    %137 = arith.mulf %135, %136 : vector<8x8xf32>
    %cst_50 = arith.constant dense<0.000000e+00> : vector<8xf32>
    %138 = vector.multi_reduction <add>, %137, %cst_50 [0] : vector<8x8xf32> to vector<8xf32>
    %139 = vector.shape_cast %138 : vector<8xf32> to vector<1x8xf32>
    %cst_51 = arith.constant 1.250000e-01 : f32
    %140 = vector.broadcast %cst_51 : f32 to vector<1x8xf32>
    %141 = arith.subf %139, %140 : vector<1x8xf32>
    %142 = math.absf %141 : vector<1x8xf32>
    %143 = vector.shape_cast %142 : vector<1x8xf32> to vector<1x1x8xf32>
    %cst_52 = arith.constant dense<0xFF800000> : vector<1xf32>
    %144 = vector.multi_reduction <maximumf>, %143, %cst_52 [1, 2] : vector<1x1x8xf32> to vector<1xf32>
    %145 = vector.shape_cast %144 : vector<1xf32> to vector<1x1x1xf32>
    %146 = vector.extract %145[0, 0, 0] : f32 from vector<1x1x1xf32>
    %cst_53 = arith.constant 9.99999997E-7 : f32
    %147 = arith.cmpf ole, %146, %cst_53 : f32
    %148 = arith.extui %147 : i1 to i32
    %149 = arith.sitofp %148 : i32 to f32
    %150 = vector.broadcast %149 : f32 to vector<8x8xf32>
    %151 = arith.mulf %150, %137 : vector<8x8xf32>
    %cst_54 = arith.constant 1.000000e+00 : f32
    %152 = arith.subf %cst_54, %149 : f32
    %153 = vector.broadcast %139 : vector<1x8xf32> to vector<8x8xf32>
    %154 = arith.divf %137, %153 : vector<8x8xf32>
    %cst_55 = arith.constant 1.250000e-01 : f32
    %155 = vector.broadcast %cst_55 : f32 to vector<8x8xf32>
    %156 = arith.mulf %154, %155 : vector<8x8xf32>
    %157 = vector.broadcast %152 : f32 to vector<8x8xf32>
    %158 = arith.mulf %157, %156 : vector<8x8xf32>
    %159 = arith.addf %151, %158 : vector<8x8xf32>
    %cst_56 = arith.constant 0.000000e+00 : f32
    %160 = vector.broadcast %cst_56 : f32 to vector<8x8xf32>
    %161 = arith.mulf %160, %131 : vector<8x8xf32>
    %cst_57 = arith.constant 1.000000e+00 : f32
    %cst_58 = arith.constant 0.000000e+00 : f32
    %162 = arith.subf %cst_57, %cst_58 : f32
    %163 = vector.broadcast %162 : f32 to vector<8x8xf32>
    %164 = arith.mulf %163, %159 : vector<8x8xf32>
    %165 = arith.addf %161, %164 : vector<8x8xf32>
    %cst_59 = arith.constant 0.000000e+00 : f32
    %166 = arith.maximumf %cst_59, %149 : f32
    %cst_60 = arith.constant dense<0.000000e+00> : vector<8xf32>
    %167 = vector.multi_reduction <add>, %165, %cst_60 [1] : vector<8x8xf32> to vector<8xf32>
    %168 = vector.shape_cast %167 : vector<8xf32> to vector<8x1xf32>
    %169 = vector.broadcast %168 : vector<8x1xf32> to vector<8x8xf32>
    %170 = arith.divf %165, %169 : vector<8x8xf32>
    %cst_61 = arith.constant 1.250000e-01 : f32
    %171 = vector.broadcast %cst_61 : f32 to vector<8x8xf32>
    %172 = arith.mulf %170, %171 : vector<8x8xf32>
    %cst_62 = arith.constant dense<0.000000e+00> : vector<8xf32>
    %173 = vector.multi_reduction <add>, %172, %cst_62 [0] : vector<8x8xf32> to vector<8xf32>
    %174 = vector.shape_cast %173 : vector<8xf32> to vector<1x8xf32>
    %cst_63 = arith.constant 1.250000e-01 : f32
    %175 = vector.broadcast %cst_63 : f32 to vector<1x8xf32>
    %176 = arith.subf %174, %175 : vector<1x8xf32>
    %177 = math.absf %176 : vector<1x8xf32>
    %178 = vector.shape_cast %177 : vector<1x8xf32> to vector<1x1x8xf32>
    %cst_64 = arith.constant dense<0xFF800000> : vector<1xf32>
    %179 = vector.multi_reduction <maximumf>, %178, %cst_64 [1, 2] : vector<1x1x8xf32> to vector<1xf32>
    %180 = vector.shape_cast %179 : vector<1xf32> to vector<1x1x1xf32>
    %181 = vector.extract %180[0, 0, 0] : f32 from vector<1x1x1xf32>
    %cst_65 = arith.constant 9.99999997E-7 : f32
    %182 = arith.cmpf ole, %181, %cst_65 : f32
    %183 = arith.extui %182 : i1 to i32
    %184 = arith.sitofp %183 : i32 to f32
    %185 = vector.broadcast %184 : f32 to vector<8x8xf32>
    %186 = arith.mulf %185, %172 : vector<8x8xf32>
    %cst_66 = arith.constant 1.000000e+00 : f32
    %187 = arith.subf %cst_66, %184 : f32
    %188 = vector.broadcast %174 : vector<1x8xf32> to vector<8x8xf32>
    %189 = arith.divf %172, %188 : vector<8x8xf32>
    %cst_67 = arith.constant 1.250000e-01 : f32
    %190 = vector.broadcast %cst_67 : f32 to vector<8x8xf32>
    %191 = arith.mulf %189, %190 : vector<8x8xf32>
    %192 = vector.broadcast %187 : f32 to vector<8x8xf32>
    %193 = arith.mulf %192, %191 : vector<8x8xf32>
    %194 = arith.addf %186, %193 : vector<8x8xf32>
    %195 = vector.broadcast %166 : f32 to vector<8x8xf32>
    %196 = arith.mulf %195, %165 : vector<8x8xf32>
    %cst_68 = arith.constant 1.000000e+00 : f32
    %197 = arith.subf %cst_68, %166 : f32
    %198 = vector.broadcast %197 : f32 to vector<8x8xf32>
    %199 = arith.mulf %198, %194 : vector<8x8xf32>
    %200 = arith.addf %196, %199 : vector<8x8xf32>
    %201 = arith.maximumf %166, %184 : f32
    %cst_69 = arith.constant dense<0.000000e+00> : vector<8xf32>
    %202 = vector.multi_reduction <add>, %200, %cst_69 [1] : vector<8x8xf32> to vector<8xf32>
    %203 = vector.shape_cast %202 : vector<8xf32> to vector<8x1xf32>
    %204 = vector.broadcast %203 : vector<8x1xf32> to vector<8x8xf32>
    %205 = arith.divf %200, %204 : vector<8x8xf32>
    %cst_70 = arith.constant 1.250000e-01 : f32
    %206 = vector.broadcast %cst_70 : f32 to vector<8x8xf32>
    %207 = arith.mulf %205, %206 : vector<8x8xf32>
    %cst_71 = arith.constant dense<0.000000e+00> : vector<8xf32>
    %208 = vector.multi_reduction <add>, %207, %cst_71 [0] : vector<8x8xf32> to vector<8xf32>
    %209 = vector.shape_cast %208 : vector<8xf32> to vector<1x8xf32>
    %cst_72 = arith.constant 1.250000e-01 : f32
    %210 = vector.broadcast %cst_72 : f32 to vector<1x8xf32>
    %211 = arith.subf %209, %210 : vector<1x8xf32>
    %212 = math.absf %211 : vector<1x8xf32>
    %213 = vector.shape_cast %212 : vector<1x8xf32> to vector<1x1x8xf32>
    %cst_73 = arith.constant dense<0xFF800000> : vector<1xf32>
    %214 = vector.multi_reduction <maximumf>, %213, %cst_73 [1, 2] : vector<1x1x8xf32> to vector<1xf32>
    %215 = vector.shape_cast %214 : vector<1xf32> to vector<1x1x1xf32>
    %216 = vector.extract %215[0, 0, 0] : f32 from vector<1x1x1xf32>
    %cst_74 = arith.constant 9.99999997E-7 : f32
    %217 = arith.cmpf ole, %216, %cst_74 : f32
    %218 = arith.extui %217 : i1 to i32
    %219 = arith.sitofp %218 : i32 to f32
    %220 = vector.broadcast %219 : f32 to vector<8x8xf32>
    %221 = arith.mulf %220, %207 : vector<8x8xf32>
    %cst_75 = arith.constant 1.000000e+00 : f32
    %222 = arith.subf %cst_75, %219 : f32
    %223 = vector.broadcast %209 : vector<1x8xf32> to vector<8x8xf32>
    %224 = arith.divf %207, %223 : vector<8x8xf32>
    %cst_76 = arith.constant 1.250000e-01 : f32
    %225 = vector.broadcast %cst_76 : f32 to vector<8x8xf32>
    %226 = arith.mulf %224, %225 : vector<8x8xf32>
    %227 = vector.broadcast %222 : f32 to vector<8x8xf32>
    %228 = arith.mulf %227, %226 : vector<8x8xf32>
    %229 = arith.addf %221, %228 : vector<8x8xf32>
    %230 = vector.broadcast %201 : f32 to vector<8x8xf32>
    %231 = arith.mulf %230, %200 : vector<8x8xf32>
    %cst_77 = arith.constant 1.000000e+00 : f32
    %232 = arith.subf %cst_77, %201 : f32
    %233 = vector.broadcast %232 : f32 to vector<8x8xf32>
    %234 = arith.mulf %233, %229 : vector<8x8xf32>
    %235 = arith.addf %231, %234 : vector<8x8xf32>
    %236 = arith.maximumf %201, %219 : f32
    %cst_78 = arith.constant dense<0.000000e+00> : vector<8xf32>
    %237 = vector.multi_reduction <add>, %235, %cst_78 [1] : vector<8x8xf32> to vector<8xf32>
    %238 = vector.shape_cast %237 : vector<8xf32> to vector<8x1xf32>
    %239 = vector.broadcast %238 : vector<8x1xf32> to vector<8x8xf32>
    %240 = arith.divf %235, %239 : vector<8x8xf32>
    %cst_79 = arith.constant 1.250000e-01 : f32
    %241 = vector.broadcast %cst_79 : f32 to vector<8x8xf32>
    %242 = arith.mulf %240, %241 : vector<8x8xf32>
    %cst_80 = arith.constant dense<0.000000e+00> : vector<8xf32>
    %243 = vector.multi_reduction <add>, %242, %cst_80 [0] : vector<8x8xf32> to vector<8xf32>
    %244 = vector.shape_cast %243 : vector<8xf32> to vector<1x8xf32>
    %cst_81 = arith.constant 1.250000e-01 : f32
    %245 = vector.broadcast %cst_81 : f32 to vector<1x8xf32>
    %246 = arith.subf %244, %245 : vector<1x8xf32>
    %247 = math.absf %246 : vector<1x8xf32>
    %248 = vector.shape_cast %247 : vector<1x8xf32> to vector<1x1x8xf32>
    %cst_82 = arith.constant dense<0xFF800000> : vector<1xf32>
    %249 = vector.multi_reduction <maximumf>, %248, %cst_82 [1, 2] : vector<1x1x8xf32> to vector<1xf32>
    %250 = vector.shape_cast %249 : vector<1xf32> to vector<1x1x1xf32>
    %251 = vector.extract %250[0, 0, 0] : f32 from vector<1x1x1xf32>
    %cst_83 = arith.constant 9.99999997E-7 : f32
    %252 = arith.cmpf ole, %251, %cst_83 : f32
    %253 = arith.extui %252 : i1 to i32
    %254 = arith.sitofp %253 : i32 to f32
    %255 = vector.broadcast %254 : f32 to vector<8x8xf32>
    %256 = arith.mulf %255, %242 : vector<8x8xf32>
    %cst_84 = arith.constant 1.000000e+00 : f32
    %257 = arith.subf %cst_84, %254 : f32
    %258 = vector.broadcast %244 : vector<1x8xf32> to vector<8x8xf32>
    %259 = arith.divf %242, %258 : vector<8x8xf32>
    %cst_85 = arith.constant 1.250000e-01 : f32
    %260 = vector.broadcast %cst_85 : f32 to vector<8x8xf32>
    %261 = arith.mulf %259, %260 : vector<8x8xf32>
    %262 = vector.broadcast %257 : f32 to vector<8x8xf32>
    %263 = arith.mulf %262, %261 : vector<8x8xf32>
    %264 = arith.addf %256, %263 : vector<8x8xf32>
    %265 = vector.broadcast %236 : f32 to vector<8x8xf32>
    %266 = arith.mulf %265, %235 : vector<8x8xf32>
    %cst_86 = arith.constant 1.000000e+00 : f32
    %267 = arith.subf %cst_86, %236 : f32
    %268 = vector.broadcast %267 : f32 to vector<8x8xf32>
    %269 = arith.mulf %268, %264 : vector<8x8xf32>
    %270 = arith.addf %266, %269 : vector<8x8xf32>
    %271 = arith.maximumf %236, %254 : f32
    %cst_87 = arith.constant dense<0.000000e+00> : vector<8xf32>
    %272 = vector.multi_reduction <add>, %270, %cst_87 [1] : vector<8x8xf32> to vector<8xf32>
    %273 = vector.shape_cast %272 : vector<8xf32> to vector<8x1xf32>
    %274 = vector.broadcast %273 : vector<8x1xf32> to vector<8x8xf32>
    %275 = arith.divf %270, %274 : vector<8x8xf32>
    %cst_88 = arith.constant 1.250000e-01 : f32
    %276 = vector.broadcast %cst_88 : f32 to vector<8x8xf32>
    %277 = arith.mulf %275, %276 : vector<8x8xf32>
    %cst_89 = arith.constant dense<0.000000e+00> : vector<8xf32>
    %278 = vector.multi_reduction <add>, %277, %cst_89 [0] : vector<8x8xf32> to vector<8xf32>
    %279 = vector.shape_cast %278 : vector<8xf32> to vector<1x8xf32>
    %cst_90 = arith.constant 1.250000e-01 : f32
    %280 = vector.broadcast %cst_90 : f32 to vector<1x8xf32>
    %281 = arith.subf %279, %280 : vector<1x8xf32>
    %282 = math.absf %281 : vector<1x8xf32>
    %283 = vector.shape_cast %282 : vector<1x8xf32> to vector<1x1x8xf32>
    %cst_91 = arith.constant dense<0xFF800000> : vector<1xf32>
    %284 = vector.multi_reduction <maximumf>, %283, %cst_91 [1, 2] : vector<1x1x8xf32> to vector<1xf32>
    %285 = vector.shape_cast %284 : vector<1xf32> to vector<1x1x1xf32>
    %286 = vector.extract %285[0, 0, 0] : f32 from vector<1x1x1xf32>
    %cst_92 = arith.constant 9.99999997E-7 : f32
    %287 = arith.cmpf ole, %286, %cst_92 : f32
    %288 = arith.extui %287 : i1 to i32
    %289 = arith.sitofp %288 : i32 to f32
    %290 = vector.broadcast %289 : f32 to vector<8x8xf32>
    %291 = arith.mulf %290, %277 : vector<8x8xf32>
    %cst_93 = arith.constant 1.000000e+00 : f32
    %292 = arith.subf %cst_93, %289 : f32
    %293 = vector.broadcast %279 : vector<1x8xf32> to vector<8x8xf32>
    %294 = arith.divf %277, %293 : vector<8x8xf32>
    %cst_94 = arith.constant 1.250000e-01 : f32
    %295 = vector.broadcast %cst_94 : f32 to vector<8x8xf32>
    %296 = arith.mulf %294, %295 : vector<8x8xf32>
    %297 = vector.broadcast %292 : f32 to vector<8x8xf32>
    %298 = arith.mulf %297, %296 : vector<8x8xf32>
    %299 = arith.addf %291, %298 : vector<8x8xf32>
    %300 = vector.broadcast %271 : f32 to vector<8x8xf32>
    %301 = arith.mulf %300, %270 : vector<8x8xf32>
    %cst_95 = arith.constant 1.000000e+00 : f32
    %302 = arith.subf %cst_95, %271 : f32
    %303 = vector.broadcast %302 : f32 to vector<8x8xf32>
    %304 = arith.mulf %303, %299 : vector<8x8xf32>
    %305 = arith.addf %301, %304 : vector<8x8xf32>
    %306 = arith.maximumf %271, %289 : f32
    %cst_96 = arith.constant dense<0.000000e+00> : vector<8xf32>
    %307 = vector.multi_reduction <add>, %305, %cst_96 [1] : vector<8x8xf32> to vector<8xf32>
    %308 = vector.shape_cast %307 : vector<8xf32> to vector<8x1xf32>
    %309 = vector.broadcast %308 : vector<8x1xf32> to vector<8x8xf32>
    %310 = arith.divf %305, %309 : vector<8x8xf32>
    %cst_97 = arith.constant 1.250000e-01 : f32
    %311 = vector.broadcast %cst_97 : f32 to vector<8x8xf32>
    %312 = arith.mulf %310, %311 : vector<8x8xf32>
    %cst_98 = arith.constant dense<0.000000e+00> : vector<8xf32>
    %313 = vector.multi_reduction <add>, %312, %cst_98 [0] : vector<8x8xf32> to vector<8xf32>
    %314 = vector.shape_cast %313 : vector<8xf32> to vector<1x8xf32>
    %cst_99 = arith.constant 1.250000e-01 : f32
    %315 = vector.broadcast %cst_99 : f32 to vector<1x8xf32>
    %316 = arith.subf %314, %315 : vector<1x8xf32>
    %317 = math.absf %316 : vector<1x8xf32>
    %318 = vector.shape_cast %317 : vector<1x8xf32> to vector<1x1x8xf32>
    %cst_100 = arith.constant dense<0xFF800000> : vector<1xf32>
    %319 = vector.multi_reduction <maximumf>, %318, %cst_100 [1, 2] : vector<1x1x8xf32> to vector<1xf32>
    %320 = vector.shape_cast %319 : vector<1xf32> to vector<1x1x1xf32>
    %321 = vector.extract %320[0, 0, 0] : f32 from vector<1x1x1xf32>
    %cst_101 = arith.constant 9.99999997E-7 : f32
    %322 = arith.cmpf ole, %321, %cst_101 : f32
    %323 = arith.extui %322 : i1 to i32
    %324 = arith.sitofp %323 : i32 to f32
    %325 = vector.broadcast %324 : f32 to vector<8x8xf32>
    %326 = arith.mulf %325, %312 : vector<8x8xf32>
    %cst_102 = arith.constant 1.000000e+00 : f32
    %327 = arith.subf %cst_102, %324 : f32
    %328 = vector.broadcast %314 : vector<1x8xf32> to vector<8x8xf32>
    %329 = arith.divf %312, %328 : vector<8x8xf32>
    %cst_103 = arith.constant 1.250000e-01 : f32
    %330 = vector.broadcast %cst_103 : f32 to vector<8x8xf32>
    %331 = arith.mulf %329, %330 : vector<8x8xf32>
    %332 = vector.broadcast %327 : f32 to vector<8x8xf32>
    %333 = arith.mulf %332, %331 : vector<8x8xf32>
    %334 = arith.addf %326, %333 : vector<8x8xf32>
    %335 = vector.broadcast %306 : f32 to vector<8x8xf32>
    %336 = arith.mulf %335, %305 : vector<8x8xf32>
    %cst_104 = arith.constant 1.000000e+00 : f32
    %337 = arith.subf %cst_104, %306 : f32
    %338 = vector.broadcast %337 : f32 to vector<8x8xf32>
    %339 = arith.mulf %338, %334 : vector<8x8xf32>
    %340 = arith.addf %336, %339 : vector<8x8xf32>
    %341 = arith.maximumf %306, %324 : f32
    %cst_105 = arith.constant dense<0.000000e+00> : vector<8xf32>
    %342 = vector.multi_reduction <add>, %340, %cst_105 [1] : vector<8x8xf32> to vector<8xf32>
    %343 = vector.shape_cast %342 : vector<8xf32> to vector<8x1xf32>
    %344 = vector.broadcast %343 : vector<8x1xf32> to vector<8x8xf32>
    %345 = arith.divf %340, %344 : vector<8x8xf32>
    %cst_106 = arith.constant 1.250000e-01 : f32
    %346 = vector.broadcast %cst_106 : f32 to vector<8x8xf32>
    %347 = arith.mulf %345, %346 : vector<8x8xf32>
    %cst_107 = arith.constant dense<0.000000e+00> : vector<8xf32>
    %348 = vector.multi_reduction <add>, %347, %cst_107 [0] : vector<8x8xf32> to vector<8xf32>
    %349 = vector.shape_cast %348 : vector<8xf32> to vector<1x8xf32>
    %cst_108 = arith.constant 1.250000e-01 : f32
    %350 = vector.broadcast %cst_108 : f32 to vector<1x8xf32>
    %351 = arith.subf %349, %350 : vector<1x8xf32>
    %352 = math.absf %351 : vector<1x8xf32>
    %353 = vector.shape_cast %352 : vector<1x8xf32> to vector<1x1x8xf32>
    %cst_109 = arith.constant dense<0xFF800000> : vector<1xf32>
    %354 = vector.multi_reduction <maximumf>, %353, %cst_109 [1, 2] : vector<1x1x8xf32> to vector<1xf32>
    %355 = vector.shape_cast %354 : vector<1xf32> to vector<1x1x1xf32>
    %356 = vector.extract %355[0, 0, 0] : f32 from vector<1x1x1xf32>
    %cst_110 = arith.constant 9.99999997E-7 : f32
    %357 = arith.cmpf ole, %356, %cst_110 : f32
    %358 = arith.extui %357 : i1 to i32
    %359 = arith.sitofp %358 : i32 to f32
    %360 = vector.broadcast %359 : f32 to vector<8x8xf32>
    %361 = arith.mulf %360, %347 : vector<8x8xf32>
    %cst_111 = arith.constant 1.000000e+00 : f32
    %362 = arith.subf %cst_111, %359 : f32
    %363 = vector.broadcast %349 : vector<1x8xf32> to vector<8x8xf32>
    %364 = arith.divf %347, %363 : vector<8x8xf32>
    %cst_112 = arith.constant 1.250000e-01 : f32
    %365 = vector.broadcast %cst_112 : f32 to vector<8x8xf32>
    %366 = arith.mulf %364, %365 : vector<8x8xf32>
    %367 = vector.broadcast %362 : f32 to vector<8x8xf32>
    %368 = arith.mulf %367, %366 : vector<8x8xf32>
    %369 = arith.addf %361, %368 : vector<8x8xf32>
    %370 = vector.broadcast %341 : f32 to vector<8x8xf32>
    %371 = arith.mulf %370, %340 : vector<8x8xf32>
    %cst_113 = arith.constant 1.000000e+00 : f32
    %372 = arith.subf %cst_113, %341 : f32
    %373 = vector.broadcast %372 : f32 to vector<8x8xf32>
    %374 = arith.mulf %373, %369 : vector<8x8xf32>
    %375 = arith.addf %371, %374 : vector<8x8xf32>
    %376 = arith.maximumf %341, %359 : f32
    %cst_114 = arith.constant dense<0.000000e+00> : vector<8xf32>
    %377 = vector.multi_reduction <add>, %375, %cst_114 [1] : vector<8x8xf32> to vector<8xf32>
    %378 = vector.shape_cast %377 : vector<8xf32> to vector<8x1xf32>
    %379 = vector.broadcast %378 : vector<8x1xf32> to vector<8x8xf32>
    %380 = arith.divf %375, %379 : vector<8x8xf32>
    %cst_115 = arith.constant 1.250000e-01 : f32
    %381 = vector.broadcast %cst_115 : f32 to vector<8x8xf32>
    %382 = arith.mulf %380, %381 : vector<8x8xf32>
    %cst_116 = arith.constant dense<0.000000e+00> : vector<8xf32>
    %383 = vector.multi_reduction <add>, %382, %cst_116 [0] : vector<8x8xf32> to vector<8xf32>
    %384 = vector.shape_cast %383 : vector<8xf32> to vector<1x8xf32>
    %cst_117 = arith.constant 1.250000e-01 : f32
    %385 = vector.broadcast %cst_117 : f32 to vector<1x8xf32>
    %386 = arith.subf %384, %385 : vector<1x8xf32>
    %387 = math.absf %386 : vector<1x8xf32>
    %388 = vector.shape_cast %387 : vector<1x8xf32> to vector<1x1x8xf32>
    %cst_118 = arith.constant dense<0xFF800000> : vector<1xf32>
    %389 = vector.multi_reduction <maximumf>, %388, %cst_118 [1, 2] : vector<1x1x8xf32> to vector<1xf32>
    %390 = vector.shape_cast %389 : vector<1xf32> to vector<1x1x1xf32>
    %391 = vector.extract %390[0, 0, 0] : f32 from vector<1x1x1xf32>
    %cst_119 = arith.constant 9.99999997E-7 : f32
    %392 = arith.cmpf ole, %391, %cst_119 : f32
    %393 = arith.extui %392 : i1 to i32
    %394 = arith.sitofp %393 : i32 to f32
    %395 = vector.broadcast %394 : f32 to vector<8x8xf32>
    %396 = arith.mulf %395, %382 : vector<8x8xf32>
    %cst_120 = arith.constant 1.000000e+00 : f32
    %397 = arith.subf %cst_120, %394 : f32
    %398 = vector.broadcast %384 : vector<1x8xf32> to vector<8x8xf32>
    %399 = arith.divf %382, %398 : vector<8x8xf32>
    %cst_121 = arith.constant 1.250000e-01 : f32
    %400 = vector.broadcast %cst_121 : f32 to vector<8x8xf32>
    %401 = arith.mulf %399, %400 : vector<8x8xf32>
    %402 = vector.broadcast %397 : f32 to vector<8x8xf32>
    %403 = arith.mulf %402, %401 : vector<8x8xf32>
    %404 = arith.addf %396, %403 : vector<8x8xf32>
    %405 = vector.broadcast %376 : f32 to vector<8x8xf32>
    %406 = arith.mulf %405, %375 : vector<8x8xf32>
    %cst_122 = arith.constant 1.000000e+00 : f32
    %407 = arith.subf %cst_122, %376 : f32
    %408 = vector.broadcast %407 : f32 to vector<8x8xf32>
    %409 = arith.mulf %408, %404 : vector<8x8xf32>
    %410 = arith.addf %406, %409 : vector<8x8xf32>
    %411 = arith.maximumf %376, %394 : f32
    %cst_123 = arith.constant dense<0.000000e+00> : vector<8xf32>
    %412 = vector.multi_reduction <add>, %410, %cst_123 [1] : vector<8x8xf32> to vector<8xf32>
    %413 = vector.shape_cast %412 : vector<8xf32> to vector<8x1xf32>
    %414 = vector.broadcast %413 : vector<8x1xf32> to vector<8x8xf32>
    %415 = arith.divf %410, %414 : vector<8x8xf32>
    %cst_124 = arith.constant 1.250000e-01 : f32
    %416 = vector.broadcast %cst_124 : f32 to vector<8x8xf32>
    %417 = arith.mulf %415, %416 : vector<8x8xf32>
    %cst_125 = arith.constant dense<0.000000e+00> : vector<8xf32>
    %418 = vector.multi_reduction <add>, %417, %cst_125 [0] : vector<8x8xf32> to vector<8xf32>
    %419 = vector.shape_cast %418 : vector<8xf32> to vector<1x8xf32>
    %cst_126 = arith.constant 1.250000e-01 : f32
    %420 = vector.broadcast %cst_126 : f32 to vector<1x8xf32>
    %421 = arith.subf %419, %420 : vector<1x8xf32>
    %422 = math.absf %421 : vector<1x8xf32>
    %423 = vector.shape_cast %422 : vector<1x8xf32> to vector<1x1x8xf32>
    %cst_127 = arith.constant dense<0xFF800000> : vector<1xf32>
    %424 = vector.multi_reduction <maximumf>, %423, %cst_127 [1, 2] : vector<1x1x8xf32> to vector<1xf32>
    %425 = vector.shape_cast %424 : vector<1xf32> to vector<1x1x1xf32>
    %426 = vector.extract %425[0, 0, 0] : f32 from vector<1x1x1xf32>
    %cst_128 = arith.constant 9.99999997E-7 : f32
    %427 = arith.cmpf ole, %426, %cst_128 : f32
    %428 = arith.extui %427 : i1 to i32
    %429 = arith.sitofp %428 : i32 to f32
    %430 = vector.broadcast %429 : f32 to vector<8x8xf32>
    %431 = arith.mulf %430, %417 : vector<8x8xf32>
    %cst_129 = arith.constant 1.000000e+00 : f32
    %432 = arith.subf %cst_129, %429 : f32
    %433 = vector.broadcast %419 : vector<1x8xf32> to vector<8x8xf32>
    %434 = arith.divf %417, %433 : vector<8x8xf32>
    %cst_130 = arith.constant 1.250000e-01 : f32
    %435 = vector.broadcast %cst_130 : f32 to vector<8x8xf32>
    %436 = arith.mulf %434, %435 : vector<8x8xf32>
    %437 = vector.broadcast %432 : f32 to vector<8x8xf32>
    %438 = arith.mulf %437, %436 : vector<8x8xf32>
    %439 = arith.addf %431, %438 : vector<8x8xf32>
    %440 = vector.broadcast %411 : f32 to vector<8x8xf32>
    %441 = arith.mulf %440, %410 : vector<8x8xf32>
    %cst_131 = arith.constant 1.000000e+00 : f32
    %442 = arith.subf %cst_131, %411 : f32
    %443 = vector.broadcast %442 : f32 to vector<8x8xf32>
    %444 = arith.mulf %443, %439 : vector<8x8xf32>
    %445 = arith.addf %441, %444 : vector<8x8xf32>
    %446 = arith.maximumf %411, %429 : f32
    %cst_132 = arith.constant dense<0.000000e+00> : vector<8xf32>
    %447 = vector.multi_reduction <add>, %445, %cst_132 [1] : vector<8x8xf32> to vector<8xf32>
    %448 = vector.shape_cast %447 : vector<8xf32> to vector<8x1xf32>
    %449 = vector.broadcast %448 : vector<8x1xf32> to vector<8x8xf32>
    %450 = arith.divf %445, %449 : vector<8x8xf32>
    %cst_133 = arith.constant 1.250000e-01 : f32
    %451 = vector.broadcast %cst_133 : f32 to vector<8x8xf32>
    %452 = arith.mulf %450, %451 : vector<8x8xf32>
    %cst_134 = arith.constant dense<0.000000e+00> : vector<8xf32>
    %453 = vector.multi_reduction <add>, %452, %cst_134 [0] : vector<8x8xf32> to vector<8xf32>
    %454 = vector.shape_cast %453 : vector<8xf32> to vector<1x8xf32>
    %cst_135 = arith.constant 1.250000e-01 : f32
    %455 = vector.broadcast %cst_135 : f32 to vector<1x8xf32>
    %456 = arith.subf %454, %455 : vector<1x8xf32>
    %457 = math.absf %456 : vector<1x8xf32>
    %458 = vector.shape_cast %457 : vector<1x8xf32> to vector<1x1x8xf32>
    %cst_136 = arith.constant dense<0xFF800000> : vector<1xf32>
    %459 = vector.multi_reduction <maximumf>, %458, %cst_136 [1, 2] : vector<1x1x8xf32> to vector<1xf32>
    %460 = vector.shape_cast %459 : vector<1xf32> to vector<1x1x1xf32>
    %461 = vector.extract %460[0, 0, 0] : f32 from vector<1x1x1xf32>
    %cst_137 = arith.constant 9.99999997E-7 : f32
    %462 = arith.cmpf ole, %461, %cst_137 : f32
    %463 = arith.extui %462 : i1 to i32
    %464 = arith.sitofp %463 : i32 to f32
    %465 = vector.broadcast %464 : f32 to vector<8x8xf32>
    %466 = arith.mulf %465, %452 : vector<8x8xf32>
    %cst_138 = arith.constant 1.000000e+00 : f32
    %467 = arith.subf %cst_138, %464 : f32
    %468 = vector.broadcast %454 : vector<1x8xf32> to vector<8x8xf32>
    %469 = arith.divf %452, %468 : vector<8x8xf32>
    %cst_139 = arith.constant 1.250000e-01 : f32
    %470 = vector.broadcast %cst_139 : f32 to vector<8x8xf32>
    %471 = arith.mulf %469, %470 : vector<8x8xf32>
    %472 = vector.broadcast %467 : f32 to vector<8x8xf32>
    %473 = arith.mulf %472, %471 : vector<8x8xf32>
    %474 = arith.addf %466, %473 : vector<8x8xf32>
    %475 = vector.broadcast %446 : f32 to vector<8x8xf32>
    %476 = arith.mulf %475, %445 : vector<8x8xf32>
    %cst_140 = arith.constant 1.000000e+00 : f32
    %477 = arith.subf %cst_140, %446 : f32
    %478 = vector.broadcast %477 : f32 to vector<8x8xf32>
    %479 = arith.mulf %478, %474 : vector<8x8xf32>
    %480 = arith.addf %476, %479 : vector<8x8xf32>
    %481 = arith.maximumf %446, %464 : f32
    %cst_141 = arith.constant dense<0.000000e+00> : vector<8xf32>
    %482 = vector.multi_reduction <add>, %480, %cst_141 [1] : vector<8x8xf32> to vector<8xf32>
    %483 = vector.shape_cast %482 : vector<8xf32> to vector<8x1xf32>
    %484 = vector.broadcast %483 : vector<8x1xf32> to vector<8x8xf32>
    %485 = arith.divf %480, %484 : vector<8x8xf32>
    %cst_142 = arith.constant 1.250000e-01 : f32
    %486 = vector.broadcast %cst_142 : f32 to vector<8x8xf32>
    %487 = arith.mulf %485, %486 : vector<8x8xf32>
    %cst_143 = arith.constant dense<0.000000e+00> : vector<8xf32>
    %488 = vector.multi_reduction <add>, %487, %cst_143 [0] : vector<8x8xf32> to vector<8xf32>
    %489 = vector.shape_cast %488 : vector<8xf32> to vector<1x8xf32>
    %cst_144 = arith.constant 1.250000e-01 : f32
    %490 = vector.broadcast %cst_144 : f32 to vector<1x8xf32>
    %491 = arith.subf %489, %490 : vector<1x8xf32>
    %492 = math.absf %491 : vector<1x8xf32>
    %493 = vector.shape_cast %492 : vector<1x8xf32> to vector<1x1x8xf32>
    %cst_145 = arith.constant dense<0xFF800000> : vector<1xf32>
    %494 = vector.multi_reduction <maximumf>, %493, %cst_145 [1, 2] : vector<1x1x8xf32> to vector<1xf32>
    %495 = vector.shape_cast %494 : vector<1xf32> to vector<1x1x1xf32>
    %496 = vector.extract %495[0, 0, 0] : f32 from vector<1x1x1xf32>
    %cst_146 = arith.constant 9.99999997E-7 : f32
    %497 = arith.cmpf ole, %496, %cst_146 : f32
    %498 = arith.extui %497 : i1 to i32
    %499 = arith.sitofp %498 : i32 to f32
    %500 = vector.broadcast %499 : f32 to vector<8x8xf32>
    %501 = arith.mulf %500, %487 : vector<8x8xf32>
    %cst_147 = arith.constant 1.000000e+00 : f32
    %502 = arith.subf %cst_147, %499 : f32
    %503 = vector.broadcast %489 : vector<1x8xf32> to vector<8x8xf32>
    %504 = arith.divf %487, %503 : vector<8x8xf32>
    %cst_148 = arith.constant 1.250000e-01 : f32
    %505 = vector.broadcast %cst_148 : f32 to vector<8x8xf32>
    %506 = arith.mulf %504, %505 : vector<8x8xf32>
    %507 = vector.broadcast %502 : f32 to vector<8x8xf32>
    %508 = arith.mulf %507, %506 : vector<8x8xf32>
    %509 = arith.addf %501, %508 : vector<8x8xf32>
    %510 = vector.broadcast %481 : f32 to vector<8x8xf32>
    %511 = arith.mulf %510, %480 : vector<8x8xf32>
    %cst_149 = arith.constant 1.000000e+00 : f32
    %512 = arith.subf %cst_149, %481 : f32
    %513 = vector.broadcast %512 : f32 to vector<8x8xf32>
    %514 = arith.mulf %513, %509 : vector<8x8xf32>
    %515 = arith.addf %511, %514 : vector<8x8xf32>
    %516 = arith.maximumf %481, %499 : f32
    %cst_150 = arith.constant dense<0.000000e+00> : vector<8xf32>
    %517 = vector.multi_reduction <add>, %515, %cst_150 [1] : vector<8x8xf32> to vector<8xf32>
    %518 = vector.shape_cast %517 : vector<8xf32> to vector<8x1xf32>
    %519 = vector.broadcast %518 : vector<8x1xf32> to vector<8x8xf32>
    %520 = arith.divf %515, %519 : vector<8x8xf32>
    %cst_151 = arith.constant 1.250000e-01 : f32
    %521 = vector.broadcast %cst_151 : f32 to vector<8x8xf32>
    %522 = arith.mulf %520, %521 : vector<8x8xf32>
    %cst_152 = arith.constant dense<0.000000e+00> : vector<8xf32>
    %523 = vector.multi_reduction <add>, %522, %cst_152 [0] : vector<8x8xf32> to vector<8xf32>
    %524 = vector.shape_cast %523 : vector<8xf32> to vector<1x8xf32>
    %cst_153 = arith.constant 1.250000e-01 : f32
    %525 = vector.broadcast %cst_153 : f32 to vector<1x8xf32>
    %526 = arith.subf %524, %525 : vector<1x8xf32>
    %527 = math.absf %526 : vector<1x8xf32>
    %528 = vector.shape_cast %527 : vector<1x8xf32> to vector<1x1x8xf32>
    %cst_154 = arith.constant dense<0xFF800000> : vector<1xf32>
    %529 = vector.multi_reduction <maximumf>, %528, %cst_154 [1, 2] : vector<1x1x8xf32> to vector<1xf32>
    %530 = vector.shape_cast %529 : vector<1xf32> to vector<1x1x1xf32>
    %531 = vector.extract %530[0, 0, 0] : f32 from vector<1x1x1xf32>
    %cst_155 = arith.constant 9.99999997E-7 : f32
    %532 = arith.cmpf ole, %531, %cst_155 : f32
    %533 = arith.extui %532 : i1 to i32
    %534 = arith.sitofp %533 : i32 to f32
    %535 = vector.broadcast %534 : f32 to vector<8x8xf32>
    %536 = arith.mulf %535, %522 : vector<8x8xf32>
    %cst_156 = arith.constant 1.000000e+00 : f32
    %537 = arith.subf %cst_156, %534 : f32
    %538 = vector.broadcast %524 : vector<1x8xf32> to vector<8x8xf32>
    %539 = arith.divf %522, %538 : vector<8x8xf32>
    %cst_157 = arith.constant 1.250000e-01 : f32
    %540 = vector.broadcast %cst_157 : f32 to vector<8x8xf32>
    %541 = arith.mulf %539, %540 : vector<8x8xf32>
    %542 = vector.broadcast %537 : f32 to vector<8x8xf32>
    %543 = arith.mulf %542, %541 : vector<8x8xf32>
    %544 = arith.addf %536, %543 : vector<8x8xf32>
    %545 = vector.broadcast %516 : f32 to vector<8x8xf32>
    %546 = arith.mulf %545, %515 : vector<8x8xf32>
    %cst_158 = arith.constant 1.000000e+00 : f32
    %547 = arith.subf %cst_158, %516 : f32
    %548 = vector.broadcast %547 : f32 to vector<8x8xf32>
    %549 = arith.mulf %548, %544 : vector<8x8xf32>
    %550 = arith.addf %546, %549 : vector<8x8xf32>
    %551 = arith.maximumf %516, %534 : f32
    %cst_159 = arith.constant dense<0.000000e+00> : vector<8xf32>
    %552 = vector.multi_reduction <add>, %550, %cst_159 [1] : vector<8x8xf32> to vector<8xf32>
    %553 = vector.shape_cast %552 : vector<8xf32> to vector<8x1xf32>
    %554 = vector.broadcast %553 : vector<8x1xf32> to vector<8x8xf32>
    %555 = arith.divf %550, %554 : vector<8x8xf32>
    %cst_160 = arith.constant 1.250000e-01 : f32
    %556 = vector.broadcast %cst_160 : f32 to vector<8x8xf32>
    %557 = arith.mulf %555, %556 : vector<8x8xf32>
    %cst_161 = arith.constant dense<0.000000e+00> : vector<8xf32>
    %558 = vector.multi_reduction <add>, %557, %cst_161 [0] : vector<8x8xf32> to vector<8xf32>
    %559 = vector.shape_cast %558 : vector<8xf32> to vector<1x8xf32>
    %cst_162 = arith.constant 1.250000e-01 : f32
    %560 = vector.broadcast %cst_162 : f32 to vector<1x8xf32>
    %561 = arith.subf %559, %560 : vector<1x8xf32>
    %562 = math.absf %561 : vector<1x8xf32>
    %563 = vector.shape_cast %562 : vector<1x8xf32> to vector<1x1x8xf32>
    %cst_163 = arith.constant dense<0xFF800000> : vector<1xf32>
    %564 = vector.multi_reduction <maximumf>, %563, %cst_163 [1, 2] : vector<1x1x8xf32> to vector<1xf32>
    %565 = vector.shape_cast %564 : vector<1xf32> to vector<1x1x1xf32>
    %566 = vector.extract %565[0, 0, 0] : f32 from vector<1x1x1xf32>
    %cst_164 = arith.constant 9.99999997E-7 : f32
    %567 = arith.cmpf ole, %566, %cst_164 : f32
    %568 = arith.extui %567 : i1 to i32
    %569 = arith.sitofp %568 : i32 to f32
    %570 = vector.broadcast %569 : f32 to vector<8x8xf32>
    %571 = arith.mulf %570, %557 : vector<8x8xf32>
    %cst_165 = arith.constant 1.000000e+00 : f32
    %572 = arith.subf %cst_165, %569 : f32
    %573 = vector.broadcast %559 : vector<1x8xf32> to vector<8x8xf32>
    %574 = arith.divf %557, %573 : vector<8x8xf32>
    %cst_166 = arith.constant 1.250000e-01 : f32
    %575 = vector.broadcast %cst_166 : f32 to vector<8x8xf32>
    %576 = arith.mulf %574, %575 : vector<8x8xf32>
    %577 = vector.broadcast %572 : f32 to vector<8x8xf32>
    %578 = arith.mulf %577, %576 : vector<8x8xf32>
    %579 = arith.addf %571, %578 : vector<8x8xf32>
    %580 = vector.broadcast %551 : f32 to vector<8x8xf32>
    %581 = arith.mulf %580, %550 : vector<8x8xf32>
    %cst_167 = arith.constant 1.000000e+00 : f32
    %582 = arith.subf %cst_167, %551 : f32
    %583 = vector.broadcast %582 : f32 to vector<8x8xf32>
    %584 = arith.mulf %583, %579 : vector<8x8xf32>
    %585 = arith.addf %581, %584 : vector<8x8xf32>
    %586 = arith.maximumf %551, %569 : f32
    %cst_168 = arith.constant dense<0.000000e+00> : vector<8xf32>
    %587 = vector.multi_reduction <add>, %585, %cst_168 [1] : vector<8x8xf32> to vector<8xf32>
    %588 = vector.shape_cast %587 : vector<8xf32> to vector<8x1xf32>
    %589 = vector.broadcast %588 : vector<8x1xf32> to vector<8x8xf32>
    %590 = arith.divf %585, %589 : vector<8x8xf32>
    %cst_169 = arith.constant 1.250000e-01 : f32
    %591 = vector.broadcast %cst_169 : f32 to vector<8x8xf32>
    %592 = arith.mulf %590, %591 : vector<8x8xf32>
    %cst_170 = arith.constant dense<0.000000e+00> : vector<8xf32>
    %593 = vector.multi_reduction <add>, %592, %cst_170 [0] : vector<8x8xf32> to vector<8xf32>
    %594 = vector.shape_cast %593 : vector<8xf32> to vector<1x8xf32>
    %cst_171 = arith.constant 1.250000e-01 : f32
    %595 = vector.broadcast %cst_171 : f32 to vector<1x8xf32>
    %596 = arith.subf %594, %595 : vector<1x8xf32>
    %597 = math.absf %596 : vector<1x8xf32>
    %598 = vector.shape_cast %597 : vector<1x8xf32> to vector<1x1x8xf32>
    %cst_172 = arith.constant dense<0xFF800000> : vector<1xf32>
    %599 = vector.multi_reduction <maximumf>, %598, %cst_172 [1, 2] : vector<1x1x8xf32> to vector<1xf32>
    %600 = vector.shape_cast %599 : vector<1xf32> to vector<1x1x1xf32>
    %601 = vector.extract %600[0, 0, 0] : f32 from vector<1x1x1xf32>
    %cst_173 = arith.constant 9.99999997E-7 : f32
    %602 = arith.cmpf ole, %601, %cst_173 : f32
    %603 = arith.extui %602 : i1 to i32
    %604 = arith.sitofp %603 : i32 to f32
    %605 = vector.broadcast %604 : f32 to vector<8x8xf32>
    %606 = arith.mulf %605, %592 : vector<8x8xf32>
    %cst_174 = arith.constant 1.000000e+00 : f32
    %607 = arith.subf %cst_174, %604 : f32
    %608 = vector.broadcast %594 : vector<1x8xf32> to vector<8x8xf32>
    %609 = arith.divf %592, %608 : vector<8x8xf32>
    %cst_175 = arith.constant 1.250000e-01 : f32
    %610 = vector.broadcast %cst_175 : f32 to vector<8x8xf32>
    %611 = arith.mulf %609, %610 : vector<8x8xf32>
    %612 = vector.broadcast %607 : f32 to vector<8x8xf32>
    %613 = arith.mulf %612, %611 : vector<8x8xf32>
    %614 = arith.addf %606, %613 : vector<8x8xf32>
    %615 = vector.broadcast %586 : f32 to vector<8x8xf32>
    %616 = arith.mulf %615, %585 : vector<8x8xf32>
    %cst_176 = arith.constant 1.000000e+00 : f32
    %617 = arith.subf %cst_176, %586 : f32
    %618 = vector.broadcast %617 : f32 to vector<8x8xf32>
    %619 = arith.mulf %618, %614 : vector<8x8xf32>
    %620 = arith.addf %616, %619 : vector<8x8xf32>
    %621 = arith.maximumf %586, %604 : f32
    %cst_177 = arith.constant dense<0.000000e+00> : vector<8xf32>
    %622 = vector.multi_reduction <add>, %620, %cst_177 [1] : vector<8x8xf32> to vector<8xf32>
    %623 = vector.shape_cast %622 : vector<8xf32> to vector<8x1xf32>
    %624 = vector.broadcast %623 : vector<8x1xf32> to vector<8x8xf32>
    %625 = arith.divf %620, %624 : vector<8x8xf32>
    %cst_178 = arith.constant 1.250000e-01 : f32
    %626 = vector.broadcast %cst_178 : f32 to vector<8x8xf32>
    %627 = arith.mulf %625, %626 : vector<8x8xf32>
    %cst_179 = arith.constant dense<0.000000e+00> : vector<8xf32>
    %628 = vector.multi_reduction <add>, %627, %cst_179 [0] : vector<8x8xf32> to vector<8xf32>
    %629 = vector.shape_cast %628 : vector<8xf32> to vector<1x8xf32>
    %cst_180 = arith.constant 1.250000e-01 : f32
    %630 = vector.broadcast %cst_180 : f32 to vector<1x8xf32>
    %631 = arith.subf %629, %630 : vector<1x8xf32>
    %632 = math.absf %631 : vector<1x8xf32>
    %633 = vector.shape_cast %632 : vector<1x8xf32> to vector<1x1x8xf32>
    %cst_181 = arith.constant dense<0xFF800000> : vector<1xf32>
    %634 = vector.multi_reduction <maximumf>, %633, %cst_181 [1, 2] : vector<1x1x8xf32> to vector<1xf32>
    %635 = vector.shape_cast %634 : vector<1xf32> to vector<1x1x1xf32>
    %636 = vector.extract %635[0, 0, 0] : f32 from vector<1x1x1xf32>
    %cst_182 = arith.constant 9.99999997E-7 : f32
    %637 = arith.cmpf ole, %636, %cst_182 : f32
    %638 = arith.extui %637 : i1 to i32
    %639 = arith.sitofp %638 : i32 to f32
    %640 = vector.broadcast %639 : f32 to vector<8x8xf32>
    %641 = arith.mulf %640, %627 : vector<8x8xf32>
    %cst_183 = arith.constant 1.000000e+00 : f32
    %642 = arith.subf %cst_183, %639 : f32
    %643 = vector.broadcast %629 : vector<1x8xf32> to vector<8x8xf32>
    %644 = arith.divf %627, %643 : vector<8x8xf32>
    %cst_184 = arith.constant 1.250000e-01 : f32
    %645 = vector.broadcast %cst_184 : f32 to vector<8x8xf32>
    %646 = arith.mulf %644, %645 : vector<8x8xf32>
    %647 = vector.broadcast %642 : f32 to vector<8x8xf32>
    %648 = arith.mulf %647, %646 : vector<8x8xf32>
    %649 = arith.addf %641, %648 : vector<8x8xf32>
    %650 = vector.broadcast %621 : f32 to vector<8x8xf32>
    %651 = arith.mulf %650, %620 : vector<8x8xf32>
    %cst_185 = arith.constant 1.000000e+00 : f32
    %652 = arith.subf %cst_185, %621 : f32
    %653 = vector.broadcast %652 : f32 to vector<8x8xf32>
    %654 = arith.mulf %653, %649 : vector<8x8xf32>
    %655 = arith.addf %651, %654 : vector<8x8xf32>
    %656 = arith.maximumf %621, %639 : f32
    %cst_186 = arith.constant dense<0.000000e+00> : vector<8xf32>
    %657 = vector.multi_reduction <add>, %655, %cst_186 [1] : vector<8x8xf32> to vector<8xf32>
    %658 = vector.shape_cast %657 : vector<8xf32> to vector<8x1xf32>
    %659 = vector.broadcast %658 : vector<8x1xf32> to vector<8x8xf32>
    %660 = arith.divf %655, %659 : vector<8x8xf32>
    %cst_187 = arith.constant 1.250000e-01 : f32
    %661 = vector.broadcast %cst_187 : f32 to vector<8x8xf32>
    %662 = arith.mulf %660, %661 : vector<8x8xf32>
    %cst_188 = arith.constant dense<0.000000e+00> : vector<8xf32>
    %663 = vector.multi_reduction <add>, %662, %cst_188 [0] : vector<8x8xf32> to vector<8xf32>
    %664 = vector.shape_cast %663 : vector<8xf32> to vector<1x8xf32>
    %cst_189 = arith.constant 1.250000e-01 : f32
    %665 = vector.broadcast %cst_189 : f32 to vector<1x8xf32>
    %666 = arith.subf %664, %665 : vector<1x8xf32>
    %667 = math.absf %666 : vector<1x8xf32>
    %668 = vector.shape_cast %667 : vector<1x8xf32> to vector<1x1x8xf32>
    %cst_190 = arith.constant dense<0xFF800000> : vector<1xf32>
    %669 = vector.multi_reduction <maximumf>, %668, %cst_190 [1, 2] : vector<1x1x8xf32> to vector<1xf32>
    %670 = vector.shape_cast %669 : vector<1xf32> to vector<1x1x1xf32>
    %671 = vector.extract %670[0, 0, 0] : f32 from vector<1x1x1xf32>
    %cst_191 = arith.constant 9.99999997E-7 : f32
    %672 = arith.cmpf ole, %671, %cst_191 : f32
    %673 = arith.extui %672 : i1 to i32
    %674 = arith.sitofp %673 : i32 to f32
    %675 = vector.broadcast %674 : f32 to vector<8x8xf32>
    %676 = arith.mulf %675, %662 : vector<8x8xf32>
    %cst_192 = arith.constant 1.000000e+00 : f32
    %677 = arith.subf %cst_192, %674 : f32
    %678 = vector.broadcast %664 : vector<1x8xf32> to vector<8x8xf32>
    %679 = arith.divf %662, %678 : vector<8x8xf32>
    %cst_193 = arith.constant 1.250000e-01 : f32
    %680 = vector.broadcast %cst_193 : f32 to vector<8x8xf32>
    %681 = arith.mulf %679, %680 : vector<8x8xf32>
    %682 = vector.broadcast %677 : f32 to vector<8x8xf32>
    %683 = arith.mulf %682, %681 : vector<8x8xf32>
    %684 = arith.addf %676, %683 : vector<8x8xf32>
    %685 = vector.broadcast %656 : f32 to vector<8x8xf32>
    %686 = arith.mulf %685, %655 : vector<8x8xf32>
    %cst_194 = arith.constant 1.000000e+00 : f32
    %687 = arith.subf %cst_194, %656 : f32
    %688 = vector.broadcast %687 : f32 to vector<8x8xf32>
    %689 = arith.mulf %688, %684 : vector<8x8xf32>
    %690 = arith.addf %686, %689 : vector<8x8xf32>
    %691 = arith.maximumf %656, %674 : f32
    %cst_195 = arith.constant dense<0.000000e+00> : vector<8xf32>
    %692 = vector.multi_reduction <add>, %690, %cst_195 [1] : vector<8x8xf32> to vector<8xf32>
    %693 = vector.shape_cast %692 : vector<8xf32> to vector<8x1xf32>
    %694 = vector.broadcast %693 : vector<8x1xf32> to vector<8x8xf32>
    %695 = arith.divf %690, %694 : vector<8x8xf32>
    %cst_196 = arith.constant 1.250000e-01 : f32
    %696 = vector.broadcast %cst_196 : f32 to vector<8x8xf32>
    %697 = arith.mulf %695, %696 : vector<8x8xf32>
    %cst_197 = arith.constant dense<0.000000e+00> : vector<8xf32>
    %698 = vector.multi_reduction <add>, %697, %cst_197 [0] : vector<8x8xf32> to vector<8xf32>
    %699 = vector.shape_cast %698 : vector<8xf32> to vector<1x8xf32>
    %cst_198 = arith.constant 1.250000e-01 : f32
    %700 = vector.broadcast %cst_198 : f32 to vector<1x8xf32>
    %701 = arith.subf %699, %700 : vector<1x8xf32>
    %702 = math.absf %701 : vector<1x8xf32>
    %703 = vector.shape_cast %702 : vector<1x8xf32> to vector<1x1x8xf32>
    %cst_199 = arith.constant dense<0xFF800000> : vector<1xf32>
    %704 = vector.multi_reduction <maximumf>, %703, %cst_199 [1, 2] : vector<1x1x8xf32> to vector<1xf32>
    %705 = vector.shape_cast %704 : vector<1xf32> to vector<1x1x1xf32>
    %706 = vector.extract %705[0, 0, 0] : f32 from vector<1x1x1xf32>
    %cst_200 = arith.constant 9.99999997E-7 : f32
    %707 = arith.cmpf ole, %706, %cst_200 : f32
    %708 = arith.extui %707 : i1 to i32
    %709 = arith.sitofp %708 : i32 to f32
    %710 = vector.broadcast %709 : f32 to vector<8x8xf32>
    %711 = arith.mulf %710, %697 : vector<8x8xf32>
    %cst_201 = arith.constant 1.000000e+00 : f32
    %712 = arith.subf %cst_201, %709 : f32
    %713 = vector.broadcast %699 : vector<1x8xf32> to vector<8x8xf32>
    %714 = arith.divf %697, %713 : vector<8x8xf32>
    %cst_202 = arith.constant 1.250000e-01 : f32
    %715 = vector.broadcast %cst_202 : f32 to vector<8x8xf32>
    %716 = arith.mulf %714, %715 : vector<8x8xf32>
    %717 = vector.broadcast %712 : f32 to vector<8x8xf32>
    %718 = arith.mulf %717, %716 : vector<8x8xf32>
    %719 = arith.addf %711, %718 : vector<8x8xf32>
    %720 = vector.broadcast %691 : f32 to vector<8x8xf32>
    %721 = arith.mulf %720, %690 : vector<8x8xf32>
    %cst_203 = arith.constant 1.000000e+00 : f32
    %722 = arith.subf %cst_203, %691 : f32
    %723 = vector.broadcast %722 : f32 to vector<8x8xf32>
    %724 = arith.mulf %723, %719 : vector<8x8xf32>
    %725 = arith.addf %721, %724 : vector<8x8xf32>
    %726 = arith.maximumf %691, %709 : f32
    %cst_204 = arith.constant dense<0.000000e+00> : vector<8xf32>
    %727 = vector.multi_reduction <add>, %725, %cst_204 [1] : vector<8x8xf32> to vector<8xf32>
    %728 = vector.shape_cast %727 : vector<8xf32> to vector<8x1xf32>
    %729 = vector.broadcast %728 : vector<8x1xf32> to vector<8x8xf32>
    %730 = arith.divf %725, %729 : vector<8x8xf32>
    %cst_205 = arith.constant 1.250000e-01 : f32
    %731 = vector.broadcast %cst_205 : f32 to vector<8x8xf32>
    %732 = arith.mulf %730, %731 : vector<8x8xf32>
    %cst_206 = arith.constant dense<0.000000e+00> : vector<8xf32>
    %733 = vector.multi_reduction <add>, %732, %cst_206 [0] : vector<8x8xf32> to vector<8xf32>
    %734 = vector.shape_cast %733 : vector<8xf32> to vector<1x8xf32>
    %cst_207 = arith.constant 1.250000e-01 : f32
    %735 = vector.broadcast %cst_207 : f32 to vector<1x8xf32>
    %736 = arith.subf %734, %735 : vector<1x8xf32>
    %737 = math.absf %736 : vector<1x8xf32>
    %738 = vector.shape_cast %737 : vector<1x8xf32> to vector<1x1x8xf32>
    %cst_208 = arith.constant dense<0xFF800000> : vector<1xf32>
    %739 = vector.multi_reduction <maximumf>, %738, %cst_208 [1, 2] : vector<1x1x8xf32> to vector<1xf32>
    %740 = vector.shape_cast %739 : vector<1xf32> to vector<1x1x1xf32>
    %741 = vector.extract %740[0, 0, 0] : f32 from vector<1x1x1xf32>
    %cst_209 = arith.constant 9.99999997E-7 : f32
    %742 = arith.cmpf ole, %741, %cst_209 : f32
    %743 = arith.extui %742 : i1 to i32
    %744 = arith.sitofp %743 : i32 to f32
    %745 = vector.broadcast %744 : f32 to vector<8x8xf32>
    %746 = arith.mulf %745, %732 : vector<8x8xf32>
    %cst_210 = arith.constant 1.000000e+00 : f32
    %747 = arith.subf %cst_210, %744 : f32
    %748 = vector.broadcast %734 : vector<1x8xf32> to vector<8x8xf32>
    %749 = arith.divf %732, %748 : vector<8x8xf32>
    %cst_211 = arith.constant 1.250000e-01 : f32
    %750 = vector.broadcast %cst_211 : f32 to vector<8x8xf32>
    %751 = arith.mulf %749, %750 : vector<8x8xf32>
    %752 = vector.broadcast %747 : f32 to vector<8x8xf32>
    %753 = arith.mulf %752, %751 : vector<8x8xf32>
    %754 = arith.addf %746, %753 : vector<8x8xf32>
    %755 = vector.broadcast %726 : f32 to vector<8x8xf32>
    %756 = arith.mulf %755, %725 : vector<8x8xf32>
    %cst_212 = arith.constant 1.000000e+00 : f32
    %757 = arith.subf %cst_212, %726 : f32
    %758 = vector.broadcast %757 : f32 to vector<8x8xf32>
    %759 = arith.mulf %758, %754 : vector<8x8xf32>
    %760 = arith.addf %756, %759 : vector<8x8xf32>
    %761 = arith.maximumf %726, %744 : f32
    %cst_213 = arith.constant dense<0.000000e+00> : vector<8xf32>
    %762 = vector.multi_reduction <add>, %760, %cst_213 [1] : vector<8x8xf32> to vector<8xf32>
    %763 = vector.shape_cast %762 : vector<8xf32> to vector<8x1xf32>
    %764 = vector.broadcast %763 : vector<8x1xf32> to vector<8x8xf32>
    %765 = arith.divf %760, %764 : vector<8x8xf32>
    %cst_214 = arith.constant 1.250000e-01 : f32
    %766 = vector.broadcast %cst_214 : f32 to vector<8x8xf32>
    %767 = arith.mulf %765, %766 : vector<8x8xf32>
    %cst_215 = arith.constant dense<0.000000e+00> : vector<8xf32>
    %768 = vector.multi_reduction <add>, %767, %cst_215 [0] : vector<8x8xf32> to vector<8xf32>
    %769 = vector.shape_cast %768 : vector<8xf32> to vector<1x8xf32>
    %cst_216 = arith.constant 1.250000e-01 : f32
    %770 = vector.broadcast %cst_216 : f32 to vector<1x8xf32>
    %771 = arith.subf %769, %770 : vector<1x8xf32>
    %772 = math.absf %771 : vector<1x8xf32>
    %773 = vector.shape_cast %772 : vector<1x8xf32> to vector<1x1x8xf32>
    %cst_217 = arith.constant dense<0xFF800000> : vector<1xf32>
    %774 = vector.multi_reduction <maximumf>, %773, %cst_217 [1, 2] : vector<1x1x8xf32> to vector<1xf32>
    %775 = vector.shape_cast %774 : vector<1xf32> to vector<1x1x1xf32>
    %776 = vector.extract %775[0, 0, 0] : f32 from vector<1x1x1xf32>
    %cst_218 = arith.constant 9.99999997E-7 : f32
    %777 = arith.cmpf ole, %776, %cst_218 : f32
    %778 = arith.extui %777 : i1 to i32
    %779 = arith.sitofp %778 : i32 to f32
    %780 = vector.broadcast %779 : f32 to vector<8x8xf32>
    %781 = arith.mulf %780, %767 : vector<8x8xf32>
    %cst_219 = arith.constant 1.000000e+00 : f32
    %782 = arith.subf %cst_219, %779 : f32
    %783 = vector.broadcast %769 : vector<1x8xf32> to vector<8x8xf32>
    %784 = arith.divf %767, %783 : vector<8x8xf32>
    %cst_220 = arith.constant 1.250000e-01 : f32
    %785 = vector.broadcast %cst_220 : f32 to vector<8x8xf32>
    %786 = arith.mulf %784, %785 : vector<8x8xf32>
    %787 = vector.broadcast %782 : f32 to vector<8x8xf32>
    %788 = arith.mulf %787, %786 : vector<8x8xf32>
    %789 = arith.addf %781, %788 : vector<8x8xf32>
    %790 = vector.broadcast %761 : f32 to vector<8x8xf32>
    %791 = arith.mulf %790, %760 : vector<8x8xf32>
    %cst_221 = arith.constant 1.000000e+00 : f32
    %792 = arith.subf %cst_221, %761 : f32
    %793 = vector.broadcast %792 : f32 to vector<8x8xf32>
    %794 = arith.mulf %793, %789 : vector<8x8xf32>
    %795 = arith.addf %791, %794 : vector<8x8xf32>
    %796 = arith.maximumf %761, %779 : f32
    %cst_222 = arith.constant dense<0.000000e+00> : vector<8xf32>
    %797 = vector.multi_reduction <add>, %795, %cst_222 [1] : vector<8x8xf32> to vector<8xf32>
    %798 = vector.shape_cast %797 : vector<8xf32> to vector<8x1xf32>
    %799 = vector.broadcast %798 : vector<8x1xf32> to vector<8x8xf32>
    %800 = arith.divf %795, %799 : vector<8x8xf32>
    %cst_223 = arith.constant 1.250000e-01 : f32
    %801 = vector.broadcast %cst_223 : f32 to vector<8x8xf32>
    %802 = arith.mulf %800, %801 : vector<8x8xf32>
    %cst_224 = arith.constant dense<0.000000e+00> : vector<8xf32>
    %803 = vector.multi_reduction <add>, %802, %cst_224 [0] : vector<8x8xf32> to vector<8xf32>
    %804 = vector.shape_cast %803 : vector<8xf32> to vector<1x8xf32>
    %cst_225 = arith.constant 1.250000e-01 : f32
    %805 = vector.broadcast %cst_225 : f32 to vector<1x8xf32>
    %806 = arith.subf %804, %805 : vector<1x8xf32>
    %807 = math.absf %806 : vector<1x8xf32>
    %808 = vector.shape_cast %807 : vector<1x8xf32> to vector<1x1x8xf32>
    %cst_226 = arith.constant dense<0xFF800000> : vector<1xf32>
    %809 = vector.multi_reduction <maximumf>, %808, %cst_226 [1, 2] : vector<1x1x8xf32> to vector<1xf32>
    %810 = vector.shape_cast %809 : vector<1xf32> to vector<1x1x1xf32>
    %811 = vector.extract %810[0, 0, 0] : f32 from vector<1x1x1xf32>
    %cst_227 = arith.constant 9.99999997E-7 : f32
    %812 = arith.cmpf ole, %811, %cst_227 : f32
    %813 = arith.extui %812 : i1 to i32
    %814 = arith.sitofp %813 : i32 to f32
    %815 = vector.broadcast %814 : f32 to vector<8x8xf32>
    %816 = arith.mulf %815, %802 : vector<8x8xf32>
    %cst_228 = arith.constant 1.000000e+00 : f32
    %817 = arith.subf %cst_228, %814 : f32
    %818 = vector.broadcast %804 : vector<1x8xf32> to vector<8x8xf32>
    %819 = arith.divf %802, %818 : vector<8x8xf32>
    %cst_229 = arith.constant 1.250000e-01 : f32
    %820 = vector.broadcast %cst_229 : f32 to vector<8x8xf32>
    %821 = arith.mulf %819, %820 : vector<8x8xf32>
    %822 = vector.broadcast %817 : f32 to vector<8x8xf32>
    %823 = arith.mulf %822, %821 : vector<8x8xf32>
    %824 = arith.addf %816, %823 : vector<8x8xf32>
    %825 = vector.broadcast %796 : f32 to vector<8x8xf32>
    %826 = arith.mulf %825, %795 : vector<8x8xf32>
    %cst_230 = arith.constant 1.000000e+00 : f32
    %827 = arith.subf %cst_230, %796 : f32
    %828 = vector.broadcast %827 : f32 to vector<8x8xf32>
    %829 = arith.mulf %828, %824 : vector<8x8xf32>
    %830 = arith.addf %826, %829 : vector<8x8xf32>
    %cst_231 = arith.constant dense<0.000000e+00> : vector<8xf32>
    %831 = vector.multi_reduction <add>, %830, %cst_231 [1] : vector<8x8xf32> to vector<8xf32>
    %832 = vector.shape_cast %831 : vector<8xf32> to vector<8x1xf32>
    %833 = vector.broadcast %832 : vector<8x1xf32> to vector<8x8xf32>
    %834 = arith.divf %830, %833 : vector<8x8xf32>
    %cst_232 = arith.constant dense<0.000000e+00> : vector<8xf32>
    %835 = vector.multi_reduction <add>, %834, %cst_232 [0] : vector<8x8xf32> to vector<8xf32>
    %836 = vector.shape_cast %835 : vector<8xf32> to vector<1x8xf32>
    %837 = vector.broadcast %836 : vector<1x8xf32> to vector<8x8xf32>
    %838 = arith.divf %834, %837 : vector<8x8xf32>
    %839 = tpu.iota {dimensions = array<i32: 0>} : vector<8x8xi32>
    %840 = tpu.iota {dimensions = array<i32: 1>} : vector<8x8xi32>
    %841 = arith.cmpi eq, %839, %840 : vector<8x8xi32>
    %842 = arith.extui %841 : vector<8x8xi1> to vector<8x8xi32>
    %843 = arith.sitofp %842 : vector<8x8xi32> to vector<8x8xf32>
    %844 = arith.subf %838, %843 : vector<8x8xf32>
    %845 = arith.mulf %844, %844 : vector<8x8xf32>
    %846 = vector.shape_cast %845 : vector<8x8xf32> to vector<1x8x8xf32>
    %cst_233 = arith.constant dense<0.000000e+00> : vector<1xf32>
    %847 = vector.multi_reduction <add>, %846, %cst_233 [1, 2] : vector<1x8x8xf32> to vector<1xf32>
    %848 = vector.shape_cast %847 : vector<1xf32> to vector<1x1x1xf32>
    %849 = vector.extract %848[0, 0, 0] : f32 from vector<1x1x1xf32>
    %850 = math.sqrt %849 : f32
    %c0_234 = arith.constant 0 : index
    %c0_235 = arith.constant 0 : index
    %851 = vector.load %arg13[%c0_234, %c0_235] : memref<8x8xf32, #tpu.memory_space<vmem>>, vector<8x8xf32>
    tpu.vector_store %arg13[%c0_234, %c0_235], %838 {strides = array<i32>} : memref<8x8xf32, #tpu.memory_space<vmem>>, vector<8x8xf32>,
    %c0_236 = arith.constant 0 : index
    %c0_237 = arith.constant 0 : index
    %852 = memref.load %arg11[%c0_236, %c0_237] : memref<1x1xf32, #tpu.memory_space<smem>>
    memref.store %86, %arg11[%c0_236, %c0_237] : memref<1x1xf32, #tpu.memory_space<smem>>
    %c0_238 = arith.constant 0 : index
    %c0_239 = arith.constant 0 : index
    %853 = memref.load %arg12[%c0_238, %c0_239] : memref<1x1xf32, #tpu.memory_space<smem>>
    memref.store %850, %arg12[%c0_238, %c0_239] : memref<1x1xf32, #tpu.memory_space<smem>>
    %cst_240 = arith.constant 1.000000e+00 : f32
    %854 = arith.mulf %cst_240, %86 : f32
    %cst_241 = arith.constant 1.000000e+00 : f32
    %855 = arith.mulf %cst_241, %850 : f32
    %856 = arith.addf %854, %855 : f32
    %c0_242 = arith.constant 0 : index
    %c0_243 = arith.constant 0 : index
    %857 = memref.load %arg10[%c0_242, %c0_243] : memref<1x1xf32, #tpu.memory_space<smem>>
    memref.store %856, %arg10[%c0_242, %c0_243] : memref<1x1xf32, #tpu.memory_space<smem>>
    return
  }
}

</mosaic_0001>

<llo_original>
// kernel: emdot_forward.1
$region0: #{emdot_forward.1}
  #allocation0 [shape = 'u32[]', space=smem, size = 0x4, offset = 0x4, fixed_abs, tag = 'smem constant byte address 0x4 - core index']
  #allocation1 [shape = 'u32[144,128]{1,0:T(1,128)}', space=vmem, size = 0x12000, scoped, tag = 'internal scratch']
  %s0 = inlined_call_operand.vmem [shape: f32[8,64], index: 0, kind: input, shape index: {}]
  %s1 = inlined_call_operand.vmem [shape: f32[8,128], index: 1, kind: input, shape index: {}]
  %s2 = inlined_call_operand.vmem [shape: f32[64,128], index: 2, kind: input, shape index: {}]
  %s3 = inlined_call_operand.vmem [shape: f32[1,128], index: 3, kind: input, shape index: {}]
  %s4 = inlined_call_operand.vmem [shape: f32[128,128], index: 4, kind: input, shape index: {}]
  %s5 = inlined_call_operand.vmem [shape: f32[1,128], index: 5, kind: input, shape index: {}]
  %s6 = inlined_call_operand.vmem [shape: f32[64,128], index: 6, kind: input, shape index: {}]
  %s7 = inlined_call_operand.vmem [shape: f32[64,128], index: 7, kind: input, shape index: {}]
  %s8 = inlined_call_operand.vmem [shape: s32[8,1], index: 8, kind: input, shape index: {}]
  %s9 = inlined_call_operand.vmem [shape: s32[8,16], index: 9, kind: input, shape index: {}]
  %s10 = inlined_call_operand.hbm [shape: f32[1,1], index: 10, kind: output, shape index: {0}]
  %s11 = inlined_call_operand.hbm [shape: f32[1,1], index: 11, kind: output, shape index: {1}]
  %s12 = inlined_call_operand.hbm [shape: f32[1,1], index: 12, kind: output, shape index: {2}]
  %s13 = inlined_call_operand.hbm [shape: f32[8,8], index: 13, kind: output, shape index: {3}]
  %s14 = inlined_call_operand.hbm [shape: f32[8,8], index: 14, kind: output, shape index: {4}]
  %15 = xla_tuple %s10, %s11, %s12, %s13, %s14
  %s16 = sld [smem:[#allocation0]]
  $region82: #{emdot_forward.1} parent=0
    _
  %s18 = ssub.s32 1, %s16
  %s19 = scalar_select 0, %s18, %s16
  $region1: #{emdot_forward.1} parent=0
    #allocation2 [shape = 'u8[512]{0}', space=smem, size = 0x200, scoped, tag = 'output window, operand 0, single buffered']
    #allocation3 [shape = 's32[1]{0}', space=sflag, size = 0x4, scoped, tag = 'scoped memory for emdot_forward.1']
    #allocation4 [shape = 's32[1]{0}', space=sflag, size = 0x4, scoped, tag = 'scoped memory for emdot_forward.1']
    #allocation5 [shape = 'u8[512]{0}', space=smem, size = 0x200, scoped, tag = 'output window, operand 1, single buffered']
    #allocation6 [shape = 's32[1]{0}', space=sflag, size = 0x4, scoped, tag = 'scoped memory for emdot_forward.1']
    #allocation7 [shape = 'u8[512]{0}', space=smem, size = 0x200, scoped, tag = 'output window, operand 2, single buffered']
    #allocation8 [shape = 'u8[4096]{0}', space=vmem, size = 0x1000, scoped, tag = 'output window, operand 3, single buffered']
    #allocation9 [shape = 'u8[4096]{0}', space=vmem, size = 0x1000, scoped, tag = 'output window, operand 4, single buffered']
    #allocation10 [shape = 's32[1]{0}', space=sflag, size = 0x4, scoped, tag = 'scoped memory for emdot_forward.1']
    %20 = vsyncpa [#allocation4], 0
    %21 = vsyncpa [#allocation6], 0
    %22 = vsyncpa [#allocation3], 0
    %23 = vsyncpa [#allocation10], 0
    // Predicated region
    $region2: #{emdot_forward.1} parent=1 // pred_check
      _
    $region3: #{emdot_forward.1} parent=1 // pred_check_branch
      %25 = sbr.rel (0) target = $region5
    $region4: #{emdot_forward.1} parent=1 // pred_region
      _
    $region5: #{emdot_forward.1} parent=1 // pred_fallthru
      _
    // Predicated region
    $region6: #{emdot_forward.1} parent=1 // pred_check
      _
    $region7: #{emdot_forward.1} parent=1 // pred_check_branch
      %27 = sbr.rel (0) target = $region9
    $region8: #{emdot_forward.1} parent=1 // pred_region
      _
    $region9: #{emdot_forward.1} parent=1 // pred_fallthru
      _
    // Predicated region
    $region10: #{emdot_forward.1} parent=1 // pred_check
      _
    $region11: #{emdot_forward.1} parent=1 // pred_check_branch
      %29 = sbr.rel (0) target = $region13
    $region12: #{emdot_forward.1} parent=1 // pred_region
      _
    $region13: #{emdot_forward.1} parent=1 // pred_fallthru
      _
    // Predicated region
    $region14: #{emdot_forward.1} parent=1 // pred_check
      _
    $region15: #{emdot_forward.1} parent=1 // pred_check_branch
      %31 = sbr.rel (0) target = $region17
    $region16: #{emdot_forward.1} parent=1 // pred_region
      _
    $region17: #{emdot_forward.1} parent=1 // pred_fallthru
      _
    // Predicated region
    $region18: #{emdot_forward.1} parent=1 // pred_check
      _
    $region19: #{emdot_forward.1} parent=1 // pred_check_branch
      %33 = sbr.rel (0) target = $region21
    $region20: #{emdot_forward.1} parent=1 // pred_region
      _
    $region21: #{emdot_forward.1} parent=1 // pred_fallthru
      _
    // Predicated region
    $region22: #{emdot_forward.1} parent=1 // pred_check
      _
    $region23: #{emdot_forward.1} parent=1 // pred_check_branch
      %35 = sbr.rel (0) target = $region25
    $region24: #{emdot_forward.1} parent=1 // pred_region
      _
    $region25: #{emdot_forward.1} parent=1 // pred_fallthru
      _
    // Predicated region
    $region26: #{emdot_forward.1} parent=1 // pred_check
      _
    $region27: #{emdot_forward.1} parent=1 // pred_check_branch
      %37 = sbr.rel (0) target = $region29
    $region28: #{emdot_forward.1} parent=1 // pred_region
      _
    $region29: #{emdot_forward.1} parent=1 // pred_fallthru
      _
    // Predicated region
    $region30: #{emdot_forward.1} parent=1 // pred_check
      _
    $region31: #{emdot_forward.1} parent=1 // pred_check_branch
      %39 = sbr.rel (0) target = $region33
    $region32: #{emdot_forward.1} parent=1 // pred_region
      _
    $region33: #{emdot_forward.1} parent=1 // pred_fallthru
      _
    // Predicated region
    $region34: #{emdot_forward.1} parent=1 // pred_check
      _
    $region35: #{emdot_forward.1} parent=1 // pred_check_branch
      %41 = sbr.rel (0) target = $region37
    $region36: #{emdot_forward.1} parent=1 // pred_region
      _
    $region37: #{emdot_forward.1} parent=1 // pred_fallthru
      _
    // Predicated region
    $region38: #{emdot_forward.1} parent=1 // pred_check
      _
    $region39: #{emdot_forward.1} parent=1 // pred_check_branch
      %43 = sbr.rel (0) target = $region41
    $region40: #{emdot_forward.1} parent=1 // pred_region
      _
    $region41: #{emdot_forward.1} parent=1 // pred_fallthru
      _
    %v44 = vld [vmem:[%s0] sm:$0xff]
    %v45 = vld [vmem:[%s2] sm:$0xff]
    %v46 = vld [vmem:[%s2 + $0x8] sm:$0xff]
    %v47 = vld [vmem:[%s2 + $0x10] sm:$0xff]
    %v48 = vld [vmem:[%s2 + $0x18] sm:$0xff]
    %v49 = vld [vmem:[%s2 + $0x20] sm:$0xff]
    %v50 = vld [vmem:[%s2 + $0x28] sm:$0xff]
    %v51 = vld [vmem:[%s2 + $0x30] sm:$0xff]
    %v52 = vld [vmem:[%s2 + $0x38] sm:$0xff]
    %v53 = vld [vmem:[%s3] sm:$0x1]
    %v55 = vlaneseq
    %v56 = vshrl.u32 %v55, 7
    %v57 = vsub.s32 0, %v56
    %v58 = vrot.slane %v53, %v57
    %vm60 = vcmask 523264
    %v62 = vsel %vm60, %v44, 0
    %64 = vmatprep.subr.mxu0 0.0
    %65 = vmatpush1.msra.mxu0 %v45
    %66 = vmatprep.subr.mxu0 0.0
    %67 = vmatpush1.msra.mxu0 %v46
    %68 = vmatprep.subr.mxu0 0.0
    %69 = vmatpush1.msra.mxu0 %v47
    %70 = vmatprep.subr.mxu0 0.0
    %71 = vmatpush1.msra.mxu0 %v48
    %72 = vmatprep.subr.mxu0 0.0
    %73 = vmatpush1.msra.mxu0 %v49
    %74 = vmatprep.subr.mxu0 0.0
    %75 = vmatpush1.msra.mxu0 %v50
    %76 = vmatprep.subr.mxu0 0.0
    %77 = vmatpush1.msra.mxu0 %v51
    %78 = vmatprep.subr.mxu0 0.0
    %79 = vmatpush1.msra.mxu0 %v52
    %80 = vmatprep.subr.mxu0 0.0
    %81 = vmatpush1.msra.mxu0 0.0
    %82 = vmatprep.subr.mxu0 0.0
    %83 = vmatpush1.msra.mxu0 0.0
    %84 = vmatprep.subr.mxu0 0.0
    %85 = vmatpush1.msra.mxu0 0.0
    %86 = vmatprep.subr.mxu0 0.0
    %87 = vmatpush1.msra.mxu0 0.0
    %88 = vmatprep.subr.mxu0 0.0
    %89 = vmatpush1.msra.mxu0 0.0
    %90 = vmatprep.subr.mxu0 0.0
    %91 = vmatpush1.msra.mxu0 0.0
    %92 = vmatprep.subr.mxu0 0.0
    %93 = vmatpush1.msra.mxu0 0.0
    %94 = vmatprep.subr.mxu0 0.0
    %95 = vmatpush1.msra.mxu0 0.0
    %96 = vmatprep.subr.mxu0 0.0
    %97 = vmatpush1.msra.mxu0 0.0
    %98 = vmatprep.subr.mxu0 0.0
    %99 = vmatpush1.msra.mxu0 0.0
    %100 = vmatprep.subr.mxu0 0.0
    %101 = vmatpush1.msra.mxu0 0.0
    %102 = vmatprep.subr.mxu0 0.0
    %103 = vmatpush1.msra.mxu0 0.0
    %104 = vmatprep.subr.mxu0 0.0
    %105 = vmatpush1.msra.mxu0 0.0
    %106 = vmatprep.subr.mxu0 0.0
    %107 = vmatpush1.msra.mxu0 0.0
    %108 = vmatprep.subr.mxu0 0.0
    %109 = vmatpush1.msra.mxu0 0.0
    %110 = vmatprep.subr.mxu0 0.0
    %111 = vmatpush1.msra.mxu0 0.0
    %112 = vmatprep.subr.mxu0 0.0
    %113 = vmatpush1.msra.mxu0 0.0
    %114 = vmatprep.subr.mxu0 0.0
    %115 = vmatpush1.msra.mxu0 0.0
    %116 = vmatprep.subr.mxu0 0.0
    %117 = vmatpush1.msra.mxu0 0.0
    %118 = vmatprep.subr.mxu0 0.0
    %119 = vmatpush1.msra.mxu0 0.0
    %120 = vmatprep.subr.mxu0 0.0
    %121 = vmatpush1.msra.mxu0 0.0
    %122 = vmatprep.subr.mxu0 0.0
    %123 = vmatpush1.msra.mxu0 0.0
    %124 = vmatprep.subr.mxu0 0.0
    %125 = vmatpush1.msra.mxu0 0.0
    %126 = vmatprep.subr.mxu0 0.0
    %127 = vmatpush1.msra.mxu0 0.0
    %128 = vmatprep.mubr.f32.mxu0 0.0
    %129 = vmatmul.mubr.f32.gmra.mrb[0].mxu0 %v62
    %v130 = vpop.f32.mrb[0].mxu0
    %v131 = vadd.f32 %v58, %v130
    %v132 = vpop.f32.mrb[0].mxu0
    %133 = vdwg.mxu0
    %v134 = vmul.f32 %v131, %v131
    %135 = vadd.xlane.f32.xlu0 %v134
    %v136 = vpop.xlane.xlu0 %135
    %v137 = vrsqrt.pop %v136
    %v138 = vmul.f32 %v131, %v137
    %v139 = vld [vmem:[%s1] sm:$0xff]
    %v140 = vld [vmem:[%s4] sm:$0xff]
    %v141 = vld [vmem:[%s4 + $0x8] sm:$0xff]
    %v142 = vld [vmem:[%s4 + $0x10] sm:$0xff]
    %v143 = vld [vmem:[%s4 + $0x18] sm:$0xff]
    %v144 = vld [vmem:[%s4 + $0x20] sm:$0xff]
    %v145 = vld [vmem:[%s4 + $0x28] sm:$0xff]
    %v146 = vld [vmem:[%s4 + $0x30] sm:$0xff]
    %v147 = vld [vmem:[%s4 + $0x38] sm:$0xff]
    %v148 = vld [vmem:[%s4 + $0x40] sm:$0xff]
    %v149 = vld [vmem:[%s4 + $0x48] sm:$0xff]
    %v150 = vld [vmem:[%s4 + $0x50] sm:$0xff]
    %v151 = vld [vmem:[%s4 + $0x58] sm:$0xff]
    %v152 = vld [vmem:[%s4 + $0x60] sm:$0xff]
    %v153 = vld [vmem:[%s4 + $0x68] sm:$0xff]
    %v154 = vld [vmem:[%s4 + $0x70] sm:$0xff]
    %v155 = vld [vmem:[%s4 + $0x78] sm:$0xff]
    %v156 = vld [vmem:[%s5] sm:$0x1]
    %v158 = vlaneseq
    %v159 = vshrl.u32 %v158, 7
    %v160 = vsub.s32 0, %v159
    %v161 = vrot.slane %v156, %v160
    %163 = vmatprep.subr.mxu0 0.0
    %164 = vmatpush1.msra.mxu0 %v140
    %165 = vmatprep.subr.mxu0 0.0
    %166 = vmatpush1.msra.mxu0 %v141
    %167 = vmatprep.subr.mxu0 0.0
    %168 = vmatpush1.msra.mxu0 %v142
    %169 = vmatprep.subr.mxu0 0.0
    %170 = vmatpush1.msra.mxu0 %v143
    %171 = vmatprep.subr.mxu0 0.0
    %172 = vmatpush1.msra.mxu0 %v144
    %173 = vmatprep.subr.mxu0 0.0
    %174 = vmatpush1.msra.mxu0 %v145
    %175 = vmatprep.subr.mxu0 0.0
    %176 = vmatpush1.msra.mxu0 %v146
    %177 = vmatprep.subr.mxu0 0.0
    %178 = vmatpush1.msra.mxu0 %v147
    %179 = vmatprep.subr.mxu0 0.0
    %180 = vmatpush1.msra.mxu0 %v148
    %181 = vmatprep.subr.mxu0 0.0
    %182 = vmatpush1.msra.mxu0 %v149
    %183 = vmatprep.subr.mxu0 0.0
    %184 = vmatpush1.msra.mxu0 %v150
    %185 = vmatprep.subr.mxu0 0.0
    %186 = vmatpush1.msra.mxu0 %v151
    %187 = vmatprep.subr.mxu0 0.0
    %188 = vmatpush1.msra.mxu0 %v152
    %189 = vmatprep.subr.mxu0 0.0
    %190 = vmatpush1.msra.mxu0 %v153
    %191 = vmatprep.subr.mxu0 0.0
    %192 = vmatpush1.msra.mxu0 %v154
    %193 = vmatprep.subr.mxu0 0.0
    %194 = vmatpush1.msra.mxu0 %v155
    %195 = vmatprep.subr.mxu0 0.0
    %196 = vmatpush1.msra.mxu0 0.0
    %197 = vmatprep.subr.mxu0 0.0
    %198 = vmatpush1.msra.mxu0 0.0
    %199 = vmatprep.subr.mxu0 0.0
    %200 = vmatpush1.msra.mxu0 0.0
    %201 = vmatprep.subr.mxu0 0.0
    %202 = vmatpush1.msra.mxu0 0.0
    %203 = vmatprep.subr.mxu0 0.0
    %204 = vmatpush1.msra.mxu0 0.0
    %205 = vmatprep.subr.mxu0 0.0
    %206 = vmatpush1.msra.mxu0 0.0
    %207 = vmatprep.subr.mxu0 0.0
    %208 = vmatpush1.msra.mxu0 0.0
    %209 = vmatprep.subr.mxu0 0.0
    %210 = vmatpush1.msra.mxu0 0.0
    %211 = vmatprep.subr.mxu0 0.0
    %212 = vmatpush1.msra.mxu0 0.0
    %213 = vmatprep.subr.mxu0 0.0
    %214 = vmatpush1.msra.mxu0 0.0
    %215 = vmatprep.subr.mxu0 0.0
    %216 = vmatpush1.msra.mxu0 0.0
    %217 = vmatprep.subr.mxu0 0.0
    %218 = vmatpush1.msra.mxu0 0.0
    %219 = vmatprep.subr.mxu0 0.0
    %220 = vmatpush1.msra.mxu0 0.0
    %221 = vmatprep.subr.mxu0 0.0
    %222 = vmatpush1.msra.mxu0 0.0
    %223 = vmatprep.subr.mxu0 0.0
    %224 = vmatpush1.msra.mxu0 0.0
    %225 = vmatprep.subr.mxu0 0.0
    %226 = vmatpush1.msra.mxu0 0.0
    %227 = vmatprep.mubr.f32.mxu0 0.0
    %228 = vmatmul.mubr.f32.gmra.mrb[0].mxu0 %v139
    %v229 = vpop.f32.mrb[0].mxu0
    %v230 = vadd.f32 %v161, %v229
    %v231 = vpop.f32.mrb[0].mxu0
    %232 = vdwg.mxu0
    %v233 = vmul.f32 %v230, %v230
    %234 = vadd.xlane.f32.xlu0 %v233
    %v235 = vpop.xlane.xlu0 %234
    %v236 = vrsqrt.pop %v235
    %v237 = vmul.f32 %v230, %v236
    %v238 = vld [vmem:[%s6] sm:$0xff]
    %v239 = vld [vmem:[%s6 + $0x8] sm:$0xff]
    %v240 = vld [vmem:[%s6 + $0x10] sm:$0xff]
    %v241 = vld [vmem:[%s6 + $0x18] sm:$0xff]
    %v242 = vld [vmem:[%s6 + $0x20] sm:$0xff]
    %v243 = vld [vmem:[%s6 + $0x28] sm:$0xff]
    %v244 = vld [vmem:[%s6 + $0x30] sm:$0xff]
    %v245 = vld [vmem:[%s6 + $0x38] sm:$0xff]
    %246 = vmatprep.subr.mxu0 0.0
    %247 = vmatpush1.xpose.msra.mxu0 %v238
    %248 = vmatprep.subr.mxu0 0.0
    %249 = vmatpush1.xpose.msra.mxu0 %v239
    %250 = vmatprep.subr.mxu0 0.0
    %251 = vmatpush1.xpose.msra.mxu0 %v240
    %252 = vmatprep.subr.mxu0 0.0
    %253 = vmatpush1.xpose.msra.mxu0 %v241
    %254 = vmatprep.subr.mxu0 0.0
    %255 = vmatpush1.xpose.msra.mxu0 %v242
    %256 = vmatprep.subr.mxu0 0.0
    %257 = vmatpush1.xpose.msra.mxu0 %v243
    %258 = vmatprep.subr.mxu0 0.0
    %259 = vmatpush1.xpose.msra.mxu0 %v244
    %260 = vmatprep.subr.mxu0 0.0
    %261 = vmatpush1.xpose.msra.mxu0 %v245
    %262 = vmatprep.subr.mxu0 0.0
    %263 = vmatpush1.xpose.msra.mxu0 0.0
    %264 = vmatprep.subr.mxu0 0.0
    %265 = vmatpush1.xpose.msra.mxu0 0.0
    %266 = vmatprep.subr.mxu0 0.0
    %267 = vmatpush1.xpose.msra.mxu0 0.0
    %268 = vmatprep.subr.mxu0 0.0
    %269 = vmatpush1.xpose.msra.mxu0 0.0
    %270 = vmatprep.subr.mxu0 0.0
    %271 = vmatpush1.xpose.msra.mxu0 0.0
    %272 = vmatprep.subr.mxu0 0.0
    %273 = vmatpush1.xpose.msra.mxu0 0.0
    %274 = vmatprep.subr.mxu0 0.0
    %275 = vmatpush1.xpose.msra.mxu0 0.0
    %276 = vmatprep.subr.mxu0 0.0
    %277 = vmatpush1.xpose.msra.mxu0 0.0
    %278 = vmatprep.subr.mxu0 0.0
    %279 = vmatpush1.xpose.msra.mxu0 0.0
    %280 = vmatprep.subr.mxu0 0.0
    %281 = vmatpush1.xpose.msra.mxu0 0.0
    %282 = vmatprep.subr.mxu0 0.0
    %283 = vmatpush1.xpose.msra.mxu0 0.0
    %284 = vmatprep.subr.mxu0 0.0
    %285 = vmatpush1.xpose.msra.mxu0 0.0
    %286 = vmatprep.subr.mxu0 0.0
    %287 = vmatpush1.xpose.msra.mxu0 0.0
    %288 = vmatprep.subr.mxu0 0.0
    %289 = vmatpush1.xpose.msra.mxu0 0.0
    %290 = vmatprep.subr.mxu0 0.0
    %291 = vmatpush1.xpose.msra.mxu0 0.0
    %292 = vmatprep.subr.mxu0 0.0
    %293 = vmatpush1.xpose.msra.mxu0 0.0
    %294 = vmatprep.subr.mxu0 0.0
    %295 = vmatpush1.xpose.msra.mxu0 0.0
    %296 = vmatprep.subr.mxu0 0.0
    %297 = vmatpush1.xpose.msra.mxu0 0.0
    %298 = vmatprep.subr.mxu0 0.0
    %299 = vmatpush1.xpose.msra.mxu0 0.0
    %300 = vmatprep.subr.mxu0 0.0
    %301 = vmatpush1.xpose.msra.mxu0 0.0
    %302 = vmatprep.subr.mxu0 0.0
    %303 = vmatpush1.xpose.msra.mxu0 0.0
    %304 = vmatprep.subr.mxu0 0.0
    %305 = vmatpush1.xpose.msra.mxu0 0.0
    %306 = vmatprep.subr.mxu0 0.0
    %307 = vmatpush1.xpose.msra.mxu0 0.0
    %308 = vmatprep.subr.mxu0 0.0
    %309 = vmatpush1.xpose.msra.mxu0 0.0
    %310 = vmatprep.mubr.f32.mxu0 0.0
    %311 = vmatmul.mubr.f32.gmra.mrb[0].mxu0 %v138
    %v312 = vpop.f32.mrb[0].mxu0
    %v313 = vadd.f32 0.0, %v312
    %v314 = vpop.f32.mrb[0].mxu0
    %315 = vmatprep.mubr.f32.mxu0 0.0
    %316 = vmatmul.mubr.f32.gmra.mrb[0].mxu0 %v237
    %v317 = vpop.f32.mrb[0].mxu0
    %v318 = vadd.f32 0.0, %v317
    %v319 = vpop.f32.mrb[0].mxu0
    %320 = vdwg.mxu0
    %v321 = vld [vmem:[%s7] sm:$0xff]
    %v322 = vld [vmem:[%s7 + $0x8] sm:$0xff]
    %v323 = vld [vmem:[%s7 + $0x10] sm:$0xff]
    %v324 = vld [vmem:[%s7 + $0x18] sm:$0xff]
    %v325 = vld [vmem:[%s7 + $0x20] sm:$0xff]
    %v326 = vld [vmem:[%s7 + $0x28] sm:$0xff]
    %v327 = vld [vmem:[%s7 + $0x30] sm:$0xff]
    %v328 = vld [vmem:[%s7 + $0x38] sm:$0xff]
    %329 = vmatprep.subr.mxu0 0.0
    %330 = vmatpush1.xpose.msra.mxu0 %v321
    %331 = vmatprep.subr.mxu0 0.0
    %332 = vmatpush1.xpose.msra.mxu0 %v322
    %333 = vmatprep.subr.mxu0 0.0
    %334 = vmatpush1.xpose.msra.mxu0 %v323
    %335 = vmatprep.subr.mxu0 0.0
    %336 = vmatpush1.xpose.msra.mxu0 %v324
    %337 = vmatprep.subr.mxu0 0.0
    %338 = vmatpush1.xpose.msra.mxu0 %v325
    %339 = vmatprep.subr.mxu0 0.0
    %340 = vmatpush1.xpose.msra.mxu0 %v326
    %341 = vmatprep.subr.mxu0 0.0
    %342 = vmatpush1.xpose.msra.mxu0 %v327
    %343 = vmatprep.subr.mxu0 0.0
    %344 = vmatpush1.xpose.msra.mxu0 %v328
    %345 = vmatprep.subr.mxu0 0.0
    %346 = vmatpush1.xpose.msra.mxu0 0.0
    %347 = vmatprep.subr.mxu0 0.0
    %348 = vmatpush1.xpose.msra.mxu0 0.0
    %349 = vmatprep.subr.mxu0 0.0
    %350 = vmatpush1.xpose.msra.mxu0 0.0
    %351 = vmatprep.subr.mxu0 0.0
    %352 = vmatpush1.xpose.msra.mxu0 0.0
    %353 = vmatprep.subr.mxu0 0.0
    %354 = vmatpush1.xpose.msra.mxu0 0.0
    %355 = vmatprep.subr.mxu0 0.0
    %356 = vmatpush1.xpose.msra.mxu0 0.0
    %357 = vmatprep.subr.mxu0 0.0
    %358 = vmatpush1.xpose.msra.mxu0 0.0
    %359 = vmatprep.subr.mxu0 0.0
    %360 = vmatpush1.xpose.msra.mxu0 0.0
    %361 = vmatprep.subr.mxu0 0.0
    %362 = vmatpush1.xpose.msra.mxu0 0.0
    %363 = vmatprep.subr.mxu0 0.0
    %364 = vmatpush1.xpose.msra.mxu0 0.0
    %365 = vmatprep.subr.mxu0 0.0
    %366 = vmatpush1.xpose.msra.mxu0 0.0
    %367 = vmatprep.subr.mxu0 0.0
    %368 = vmatpush1.xpose.msra.mxu0 0.0
    %369 = vmatprep.subr.mxu0 0.0
    %370 = vmatpush1.xpose.msra.mxu0 0.0
    %371 = vmatprep.subr.mxu0 0.0
    %372 = vmatpush1.xpose.msra.mxu0 0.0
    %373 = vmatprep.subr.mxu0 0.0
    %374 = vmatpush1.xpose.msra.mxu0 0.0
    %375 = vmatprep.subr.mxu0 0.0
    %376 = vmatpush1.xpose.msra.mxu0 0.0
    %377 = vmatprep.subr.mxu0 0.0
    %378 = vmatpush1.xpose.msra.mxu0 0.0
    %379 = vmatprep.subr.mxu0 0.0
    %380 = vmatpush1.xpose.msra.mxu0 0.0
    %381 = vmatprep.subr.mxu0 0.0
    %382 = vmatpush1.xpose.msra.mxu0 0.0
    %383 = vmatprep.subr.mxu0 0.0
    %384 = vmatpush1.xpose.msra.mxu0 0.0
    %385 = vmatprep.subr.mxu0 0.0
    %386 = vmatpush1.xpose.msra.mxu0 0.0
    %387 = vmatprep.subr.mxu0 0.0
    %388 = vmatpush1.xpose.msra.mxu0 0.0
    %389 = vmatprep.subr.mxu0 0.0
    %390 = vmatpush1.xpose.msra.mxu0 0.0
    %391 = vmatprep.subr.mxu0 0.0
    %392 = vmatpush1.xpose.msra.mxu0 0.0
    %393 = vmatprep.mubr.f32.mxu0 0.0
    %394 = vmatmul.mubr.f32.gmra.mrb[0].mxu0 %v138
    %v395 = vpop.f32.mrb[0].mxu0
    %v396 = vadd.f32 0.0, %v395
    %v397 = vpop.f32.mrb[0].mxu0
    %398 = vmatprep.mubr.f32.mxu0 0.0
    %399 = vmatmul.mubr.f32.gmra.mrb[0].mxu0 %v237
    %v400 = vpop.f32.mrb[0].mxu0
    %v401 = vadd.f32 0.0, %v400
    %v402 = vpop.f32.mrb[0].mxu0
    %403 = vdwg.mxu0
    %v404 = vlaneseq
    %v405 = vand.u32 %v404, 127
    %v406 = vld [vmem:[%s8] sm:$0xff]
    %407 = vset.pattern.permute.xlu0 0
    %408 = vperm.xlu0 %407, %v406
    %v409 = vpop.permute.xlu0 %408
    %vm410 = vcmp.eq.s32.totalorder %v405, %v409
    %v411 = vsel %vm410, 1, 0
    %v412 = vcvt.s32.f32 %v411
    %v413 = vld [vmem:[%s9] sm:$0xff]
    %v414 = vlaneseq
    %v415 = vshrl.u32 %v414, 7
    %v416 = vsub.s32 0, %v415
    %v417 = vrot.slane %v413, %v416
    %419 = vbcast.lane.b32.xlu0 %v417, 256
    %v420 = vpop.permute.xlu0 %419
    %s422 = sor.u32 256, 8
    %423 = vbcast.lane.b32.xlu0 %v417, %s422
    %v424 = vpop.permute.xlu0 %423
    %v425 = vlaneseq
    %v426 = vshrl.u32 %v425, 7
    %v427 = vsub.s32 1, %v426
    %v428 = vrot.slane %v413, %v427
    %430 = vbcast.lane.b32.xlu0 %v428, 256
    %v431 = vpop.permute.xlu0 %430
    %s433 = sor.u32 256, 8
    %434 = vbcast.lane.b32.xlu0 %v428, %s433
    %v435 = vpop.permute.xlu0 %434
    %v436 = vlaneseq
    %v437 = vshrl.u32 %v436, 7
    %v438 = vsub.s32 2, %v437
    %v439 = vrot.slane %v413, %v438
    %441 = vbcast.lane.b32.xlu0 %v439, 256
    %v442 = vpop.permute.xlu0 %441
    %s444 = sor.u32 256, 8
    %445 = vbcast.lane.b32.xlu0 %v439, %s444
    %v446 = vpop.permute.xlu0 %445
    %v447 = vlaneseq
    %v448 = vshrl.u32 %v447, 7
    %v449 = vsub.s32 3, %v448
    %v450 = vrot.slane %v413, %v449
    %452 = vbcast.lane.b32.xlu0 %v450, 256
    %v453 = vpop.permute.xlu0 %452
    %s455 = sor.u32 256, 8
    %456 = vbcast.lane.b32.xlu0 %v450, %s455
    %v457 = vpop.permute.xlu0 %456
    %v458 = vlaneseq
    %v459 = vshrl.u32 %v458, 7
    %v460 = vsub.s32 4, %v459
    %v461 = vrot.slane %v413, %v460
    %463 = vbcast.lane.b32.xlu0 %v461, 256
    %v464 = vpop.permute.xlu0 %463
    %s466 = sor.u32 256, 8
    %467 = vbcast.lane.b32.xlu0 %v461, %s466
    %v468 = vpop.permute.xlu0 %467
    %v469 = vlaneseq
    %v470 = vshrl.u32 %v469, 7
    %v471 = vsub.s32 5, %v470
    %v472 = vrot.slane %v413, %v471
    %474 = vbcast.lane.b32.xlu0 %v472, 256
    %v475 = vpop.permute.xlu0 %474
    %s477 = sor.u32 256, 8
    %478 = vbcast.lane.b32.xlu0 %v472, %s477
    %v479 = vpop.permute.xlu0 %478
    %v480 = vlaneseq
    %v481 = vshrl.u32 %v480, 7
    %v482 = vsub.s32 6, %v481
    %v483 = vrot.slane %v413, %v482
    %485 = vbcast.lane.b32.xlu0 %v483, 256
    %v486 = vpop.permute.xlu0 %485
    %s488 = sor.u32 256, 8
    %489 = vbcast.lane.b32.xlu0 %v483, %s488
    %v490 = vpop.permute.xlu0 %489
    %v491 = vlaneseq
    %v492 = vshrl.u32 %v491, 7
    %v493 = vsub.s32 7, %v492
    %v494 = vrot.slane %v413, %v493
    %496 = vbcast.lane.b32.xlu0 %v494, 256
    %v497 = vpop.permute.xlu0 %496
    %s499 = sor.u32 256, 8
    %500 = vbcast.lane.b32.xlu0 %v494, %s499
    %v501 = vpop.permute.xlu0 %500
    %vm502 = vcmp.eq.s32.totalorder %v405, %v420
    %vm503 = vcmp.eq.s32.totalorder %v405, %v424
    %vm504 = vcmp.eq.s32.totalorder %v405, %v431
    %vm505 = vcmp.eq.s32.totalorder %v405, %v435
    %vm506 = vcmp.eq.s32.totalorder %v405, %v442
    %vm507 = vcmp.eq.s32.totalorder %v405, %v446
    %vm508 = vcmp.eq.s32.totalorder %v405, %v453
    %vm509 = vcmp.eq.s32.totalorder %v405, %v457
    %vm510 = vcmp.eq.s32.totalorder %v405, %v464
    %vm511 = vcmp.eq.s32.totalorder %v405, %v468
    %vm512 = vcmp.eq.s32.totalorder %v405, %v475
    %vm513 = vcmp.eq.s32.totalorder %v405, %v479
    %vm514 = vcmp.eq.s32.totalorder %v405, %v486
    %vm515 = vcmp.eq.s32.totalorder %v405, %v490
    %vm516 = vcmp.eq.s32.totalorder %v405, %v497
    %vm517 = vcmp.eq.s32.totalorder %v405, %v501
    %v518 = vsel %vm502, 1, 0
    %v519 = vsel %vm503, 1, 0
    %v520 = vsel %vm504, 1, 0
    %v521 = vsel %vm505, 1, 0
    %v522 = vsel %vm506, 1, 0
    %v523 = vsel %vm507, 1, 0
    %v524 = vsel %vm508, 1, 0
    %v525 = vsel %vm509, 1, 0
    %v526 = vsel %vm510, 1, 0
    %v527 = vsel %vm511, 1, 0
    %v528 = vsel %vm512, 1, 0
    %v529 = vsel %vm513, 1, 0
    %v530 = vsel %vm514, 1, 0
    %v531 = vsel %vm515, 1, 0
    %v532 = vsel %vm516, 1, 0
    %v533 = vsel %vm517, 1, 0
    %v534 = vcvt.s32.f32 %v518
    %v535 = vcvt.s32.f32 %v519
    %v536 = vcvt.s32.f32 %v520
    %v537 = vcvt.s32.f32 %v521
    %v538 = vcvt.s32.f32 %v522
    %v539 = vcvt.s32.f32 %v523
    %v540 = vcvt.s32.f32 %v524
    %v541 = vcvt.s32.f32 %v525
    %v542 = vcvt.s32.f32 %v526
    %v543 = vcvt.s32.f32 %v527
    %v544 = vcvt.s32.f32 %v528
    %v545 = vcvt.s32.f32 %v529
    %v546 = vcvt.s32.f32 %v530
    %v547 = vcvt.s32.f32 %v531
    %v548 = vcvt.s32.f32 %v532
    %v549 = vcvt.s32.f32 %v533
    %v550 = vmul.f32 %v396, %v412
    %v551 = vsel %vm60, %v550, 0.0
    %552 = vadd.xlane.f32.xlu0 %v551
    %v553 = vpop.xlane.xlu0 %552
    %v554 = vmul.f32 %v318, %v412
    %v555 = vsel %vm60, %v554, 0.0
    %556 = vadd.xlane.f32.xlu0 %v555
    %v557 = vpop.xlane.xlu0 %556
    %v559 = vcombine.high %v313, %v313
    %v561 = vunpack.c.l.s4 1966171168
    %v562 = vunpack.c.0.s8 %v561
    %v563 = vlaneseq
    %v564 = vshrl.u32 %v563, 7
    %v565 = vsub.s32 %v562, %v564
    %v566 = vrot.slane %v313, %v565
    %v568 = vunpack.c.l.s4 1966171168
    %v569 = vunpack.c.0.s8 %v568
    %v570 = vlaneseq
    %v571 = vshrl.u32 %v570, 7
    %v572 = vsub.s32 %v569, %v571
    %v573 = vrot.slane %v559, %v572
    %v574 = vcombine.high %v566, %v566
    %v575 = vcombine.high %v573, %v573
    %v577 = vunpack.c.l.s4 1966171168
    %v578 = vunpack.c.0.s8 %v577
    %v579 = vlaneseq
    %v580 = vshrl.u32 %v579, 7
    %v581 = vsub.s32 %v578, %v580
    %v582 = vrot.slane %v566, %v581
    %v584 = vunpack.c.l.s4 1966171168
    %v585 = vunpack.c.0.s8 %v584
    %v586 = vlaneseq
    %v587 = vshrl.u32 %v586, 7
    %v588 = vsub.s32 %v585, %v587
    %v589 = vrot.slane %v573, %v588
    %v591 = vunpack.c.l.s4 1966171168
    %v592 = vunpack.c.0.s8 %v591
    %v593 = vlaneseq
    %v594 = vshrl.u32 %v593, 7
    %v595 = vsub.s32 %v592, %v594
    %v596 = vrot.slane %v574, %v595
    %v598 = vunpack.c.l.s4 1966171168
    %v599 = vunpack.c.0.s8 %v598
    %v600 = vlaneseq
    %v601 = vshrl.u32 %v600, 7
    %v602 = vsub.s32 %v599, %v601
    %v603 = vrot.slane %v575, %v602
    %v604 = vcombine.high %v582, %v582
    %v605 = vcombine.high %v589, %v589
    %v606 = vcombine.high %v596, %v596
    %v607 = vcombine.high %v603, %v603
    %v608 = vlaneseq
    %v609 = vshrl.u32 %v608, 7
    %v610 = vsub.s32 0, %v609
    %v611 = vrot.slane %v582, %v610
    %v612 = vlaneseq
    %v613 = vshrl.u32 %v612, 7
    %v614 = vsub.s32 0, %v613
    %v615 = vrot.slane %v596, %v614
    %v616 = vlaneseq
    %v617 = vshrl.u32 %v616, 7
    %v618 = vsub.s32 0, %v617
    %v619 = vrot.slane %v604, %v618
    %v620 = vlaneseq
    %v621 = vshrl.u32 %v620, 7
    %v622 = vsub.s32 0, %v621
    %v623 = vrot.slane %v606, %v622
    %v624 = vlaneseq
    %v625 = vshrl.u32 %v624, 7
    %v626 = vsub.s32 0, %v625
    %v627 = vrot.slane %v589, %v626
    %v628 = vlaneseq
    %v629 = vshrl.u32 %v628, 7
    %v630 = vsub.s32 0, %v629
    %v631 = vrot.slane %v603, %v630
    %v632 = vlaneseq
    %v633 = vshrl.u32 %v632, 7
    %v634 = vsub.s32 0, %v633
    %v635 = vrot.slane %v605, %v634
    %v636 = vlaneseq
    %v637 = vshrl.u32 %v636, 7
    %v638 = vsub.s32 0, %v637
    %v639 = vrot.slane %v607, %v638
    %v648 = vmul.f32 %v611, %v534
    %v649 = vmul.f32 %v611, %v535
    %v650 = vmul.f32 %v615, %v536
    %v651 = vmul.f32 %v615, %v537
    %v652 = vmul.f32 %v619, %v538
    %v653 = vmul.f32 %v619, %v539
    %v654 = vmul.f32 %v623, %v540
    %v655 = vmul.f32 %v623, %v541
    %v656 = vmul.f32 %v627, %v542
    %v657 = vmul.f32 %v627, %v543
    %v658 = vmul.f32 %v631, %v544
    %v659 = vmul.f32 %v631, %v545
    %v660 = vmul.f32 %v635, %v546
    %v661 = vmul.f32 %v635, %v547
    %v662 = vmul.f32 %v639, %v548
    %v663 = vmul.f32 %v639, %v549
    %v664 = vsel %vm60, %v648, 0.0
    %665 = vadd.xlane.f32.xlu0 %v664
    %v666 = vpop.xlane.xlu0 %665
    %v667 = vsel %vm60, %v649, 0.0
    %668 = vadd.xlane.f32.xlu0 %v667
    %v669 = vpop.xlane.xlu0 %668
    %v670 = vsel %vm60, %v650, 0.0
    %671 = vadd.xlane.f32.xlu0 %v670
    %v672 = vpop.xlane.xlu0 %671
    %v673 = vsel %vm60, %v651, 0.0
    %674 = vadd.xlane.f32.xlu0 %v673
    %v675 = vpop.xlane.xlu0 %674
    %v676 = vsel %vm60, %v652, 0.0
    %677 = vadd.xlane.f32.xlu0 %v676
    %v678 = vpop.xlane.xlu0 %677
    %v679 = vsel %vm60, %v653, 0.0
    %680 = vadd.xlane.f32.xlu0 %v679
    %v681 = vpop.xlane.xlu0 %680
    %v682 = vsel %vm60, %v654, 0.0
    %683 = vadd.xlane.f32.xlu0 %v682
    %v684 = vpop.xlane.xlu0 %683
    %v685 = vsel %vm60, %v655, 0.0
    %686 = vadd.xlane.f32.xlu0 %v685
    %v687 = vpop.xlane.xlu0 %686
    %v688 = vsel %vm60, %v656, 0.0
    %689 = vadd.xlane.f32.xlu0 %v688
    %v690 = vpop.xlane.xlu0 %689
    %v691 = vsel %vm60, %v657, 0.0
    %692 = vadd.xlane.f32.xlu0 %v691
    %v693 = vpop.xlane.xlu0 %692
    %v694 = vsel %vm60, %v658, 0.0
    %695 = vadd.xlane.f32.xlu0 %v694
    %v696 = vpop.xlane.xlu0 %695
    %v697 = vsel %vm60, %v659, 0.0
    %698 = vadd.xlane.f32.xlu0 %v697
    %v699 = vpop.xlane.xlu0 %698
    %v700 = vsel %vm60, %v660, 0.0
    %701 = vadd.xlane.f32.xlu0 %v700
    %v702 = vpop.xlane.xlu0 %701
    %v703 = vsel %vm60, %v661, 0.0
    %704 = vadd.xlane.f32.xlu0 %v703
    %v705 = vpop.xlane.xlu0 %704
    %v706 = vsel %vm60, %v662, 0.0
    %707 = vadd.xlane.f32.xlu0 %v706
    %v708 = vpop.xlane.xlu0 %707
    %v709 = vsel %vm60, %v663, 0.0
    %710 = vadd.xlane.f32.xlu0 %v709
    %v711 = vpop.xlane.xlu0 %710
    %v713 = vcombine.high %v401, %v401
    %v715 = vunpack.c.l.s4 1966171168
    %v716 = vunpack.c.0.s8 %v715
    %v717 = vlaneseq
    %v718 = vshrl.u32 %v717, 7
    %v719 = vsub.s32 %v716, %v718
    %v720 = vrot.slane %v401, %v719
    %v722 = vunpack.c.l.s4 1966171168
    %v723 = vunpack.c.0.s8 %v722
    %v724 = vlaneseq
    %v725 = vshrl.u32 %v724, 7
    %v726 = vsub.s32 %v723, %v725
    %v727 = vrot.slane %v713, %v726
    %v728 = vcombine.high %v720, %v720
    %v729 = vcombine.high %v727, %v727
    %v731 = vunpack.c.l.s4 1966171168
    %v732 = vunpack.c.0.s8 %v731
    %v733 = vlaneseq
    %v734 = vshrl.u32 %v733, 7
    %v735 = vsub.s32 %v732, %v734
    %v736 = vrot.slane %v720, %v735
    %v738 = vunpack.c.l.s4 1966171168
    %v739 = vunpack.c.0.s8 %v738
    %v740 = vlaneseq
    %v741 = vshrl.u32 %v740, 7
    %v742 = vsub.s32 %v739, %v741
    %v743 = vrot.slane %v727, %v742
    %v745 = vunpack.c.l.s4 1966171168
    %v746 = vunpack.c.0.s8 %v745
    %v747 = vlaneseq
    %v748 = vshrl.u32 %v747, 7
    %v749 = vsub.s32 %v746, %v748
    %v750 = vrot.slane %v728, %v749
    %v752 = vunpack.c.l.s4 1966171168
    %v753 = vunpack.c.0.s8 %v752
    %v754 = vlaneseq
    %v755 = vshrl.u32 %v754, 7
    %v756 = vsub.s32 %v753, %v755
    %v757 = vrot.slane %v729, %v756
    %v758 = vcombine.high %v736, %v736
    %v759 = vcombine.high %v743, %v743
    %v760 = vcombine.high %v750, %v750
    %v761 = vcombine.high %v757, %v757
    %v762 = vlaneseq
    %v763 = vshrl.u32 %v762, 7
    %v764 = vsub.s32 0, %v763
    %v765 = vrot.slane %v736, %v764
    %v766 = vlaneseq
    %v767 = vshrl.u32 %v766, 7
    %v768 = vsub.s32 0, %v767
    %v769 = vrot.slane %v750, %v768
    %v770 = vlaneseq
    %v771 = vshrl.u32 %v770, 7
    %v772 = vsub.s32 0, %v771
    %v773 = vrot.slane %v758, %v772
    %v774 = vlaneseq
    %v775 = vshrl.u32 %v774, 7
    %v776 = vsub.s32 0, %v775
    %v777 = vrot.slane %v760, %v776
    %v778 = vlaneseq
    %v779 = vshrl.u32 %v778, 7
    %v780 = vsub.s32 0, %v779
    %v781 = vrot.slane %v743, %v780
    %v782 = vlaneseq
    %v783 = vshrl.u32 %v782, 7
    %v784 = vsub.s32 0, %v783
    %v785 = vrot.slane %v757, %v784
    %v786 = vlaneseq
    %v787 = vshrl.u32 %v786, 7
    %v788 = vsub.s32 0, %v787
    %v789 = vrot.slane %v759, %v788
    %v790 = vlaneseq
    %v791 = vshrl.u32 %v790, 7
    %v792 = vsub.s32 0, %v791
    %v793 = vrot.slane %v761, %v792
    %v802 = vmul.f32 %v765, %v534
    %v803 = vmul.f32 %v765, %v535
    %v804 = vmul.f32 %v769, %v536
    %v805 = vmul.f32 %v769, %v537
    %v806 = vmul.f32 %v773, %v538
    %v807 = vmul.f32 %v773, %v539
    %v808 = vmul.f32 %v777, %v540
    %v809 = vmul.f32 %v777, %v541
    %v810 = vmul.f32 %v781, %v542
    %v811 = vmul.f32 %v781, %v543
    %v812 = vmul.f32 %v785, %v544
    %v813 = vmul.f32 %v785, %v545
    %v814 = vmul.f32 %v789, %v546
    %v815 = vmul.f32 %v789, %v547
    %v816 = vmul.f32 %v793, %v548
    %v817 = vmul.f32 %v793, %v549
    %v818 = vsel %vm60, %v802, 0.0
    %819 = vadd.xlane.f32.xlu0 %v818
    %v820 = vpop.xlane.xlu0 %819
    %v821 = vsel %vm60, %v803, 0.0
    %822 = vadd.xlane.f32.xlu0 %v821
    %v823 = vpop.xlane.xlu0 %822
    %v824 = vsel %vm60, %v804, 0.0
    %825 = vadd.xlane.f32.xlu0 %v824
    %v826 = vpop.xlane.xlu0 %825
    %v827 = vsel %vm60, %v805, 0.0
    %828 = vadd.xlane.f32.xlu0 %v827
    %v829 = vpop.xlane.xlu0 %828
    %v830 = vsel %vm60, %v806, 0.0
    %831 = vadd.xlane.f32.xlu0 %v830
    %v832 = vpop.xlane.xlu0 %831
    %v833 = vsel %vm60, %v807, 0.0
    %834 = vadd.xlane.f32.xlu0 %v833
    %v835 = vpop.xlane.xlu0 %834
    %v836 = vsel %vm60, %v808, 0.0
    %837 = vadd.xlane.f32.xlu0 %v836
    %v838 = vpop.xlane.xlu0 %837
    %v839 = vsel %vm60, %v809, 0.0
    %840 = vadd.xlane.f32.xlu0 %v839
    %v841 = vpop.xlane.xlu0 %840
    %v842 = vsel %vm60, %v810, 0.0
    %843 = vadd.xlane.f32.xlu0 %v842
    %v844 = vpop.xlane.xlu0 %843
    %v845 = vsel %vm60, %v811, 0.0
    %846 = vadd.xlane.f32.xlu0 %v845
    %v847 = vpop.xlane.xlu0 %846
    %v848 = vsel %vm60, %v812, 0.0
    %849 = vadd.xlane.f32.xlu0 %v848
    %v850 = vpop.xlane.xlu0 %849
    %v851 = vsel %vm60, %v813, 0.0
    %852 = vadd.xlane.f32.xlu0 %v851
    %v853 = vpop.xlane.xlu0 %852
    %v854 = vsel %vm60, %v814, 0.0
    %855 = vadd.xlane.f32.xlu0 %v854
    %v856 = vpop.xlane.xlu0 %855
    %v857 = vsel %vm60, %v815, 0.0
    %858 = vadd.xlane.f32.xlu0 %v857
    %v859 = vpop.xlane.xlu0 %858
    %v860 = vsel %vm60, %v816, 0.0
    %861 = vadd.xlane.f32.xlu0 %v860
    %v862 = vpop.xlane.xlu0 %861
    %v863 = vsel %vm60, %v817, 0.0
    %864 = vadd.xlane.f32.xlu0 %v863
    %v865 = vpop.xlane.xlu0 %864
    %v866 = vmul.f32 %v553, 14.285714
    %v867 = vmul.f32 %v557, 14.285714
    %v884 = vlaneseq
    %v885 = vshrl.u32 %v884, 7
    %v886 = vsub.s32 %v405, %v885
    %v887 = vrot.slane %v666, %v886
    %v888 = vadd.s32 %v405, 4294967288
    %v889 = vlaneseq
    %v890 = vshrl.u32 %v889, 7
    %v891 = vsub.s32 %v888, %v890
    %v892 = vrot.slane %v669, %v891
    %vm893 = vcmask 130112
    %v894 = vsel %vm893, %v892, %v887
    %v895 = vlaneseq
    %v896 = vshrl.u32 %v895, 7
    %v897 = vsub.s32 %v405, %v896
    %v898 = vrot.slane %v672, %v897
    %v899 = vlaneseq
    %v900 = vshrl.u32 %v899, 7
    %v901 = vsub.s32 %v888, %v900
    %v902 = vrot.slane %v675, %v901
    %v903 = vsel %vm893, %v902, %v898
    %v904 = vlaneseq
    %v905 = vshrl.u32 %v904, 7
    %v906 = vsub.s32 %v405, %v905
    %v907 = vrot.slane %v678, %v906
    %v908 = vlaneseq
    %v909 = vshrl.u32 %v908, 7
    %v910 = vsub.s32 %v888, %v909
    %v911 = vrot.slane %v681, %v910
    %v912 = vsel %vm893, %v911, %v907
    %v913 = vlaneseq
    %v914 = vshrl.u32 %v913, 7
    %v915 = vsub.s32 %v405, %v914
    %v916 = vrot.slane %v684, %v915
    %v917 = vlaneseq
    %v918 = vshrl.u32 %v917, 7
    %v919 = vsub.s32 %v888, %v918
    %v920 = vrot.slane %v687, %v919
    %v921 = vsel %vm893, %v920, %v916
    %v922 = vlaneseq
    %v923 = vshrl.u32 %v922, 7
    %v924 = vsub.s32 %v405, %v923
    %v925 = vrot.slane %v690, %v924
    %v926 = vlaneseq
    %v927 = vshrl.u32 %v926, 7
    %v928 = vsub.s32 %v888, %v927
    %v929 = vrot.slane %v693, %v928
    %v930 = vsel %vm893, %v929, %v925
    %v931 = vlaneseq
    %v932 = vshrl.u32 %v931, 7
    %v933 = vsub.s32 %v405, %v932
    %v934 = vrot.slane %v696, %v933
    %v935 = vlaneseq
    %v936 = vshrl.u32 %v935, 7
    %v937 = vsub.s32 %v888, %v936
    %v938 = vrot.slane %v699, %v937
    %v939 = vsel %vm893, %v938, %v934
    %v940 = vlaneseq
    %v941 = vshrl.u32 %v940, 7
    %v942 = vsub.s32 %v405, %v941
    %v943 = vrot.slane %v702, %v942
    %v944 = vlaneseq
    %v945 = vshrl.u32 %v944, 7
    %v946 = vsub.s32 %v888, %v945
    %v947 = vrot.slane %v705, %v946
    %v948 = vsel %vm893, %v947, %v943
    %v949 = vlaneseq
    %v950 = vshrl.u32 %v949, 7
    %v951 = vsub.s32 %v405, %v950
    %v952 = vrot.slane %v708, %v951
    %v953 = vlaneseq
    %v954 = vshrl.u32 %v953, 7
    %v955 = vsub.s32 %v888, %v954
    %v956 = vrot.slane %v711, %v955
    %v957 = vsel %vm893, %v956, %v952
    %vm958 = vcmask 1041409
    %v959 = vsel %vm958, %v903, %v894
    %vm960 = vcmask 1042434
    %v961 = vsel %vm960, %v912, %v959
    %vm962 = vcmask 1043459
    %v963 = vsel %vm962, %v921, %v961
    %vm964 = vcmask 1044484
    %v965 = vsel %vm964, %v930, %v963
    %vm966 = vcmask 1045509
    %v967 = vsel %vm966, %v939, %v965
    %vm968 = vcmask 1046534
    %v969 = vsel %vm968, %v948, %v967
    %vm970 = vcmask 1047559
    %v971 = vsel %vm970, %v957, %v969
    %v989 = vlaneseq
    %v990 = vshrl.u32 %v989, 7
    %v991 = vsub.s32 %v405, %v990
    %v992 = vrot.slane %v820, %v991
    %v993 = vlaneseq
    %v994 = vshrl.u32 %v993, 7
    %v995 = vsub.s32 %v888, %v994
    %v996 = vrot.slane %v823, %v995
    %v997 = vsel %vm893, %v996, %v992
    %v998 = vlaneseq
    %v999 = vshrl.u32 %v998, 7
    %v1000 = vsub.s32 %v405, %v999
    %v1001 = vrot.slane %v826, %v1000
    %v1002 = vlaneseq
    %v1003 = vshrl.u32 %v1002, 7
    %v1004 = vsub.s32 %v888, %v1003
    %v1005 = vrot.slane %v829, %v1004
    %v1006 = vsel %vm893, %v1005, %v1001
    %v1007 = vlaneseq
    %v1008 = vshrl.u32 %v1007, 7
    %v1009 = vsub.s32 %v405, %v1008
    %v1010 = vrot.slane %v832, %v1009
    %v1011 = vlaneseq
    %v1012 = vshrl.u32 %v1011, 7
    %v1013 = vsub.s32 %v888, %v1012
    %v1014 = vrot.slane %v835, %v1013
    %v1015 = vsel %vm893, %v1014, %v1010
    %v1016 = vlaneseq
    %v1017 = vshrl.u32 %v1016, 7
    %v1018 = vsub.s32 %v405, %v1017
    %v1019 = vrot.slane %v838, %v1018
    %v1020 = vlaneseq
    %v1021 = vshrl.u32 %v1020, 7
    %v1022 = vsub.s32 %v888, %v1021
    %v1023 = vrot.slane %v841, %v1022
    %v1024 = vsel %vm893, %v1023, %v1019
    %v1025 = vlaneseq
    %v1026 = vshrl.u32 %v1025, 7
    %v1027 = vsub.s32 %v405, %v1026
    %v1028 = vrot.slane %v844, %v1027
    %v1029 = vlaneseq
    %v1030 = vshrl.u32 %v1029, 7
    %v1031 = vsub.s32 %v888, %v1030
    %v1032 = vrot.slane %v847, %v1031
    %v1033 = vsel %vm893, %v1032, %v1028
    %v1034 = vlaneseq
    %v1035 = vshrl.u32 %v1034, 7
    %v1036 = vsub.s32 %v405, %v1035
    %v1037 = vrot.slane %v850, %v1036
    %v1038 = vlaneseq
    %v1039 = vshrl.u32 %v1038, 7
    %v1040 = vsub.s32 %v888, %v1039
    %v1041 = vrot.slane %v853, %v1040
    %v1042 = vsel %vm893, %v1041, %v1037
    %v1043 = vlaneseq
    %v1044 = vshrl.u32 %v1043, 7
    %v1045 = vsub.s32 %v405, %v1044
    %v1046 = vrot.slane %v856, %v1045
    %v1047 = vlaneseq
    %v1048 = vshrl.u32 %v1047, 7
    %v1049 = vsub.s32 %v888, %v1048
    %v1050 = vrot.slane %v859, %v1049
    %v1051 = vsel %vm893, %v1050, %v1046
    %v1052 = vlaneseq
    %v1053 = vshrl.u32 %v1052, 7
    %v1054 = vsub.s32 %v405, %v1053
    %v1055 = vrot.slane %v862, %v1054
    %v1056 = vlaneseq
    %v1057 = vshrl.u32 %v1056, 7
    %v1058 = vsub.s32 %v888, %v1057
    %v1059 = vrot.slane %v865, %v1058
    %v1060 = vsel %vm893, %v1059, %v1055
    %v1061 = vsel %vm958, %v1006, %v997
    %v1062 = vsel %vm960, %v1015, %v1061
    %v1063 = vsel %vm962, %v1024, %v1062
    %v1064 = vsel %vm964, %v1033, %v1063
    %v1065 = vsel %vm966, %v1042, %v1064
    %v1066 = vsel %vm968, %v1051, %v1065
    %v1067 = vsel %vm970, %v1060, %v1066
    %v1069 = vmul.f32 %v971, 14.285714
    %v1070 = vmul.f32 %v1067, 14.285714
    %vm1071 = vcmask 130048
    %v1072 = vsel %vm1071, %v1069, -inf
    %1073 = vmax.xlane.f32.xlu0 %v1072
    %v1074 = vpop.xlane.xlu0 %1073
    %v1075 = vsel %vm1071, %v1070, -inf
    %1076 = vmax.xlane.f32.xlu0 %v1075
    %v1077 = vpop.xlane.xlu0 %1076
    %v1078 = vmax.f32 %v866, %v1074
    %v1079 = vmax.f32 %v867, %v1077
    %v1080 = vsub.f32 %v866, %v1078
    %v1081 = vsub.f32 %v867, %v1079
    %v1082 = vmul.f32 %v1080, 1.442695
    %v1083 = vpow.pop %v1082
    %v1084 = vmul.f32 %v1081, 1.442695
    %v1085 = vpow.pop %v1084
    %1087 = vset.pattern.permute.xlu0 0
    %1088 = vperm.xlu0 %1087, %v1078
    %v1089 = vpop.permute.xlu0 %1088
    %1092 = vset.pattern.permute.xlu0 0
    %1093 = vperm.xlu0 %1092, %v1079
    %v1094 = vpop.permute.xlu0 %1093
    %v1096 = vsub.f32 %v1069, %v1089
    %v1097 = vsub.f32 %v1070, %v1094
    %v1098 = vmul.f32 %v1096, 1.442695
    %v1099 = vpow.pop %v1098
    %v1100 = vmul.f32 %v1097, 1.442695
    %v1101 = vpow.pop %v1100
    %v1102 = vsel %vm1071, %v1099, 0.0
    %1103 = vadd.xlane.f32.xlu0 %v1102
    %v1104 = vpop.xlane.xlu0 %1103
    %v1105 = vsel %vm1071, %v1101, 0.0
    %1106 = vadd.xlane.f32.xlu0 %v1105
    %v1107 = vpop.xlane.xlu0 %1106
    %v1108 = vadd.f32 %v1083, %v1104
    %v1109 = vadd.f32 %v1085, %v1107
    %v1110 = vlog2.pop %v1108
    %v1111 = vmul.f32 %v1110, 0.6931472
    %v1112 = vlog2.pop %v1109
    %v1113 = vmul.f32 %v1112, 0.6931472
    %v1114 = vadd.f32 %v1078, %v1111
    %v1115 = vadd.f32 %v1079, %v1113
    %v1116 = vsub.f32 %v1114, %v866
    %v1117 = vsub.f32 %v1115, %v867
    %vm1118 = vcmask 7168
    %v1119 = vsel %vm1118, %v1116, 0.0
    %v1120 = vsel %vm1118, %v1117, 0.0
    %v1121 = vadd.f32 %v1119, %v1120
    %1122 = vadd.xlane.f32.xlu0 %v1121
    %v1123 = vpop.xlane.xlu0 %1122
    %v1124 = vrot.slane %v1123, 4
    %v1125 = vadd.f32 %v1123, %v1124
    %v1126 = vrot.slane %v1125, 2
    %v1127 = vadd.f32 %v1125, %v1126
    %v1128 = vrot.slane %v1127, 1
    %v1129 = vadd.f32 %v1127, %v1128
    %s1130 = vtos %v1129
    %v1131 = vrcp.pop 8.0
    %s1132 = vtos %v1131
    %s1133 = smul.f32 %s1130, %s1132
    %v1134 = vmul.f32 %v237, %v237
    %1135 = vadd.xlane.f32.xlu0 %v1134
    %v1136 = vpop.xlane.xlu0 %1135
    %v1137 = vmax.f32 %v1136, 1e-24
    %v1138 = vrsqrt.pop %v1137
    %v1139 = vmul.f32 %v237, %v1138
    %v1140 = vmul.f32 %v138, %v138
    %1141 = vadd.xlane.f32.xlu0 %v1140
    %v1142 = vpop.xlane.xlu0 %1141
    %v1143 = vmax.f32 %v1142, 1e-24
    %v1144 = vrsqrt.pop %v1143
    %v1145 = vmul.f32 %v138, %v1144
    %1146 = vmatprep.subr.mxu0 0.0
    %1147 = vmatpush1.xpose.msra.mxu0 %v1145
    %1148 = vmatprep.subr.mxu0 0.0
    %1149 = vmatpush1.xpose.msra.mxu0 0.0
    %1150 = vmatprep.subr.mxu0 0.0
    %1151 = vmatpush1.xpose.msra.mxu0 0.0
    %1152 = vmatprep.subr.mxu0 0.0
    %1153 = vmatpush1.xpose.msra.mxu0 0.0
    %1154 = vmatprep.subr.mxu0 0.0
    %1155 = vmatpush1.xpose.msra.mxu0 0.0
    %1156 = vmatprep.subr.mxu0 0.0
    %1157 = vmatpush1.xpose.msra.mxu0 0.0
    %1158 = vmatprep.subr.mxu0 0.0
    %1159 = vmatpush1.xpose.msra.mxu0 0.0
    %1160 = vmatprep.subr.mxu0 0.0
    %1161 = vmatpush1.xpose.msra.mxu0 0.0
    %1162 = vmatprep.subr.mxu0 0.0
    %1163 = vmatpush1.xpose.msra.mxu0 0.0
    %1164 = vmatprep.subr.mxu0 0.0
    %1165 = vmatpush1.xpose.msra.mxu0 0.0
    %1166 = vmatprep.subr.mxu0 0.0
    %1167 = vmatpush1.xpose.msra.mxu0 0.0
    %1168 = vmatprep.subr.mxu0 0.0
    %1169 = vmatpush1.xpose.msra.mxu0 0.0
    %1170 = vmatprep.subr.mxu0 0.0
    %1171 = vmatpush1.xpose.msra.mxu0 0.0
    %1172 = vmatprep.subr.mxu0 0.0
    %1173 = vmatpush1.xpose.msra.mxu0 0.0
    %1174 = vmatprep.subr.mxu0 0.0
    %1175 = vmatpush1.xpose.msra.mxu0 0.0
    %1176 = vmatprep.subr.mxu0 0.0
    %1177 = vmatpush1.xpose.msra.mxu0 0.0
    %1178 = vmatprep.subr.mxu0 0.0
    %1179 = vmatpush1.xpose.msra.mxu0 0.0
    %1180 = vmatprep.subr.mxu0 0.0
    %1181 = vmatpush1.xpose.msra.mxu0 0.0
    %1182 = vmatprep.subr.mxu0 0.0
    %1183 = vmatpush1.xpose.msra.mxu0 0.0
    %1184 = vmatprep.subr.mxu0 0.0
    %1185 = vmatpush1.xpose.msra.mxu0 0.0
    %1186 = vmatprep.subr.mxu0 0.0
    %1187 = vmatpush1.xpose.msra.mxu0 0.0
    %1188 = vmatprep.subr.mxu0 0.0
    %1189 = vmatpush1.xpose.msra.mxu0 0.0
    %1190 = vmatprep.subr.mxu0 0.0
    %1191 = vmatpush1.xpose.msra.mxu0 0.0
    %1192 = vmatprep.subr.mxu0 0.0
    %1193 = vmatpush1.xpose.msra.mxu0 0.0
    %1194 = vmatprep.subr.mxu0 0.0
    %1195 = vmatpush1.xpose.msra.mxu0 0.0
    %1196 = vmatprep.subr.mxu0 0.0
    %1197 = vmatpush1.xpose.msra.mxu0 0.0
    %1198 = vmatprep.subr.mxu0 0.0
    %1199 = vmatpush1.xpose.msra.mxu0 0.0
    %1200 = vmatprep.subr.mxu0 0.0
    %1201 = vmatpush1.xpose.msra.mxu0 0.0
    %1202 = vmatprep.subr.mxu0 0.0
    %1203 = vmatpush1.xpose.msra.mxu0 0.0
    %1204 = vmatprep.subr.mxu0 0.0
    %1205 = vmatpush1.xpose.msra.mxu0 0.0
    %1206 = vmatprep.subr.mxu0 0.0
    %1207 = vmatpush1.xpose.msra.mxu0 0.0
    %1208 = vmatprep.subr.mxu0 0.0
    %1209 = vmatpush1.xpose.msra.mxu0 0.0
    %1210 = vmatprep.mubr.f32.mxu0 0.0
    %1211 = vmatmul.mubr.f32.gmra.mrb[0].mxu0 %v1139
    %v1212 = vpop.f32.mrb[0].mxu0
    %v1213 = vadd.f32 0.0, %v1212
    %v1214 = vpop.f32.mrb[0].mxu0
    %1215 = vdwg.mxu0
    %v1216 = vsub.f32 1.0, %v1213
    %vm1217 = vcmask 64512
    %v1218 = vsel %vm1217, %v1216, 0.0
    %1219 = vadd.xlane.f32.xlu0 %v1218
    %v1220 = vpop.xlane.xlu0 %1219
    %v1221 = vrot.slane %v1220, 4
    %v1222 = vadd.f32 %v1220, %v1221
    %v1223 = vrot.slane %v1222, 2
    %v1224 = vadd.f32 %v1222, %v1223
    %v1225 = vrot.slane %v1224, 1
    %v1226 = vadd.f32 %v1224, %v1225
    %s1227 = vtos %v1226
    %v1228 = vrcp.pop 64.0
    %s1229 = vtos %v1228
    %s1230 = smul.f32 %s1227, %s1229
    %v1231 = vstv %s1230
    %v1232 = vsub.f32 %v1216, %v1231
    %v1233 = vmul.f32 %v1232, %v1232
    %v1234 = vsel %vm1217, %v1233, 0.0
    %1235 = vadd.xlane.f32.xlu0 %v1234
    %v1236 = vpop.xlane.xlu0 %1235
    %v1237 = vrot.slane %v1236, 4
    %v1238 = vadd.f32 %v1236, %v1237
    %v1239 = vrot.slane %v1238, 2
    %v1240 = vadd.f32 %v1238, %v1239
    %v1241 = vrot.slane %v1240, 1
    %v1242 = vadd.f32 %v1240, %v1241
    %s1243 = vtos %v1242
    %v1244 = vrcp.pop 63.0
    %s1245 = vtos %v1244
    %s1246 = smul.f32 %s1243, %s1245
    %v1247 = vstv %s1246
    %v1248 = vrsqrt.pop %v1247
    %s1249 = vtos %v1248
    %v1250 = vstv %s1249
    %v1251 = vmul.f32 %v1232, %v1250
    %1252 = vst.msk [vmem:[#allocation9] sm:$0xff] %vm1217, %v1251
    %v1253 = vsel %vm1217, %v1251, inf
    %1254 = vmin.xlane.f32.xlu0 %v1253
    %v1255 = vpop.xlane.xlu0 %1254
    %v1256 = vsub.f32 %v1251, %v1255
    %v1257 = vmul.f32 %v1256, -1.0
    %v1258 = vmul.f32 %v1257, 1.442695
    %v1259 = vpow.pop %v1258
    %v1260 = vsel %vm1217, %v1259, 0.0
    %1261 = vadd.xlane.f32.xlu0 %v1260
    %v1262 = vpop.xlane.xlu0 %1261
    %v1263 = vrcp.pop %v1262
    %v1264 = vmul.f32 %v1259, %v1263
    %v1265 = vmul.f32 %v1264, 0.125
    %v1266 = vsel %vm1217, %v1265, 0.0
    %v1267 = vrot.slane %v1266, 4
    %v1268 = vadd.f32 %v1266, %v1267
    %v1269 = vrot.slane %v1268, 2
    %v1270 = vadd.f32 %v1268, %v1269
    %v1271 = vrot.slane %v1270, 1
    %v1272 = vadd.f32 %v1270, %v1271
    %v1273 = vsub.f32 %v1272, 0.125
    %v1274 = vand.u32 2147483647, %v1273
    %v1275 = vsel %vm1217, %v1274, -inf
    %1276 = vmax.xlane.f32.xlu0 %v1275
    %v1277 = vpop.xlane.xlu0 %1276
    %s1278 = vtos %v1277
    %p1279 = scmp.le.f32.partialorder %s1278, 1e-06
    %s1280 = scalar_select %p1279, 1, 0
    %s1281 = scvt.s32.f32 %s1280
    %v1282 = vstv %s1281
    %v1283 = vmul.f32 %v1282, %v1265
    %s1284 = ssub.f32 1.0, %s1281
    %v1285 = vrcp.pop %v1272
    %v1286 = vmul.f32 %v1265, %v1285
    %v1287 = vmul.f32 %v1286, 0.125
    %v1288 = vstv %s1284
    %v1289 = vmul.f32 %v1288, %v1287
    %v1290 = vadd.f32 %v1283, %v1289
    %v1291 = vmul.f32 %v1259, 0.0
    %v1292 = vadd.f32 %v1291, %v1290
    %s1293 = smax.f32 %s1281, 0.0
    %v1294 = vsel %vm1217, %v1292, 0.0
    %1295 = vadd.xlane.f32.xlu0 %v1294
    %v1296 = vpop.xlane.xlu0 %1295
    %v1297 = vrcp.pop %v1296
    %v1298 = vmul.f32 %v1292, %v1297
    %v1299 = vmul.f32 %v1298, 0.125
    %v1300 = vsel %vm1217, %v1299, 0.0
    %v1301 = vrot.slane %v1300, 4
    %v1302 = vadd.f32 %v1300, %v1301
    %v1303 = vrot.slane %v1302, 2
    %v1304 = vadd.f32 %v1302, %v1303
    %v1305 = vrot.slane %v1304, 1
    %v1306 = vadd.f32 %v1304, %v1305
    %v1307 = vsub.f32 %v1306, 0.125
    %v1308 = vand.u32 2147483647, %v1307
    %v1309 = vsel %vm1217, %v1308, -inf
    %1310 = vmax.xlane.f32.xlu0 %v1309
    %v1311 = vpop.xlane.xlu0 %1310
    %s1312 = vtos %v1311
    %p1313 = scmp.le.f32.partialorder %s1312, 1e-06
    %s1314 = scalar_select %p1313, 1, 0
    %s1315 = scvt.s32.f32 %s1314
    %v1316 = vstv %s1315
    %v1317 = vmul.f32 %v1316, %v1299
    %s1318 = ssub.f32 1.0, %s1315
    %v1319 = vrcp.pop %v1306
    %v1320 = vmul.f32 %v1299, %v1319
    %v1321 = vmul.f32 %v1320, 0.125
    %v1322 = vstv %s1318
    %v1323 = vmul.f32 %v1322, %v1321
    %v1324 = vadd.f32 %v1317, %v1323
    %v1325 = vstv %s1293
    %v1326 = vmul.f32 %v1325, %v1292
    %s1327 = ssub.f32 1.0, %s1293
    %v1328 = vstv %s1327
    %v1329 = vmul.f32 %v1328, %v1324
    %v1330 = vadd.f32 %v1326, %v1329
    %s1331 = smax.f32 %s1293, %s1315
    %v1332 = vsel %vm1217, %v1330, 0.0
    %1333 = vadd.xlane.f32.xlu0 %v1332
    %v1334 = vpop.xlane.xlu0 %1333
    %v1335 = vrcp.pop %v1334
    %v1336 = vmul.f32 %v1330, %v1335
    %v1337 = vmul.f32 %v1336, 0.125
    %v1338 = vsel %vm1217, %v1337, 0.0
    %v1339 = vrot.slane %v1338, 4
    %v1340 = vadd.f32 %v1338, %v1339
    %v1341 = vrot.slane %v1340, 2
    %v1342 = vadd.f32 %v1340, %v1341
    %v1343 = vrot.slane %v1342, 1
    %v1344 = vadd.f32 %v1342, %v1343
    %v1345 = vsub.f32 %v1344, 0.125
    %v1346 = vand.u32 2147483647, %v1345
    %v1347 = vsel %vm1217, %v1346, -inf
    %1348 = vmax.xlane.f32.xlu0 %v1347
    %v1349 = vpop.xlane.xlu0 %1348
    %s1350 = vtos %v1349
    %p1351 = scmp.le.f32.partialorder %s1350, 1e-06
    %s1352 = scalar_select %p1351, 1, 0
    %s1353 = scvt.s32.f32 %s1352
    %v1354 = vstv %s1353
    %v1355 = vmul.f32 %v1354, %v1337
    %s1356 = ssub.f32 1.0, %s1353
    %v1357 = vrcp.pop %v1344
    %v1358 = vmul.f32 %v1337, %v1357
    %v1359 = vmul.f32 %v1358, 0.125
    %v1360 = vstv %s1356
    %v1361 = vmul.f32 %v1360, %v1359
    %v1362 = vadd.f32 %v1355, %v1361
    %v1363 = vstv %s1331
    %v1364 = vmul.f32 %v1363, %v1330
    %s1365 = ssub.f32 1.0, %s1331
    %v1366 = vstv %s1365
    %v1367 = vmul.f32 %v1366, %v1362
    %v1368 = vadd.f32 %v1364, %v1367
    %s1369 = smax.f32 %s1331, %s1353
    %v1370 = vsel %vm1217, %v1368, 0.0
    %1371 = vadd.xlane.f32.xlu0 %v1370
    %v1372 = vpop.xlane.xlu0 %1371
    %v1373 = vrcp.pop %v1372
    %v1374 = vmul.f32 %v1368, %v1373
    %v1375 = vmul.f32 %v1374, 0.125
    %v1376 = vsel %vm1217, %v1375, 0.0
    %v1377 = vrot.slane %v1376, 4
    %v1378 = vadd.f32 %v1376, %v1377
    %v1379 = vrot.slane %v1378, 2
    %v1380 = vadd.f32 %v1378, %v1379
    %v1381 = vrot.slane %v1380, 1
    %v1382 = vadd.f32 %v1380, %v1381
    %v1383 = vsub.f32 %v1382, 0.125
    %v1384 = vand.u32 2147483647, %v1383
    %v1385 = vsel %vm1217, %v1384, -inf
    %1386 = vmax.xlane.f32.xlu0 %v1385
    %v1387 = vpop.xlane.xlu0 %1386
    %s1388 = vtos %v1387
    %p1389 = scmp.le.f32.partialorder %s1388, 1e-06
    %s1390 = scalar_select %p1389, 1, 0
    %s1391 = scvt.s32.f32 %s1390
    %v1392 = vstv %s1391
    %v1393 = vmul.f32 %v1392, %v1375
    %s1394 = ssub.f32 1.0, %s1391
    %v1395 = vrcp.pop %v1382
    %v1396 = vmul.f32 %v1375, %v1395
    %v1397 = vmul.f32 %v1396, 0.125
    %v1398 = vstv %s1394
    %v1399 = vmul.f32 %v1398, %v1397
    %v1400 = vadd.f32 %v1393, %v1399
    %v1401 = vstv %s1369
    %v1402 = vmul.f32 %v1401, %v1368
    %s1403 = ssub.f32 1.0, %s1369
    %v1404 = vstv %s1403
    %v1405 = vmul.f32 %v1404, %v1400
    %v1406 = vadd.f32 %v1402, %v1405
    %s1407 = smax.f32 %s1369, %s1391
    %v1408 = vsel %vm1217, %v1406, 0.0
    %1409 = vadd.xlane.f32.xlu0 %v1408
    %v1410 = vpop.xlane.xlu0 %1409
    %v1411 = vrcp.pop %v1410
    %v1412 = vmul.f32 %v1406, %v1411
    %v1413 = vmul.f32 %v1412, 0.125
    %v1414 = vsel %vm1217, %v1413, 0.0
    %v1415 = vrot.slane %v1414, 4
    %v1416 = vadd.f32 %v1414, %v1415
    %v1417 = vrot.slane %v1416, 2
    %v1418 = vadd.f32 %v1416, %v1417
    %v1419 = vrot.slane %v1418, 1
    %v1420 = vadd.f32 %v1418, %v1419
    %v1421 = vsub.f32 %v1420, 0.125
    %v1422 = vand.u32 2147483647, %v1421
    %v1423 = vsel %vm1217, %v1422, -inf
    %1424 = vmax.xlane.f32.xlu0 %v1423
    %v1425 = vpop.xlane.xlu0 %1424
    %s1426 = vtos %v1425
    %p1427 = scmp.le.f32.partialorder %s1426, 1e-06
    %s1428 = scalar_select %p1427, 1, 0
    %s1429 = scvt.s32.f32 %s1428
    %v1430 = vstv %s1429
    %v1431 = vmul.f32 %v1430, %v1413
    %s1432 = ssub.f32 1.0, %s1429
    %v1433 = vrcp.pop %v1420
    %v1434 = vmul.f32 %v1413, %v1433
    %v1435 = vmul.f32 %v1434, 0.125
    %v1436 = vstv %s1432
    %v1437 = vmul.f32 %v1436, %v1435
    %v1438 = vadd.f32 %v1431, %v1437
    %v1439 = vstv %s1407
    %v1440 = vmul.f32 %v1439, %v1406
    %s1441 = ssub.f32 1.0, %s1407
    %v1442 = vstv %s1441
    %v1443 = vmul.f32 %v1442, %v1438
    %v1444 = vadd.f32 %v1440, %v1443
    %s1445 = smax.f32 %s1407, %s1429
    %v1446 = vsel %vm1217, %v1444, 0.0
    %1447 = vadd.xlane.f32.xlu0 %v1446
    %v1448 = vpop.xlane.xlu0 %1447
    %v1449 = vrcp.pop %v1448
    %v1450 = vmul.f32 %v1444, %v1449
    %v1451 = vmul.f32 %v1450, 0.125
    %v1452 = vsel %vm1217, %v1451, 0.0
    %v1453 = vrot.slane %v1452, 4
    %v1454 = vadd.f32 %v1452, %v1453
    %v1455 = vrot.slane %v1454, 2
    %v1456 = vadd.f32 %v1454, %v1455
    %v1457 = vrot.slane %v1456, 1
    %v1458 = vadd.f32 %v1456, %v1457
    %v1459 = vsub.f32 %v1458, 0.125
    %v1460 = vand.u32 2147483647, %v1459
    %v1461 = vsel %vm1217, %v1460, -inf
    %1462 = vmax.xlane.f32.xlu0 %v1461
    %v1463 = vpop.xlane.xlu0 %1462
    %s1464 = vtos %v1463
    %p1465 = scmp.le.f32.partialorder %s1464, 1e-06
    %s1466 = scalar_select %p1465, 1, 0
    %s1467 = scvt.s32.f32 %s1466
    %v1468 = vstv %s1467
    %v1469 = vmul.f32 %v1468, %v1451
    %s1470 = ssub.f32 1.0, %s1467
    %v1471 = vrcp.pop %v1458
    %v1472 = vmul.f32 %v1451, %v1471
    %v1473 = vmul.f32 %v1472, 0.125
    %v1474 = vstv %s1470
    %v1475 = vmul.f32 %v1474, %v1473
    %v1476 = vadd.f32 %v1469, %v1475
    %v1477 = vstv %s1445
    %v1478 = vmul.f32 %v1477, %v1444
    %s1479 = ssub.f32 1.0, %s1445
    %v1480 = vstv %s1479
    %v1481 = vmul.f32 %v1480, %v1476
    %v1482 = vadd.f32 %v1478, %v1481
    %s1483 = smax.f32 %s1445, %s1467
    %v1484 = vsel %vm1217, %v1482, 0.0
    %1485 = vadd.xlane.f32.xlu0 %v1484
    %v1486 = vpop.xlane.xlu0 %1485
    %v1487 = vrcp.pop %v1486
    %v1488 = vmul.f32 %v1482, %v1487
    %v1489 = vmul.f32 %v1488, 0.125
    %v1490 = vsel %vm1217, %v1489, 0.0
    %v1491 = vrot.slane %v1490, 4
    %v1492 = vadd.f32 %v1490, %v1491
    %v1493 = vrot.slane %v1492, 2
    %v1494 = vadd.f32 %v1492, %v1493
    %v1495 = vrot.slane %v1494, 1
    %v1496 = vadd.f32 %v1494, %v1495
    %v1497 = vsub.f32 %v1496, 0.125
    %v1498 = vand.u32 2147483647, %v1497
    %v1499 = vsel %vm1217, %v1498, -inf
    %1500 = vmax.xlane.f32.xlu0 %v1499
    %v1501 = vpop.xlane.xlu0 %1500
    %s1502 = vtos %v1501
    %p1503 = scmp.le.f32.partialorder %s1502, 1e-06
    %s1504 = scalar_select %p1503, 1, 0
    %s1505 = scvt.s32.f32 %s1504
    %v1506 = vstv %s1505
    %v1507 = vmul.f32 %v1506, %v1489
    %s1508 = ssub.f32 1.0, %s1505
    %v1509 = vrcp.pop %v1496
    %v1510 = vmul.f32 %v1489, %v1509
    %v1511 = vmul.f32 %v1510, 0.125
    %v1512 = vstv %s1508
    %v1513 = vmul.f32 %v1512, %v1511
    %v1514 = vadd.f32 %v1507, %v1513
    %v1515 = vstv %s1483
    %v1516 = vmul.f32 %v1515, %v1482
    %s1517 = ssub.f32 1.0, %s1483
    %v1518 = vstv %s1517
    %v1519 = vmul.f32 %v1518, %v1514
    %v1520 = vadd.f32 %v1516, %v1519
    %s1521 = smax.f32 %s1483, %s1505
    %v1522 = vsel %vm1217, %v1520, 0.0
    %1523 = vadd.xlane.f32.xlu0 %v1522
    %v1524 = vpop.xlane.xlu0 %1523
    %v1525 = vrcp.pop %v1524
    %v1526 = vmul.f32 %v1520, %v1525
    %v1527 = vmul.f32 %v1526, 0.125
    %v1528 = vsel %vm1217, %v1527, 0.0
    %v1529 = vrot.slane %v1528, 4
    %v1530 = vadd.f32 %v1528, %v1529
    %v1531 = vrot.slane %v1530, 2
    %v1532 = vadd.f32 %v1530, %v1531
    %v1533 = vrot.slane %v1532, 1
    %v1534 = vadd.f32 %v1532, %v1533
    %v1535 = vsub.f32 %v1534, 0.125
    %v1536 = vand.u32 2147483647, %v1535
    %v1537 = vsel %vm1217, %v1536, -inf
    %1538 = vmax.xlane.f32.xlu0 %v1537
    %v1539 = vpop.xlane.xlu0 %1538
    %s1540 = vtos %v1539
    %p1541 = scmp.le.f32.partialorder %s1540, 1e-06
    %s1542 = scalar_select %p1541, 1, 0
    %s1543 = scvt.s32.f32 %s1542
    %v1544 = vstv %s1543
    %v1545 = vmul.f32 %v1544, %v1527
    %s1546 = ssub.f32 1.0, %s1543
    %v1547 = vrcp.pop %v1534
    %v1548 = vmul.f32 %v1527, %v1547
    %v1549 = vmul.f32 %v1548, 0.125
    %v1550 = vstv %s1546
    %v1551 = vmul.f32 %v1550, %v1549
    %v1552 = vadd.f32 %v1545, %v1551
    %v1553 = vstv %s1521
    %v1554 = vmul.f32 %v1553, %v1520
    %s1555 = ssub.f32 1.0, %s1521
    %v1556 = vstv %s1555
    %v1557 = vmul.f32 %v1556, %v1552
    %v1558 = vadd.f32 %v1554, %v1557
    %s1559 = smax.f32 %s1521, %s1543
    %v1560 = vsel %vm1217, %v1558, 0.0
    %1561 = vadd.xlane.f32.xlu0 %v1560
    %v1562 = vpop.xlane.xlu0 %1561
    %v1563 = vrcp.pop %v1562
    %v1564 = vmul.f32 %v1558, %v1563
    %v1565 = vmul.f32 %v1564, 0.125
    %v1566 = vsel %vm1217, %v1565, 0.0
    %v1567 = vrot.slane %v1566, 4
    %v1568 = vadd.f32 %v1566, %v1567
    %v1569 = vrot.slane %v1568, 2
    %v1570 = vadd.f32 %v1568, %v1569
    %v1571 = vrot.slane %v1570, 1
    %v1572 = vadd.f32 %v1570, %v1571
    %v1573 = vsub.f32 %v1572, 0.125
    %v1574 = vand.u32 2147483647, %v1573
    %v1575 = vsel %vm1217, %v1574, -inf
    %1576 = vmax.xlane.f32.xlu0 %v1575
    %v1577 = vpop.xlane.xlu0 %1576
    %s1578 = vtos %v1577
    %p1579 = scmp.le.f32.partialorder %s1578, 1e-06
    %s1580 = scalar_select %p1579, 1, 0
    %s1581 = scvt.s32.f32 %s1580
    %v1582 = vstv %s1581
    %v1583 = vmul.f32 %v1582, %v1565
    %s1584 = ssub.f32 1.0, %s1581
    %v1585 = vrcp.pop %v1572
    %v1586 = vmul.f32 %v1565, %v1585
    %v1587 = vmul.f32 %v1586, 0.125
    %v1588 = vstv %s1584
    %v1589 = vmul.f32 %v1588, %v1587
    %v1590 = vadd.f32 %v1583, %v1589
    %v1591 = vstv %s1559
    %v1592 = vmul.f32 %v1591, %v1558
    %s1593 = ssub.f32 1.0, %s1559
    %v1594 = vstv %s1593
    %v1595 = vmul.f32 %v1594, %v1590
    %v1596 = vadd.f32 %v1592, %v1595
    %s1597 = smax.f32 %s1559, %s1581
    %v1598 = vsel %vm1217, %v1596, 0.0
    %1599 = vadd.xlane.f32.xlu0 %v1598
    %v1600 = vpop.xlane.xlu0 %1599
    %v1601 = vrcp.pop %v1600
    %v1602 = vmul.f32 %v1596, %v1601
    %v1603 = vmul.f32 %v1602, 0.125
    %v1604 = vsel %vm1217, %v1603, 0.0
    %v1605 = vrot.slane %v1604, 4
    %v1606 = vadd.f32 %v1604, %v1605
    %v1607 = vrot.slane %v1606, 2
    %v1608 = vadd.f32 %v1606, %v1607
    %v1609 = vrot.slane %v1608, 1
    %v1610 = vadd.f32 %v1608, %v1609
    %v1611 = vsub.f32 %v1610, 0.125
    %v1612 = vand.u32 2147483647, %v1611
    %v1613 = vsel %vm1217, %v1612, -inf
    %1614 = vmax.xlane.f32.xlu0 %v1613
    %v1615 = vpop.xlane.xlu0 %1614
    %s1616 = vtos %v1615
    %p1617 = scmp.le.f32.partialorder %s1616, 1e-06
    %s1618 = scalar_select %p1617, 1, 0
    %s1619 = scvt.s32.f32 %s1618
    %v1620 = vstv %s1619
    %v1621 = vmul.f32 %v1620, %v1603
    %s1622 = ssub.f32 1.0, %s1619
    %v1623 = vrcp.pop %v1610
    %v1624 = vmul.f32 %v1603, %v1623
    %v1625 = vmul.f32 %v1624, 0.125
    %v1626 = vstv %s1622
    %v1627 = vmul.f32 %v1626, %v1625
    %v1628 = vadd.f32 %v1621, %v1627
    %v1629 = vstv %s1597
    %v1630 = vmul.f32 %v1629, %v1596
    %s1631 = ssub.f32 1.0, %s1597
    %v1632 = vstv %s1631
    %v1633 = vmul.f32 %v1632, %v1628
    %v1634 = vadd.f32 %v1630, %v1633
    %s1635 = smax.f32 %s1597, %s1619
    %v1636 = vsel %vm1217, %v1634, 0.0
    %1637 = vadd.xlane.f32.xlu0 %v1636
    %v1638 = vpop.xlane.xlu0 %1637
    %v1639 = vrcp.pop %v1638
    %v1640 = vmul.f32 %v1634, %v1639
    %v1641 = vmul.f32 %v1640, 0.125
    %v1642 = vsel %vm1217, %v1641, 0.0
    %v1643 = vrot.slane %v1642, 4
    %v1644 = vadd.f32 %v1642, %v1643
    %v1645 = vrot.slane %v1644, 2
    %v1646 = vadd.f32 %v1644, %v1645
    %v1647 = vrot.slane %v1646, 1
    %v1648 = vadd.f32 %v1646, %v1647
    %v1649 = vsub.f32 %v1648, 0.125
    %v1650 = vand.u32 2147483647, %v1649
    %v1651 = vsel %vm1217, %v1650, -inf
    %1652 = vmax.xlane.f32.xlu0 %v1651
    %v1653 = vpop.xlane.xlu0 %1652
    %s1654 = vtos %v1653
    %p1655 = scmp.le.f32.partialorder %s1654, 1e-06
    %s1656 = scalar_select %p1655, 1, 0
    %s1657 = scvt.s32.f32 %s1656
    %v1658 = vstv %s1657
    %v1659 = vmul.f32 %v1658, %v1641
    %s1660 = ssub.f32 1.0, %s1657
    %v1661 = vrcp.pop %v1648
    %v1662 = vmul.f32 %v1641, %v1661
    %v1663 = vmul.f32 %v1662, 0.125
    %v1664 = vstv %s1660
    %v1665 = vmul.f32 %v1664, %v1663
    %v1666 = vadd.f32 %v1659, %v1665
    %v1667 = vstv %s1635
    %v1668 = vmul.f32 %v1667, %v1634
    %s1669 = ssub.f32 1.0, %s1635
    %v1670 = vstv %s1669
    %v1671 = vmul.f32 %v1670, %v1666
    %v1672 = vadd.f32 %v1668, %v1671
    %s1673 = smax.f32 %s1635, %s1657
    %v1674 = vsel %vm1217, %v1672, 0.0
    %1675 = vadd.xlane.f32.xlu0 %v1674
    %v1676 = vpop.xlane.xlu0 %1675
    %v1677 = vrcp.pop %v1676
    %v1678 = vmul.f32 %v1672, %v1677
    %v1679 = vmul.f32 %v1678, 0.125
    %v1680 = vsel %vm1217, %v1679, 0.0
    %v1681 = vrot.slane %v1680, 4
    %v1682 = vadd.f32 %v1680, %v1681
    %v1683 = vrot.slane %v1682, 2
    %v1684 = vadd.f32 %v1682, %v1683
    %v1685 = vrot.slane %v1684, 1
    %v1686 = vadd.f32 %v1684, %v1685
    %v1687 = vsub.f32 %v1686, 0.125
    %v1688 = vand.u32 2147483647, %v1687
    %v1689 = vsel %vm1217, %v1688, -inf
    %1690 = vmax.xlane.f32.xlu0 %v1689
    %v1691 = vpop.xlane.xlu0 %1690
    %s1692 = vtos %v1691
    %p1693 = scmp.le.f32.partialorder %s1692, 1e-06
    %s1694 = scalar_select %p1693, 1, 0
    %s1695 = scvt.s32.f32 %s1694
    %v1696 = vstv %s1695
    %v1697 = vmul.f32 %v1696, %v1679
    %s1698 = ssub.f32 1.0, %s1695
    %v1699 = vrcp.pop %v1686
    %v1700 = vmul.f32 %v1679, %v1699
    %v1701 = vmul.f32 %v1700, 0.125
    %v1702 = vstv %s1698
    %v1703 = vmul.f32 %v1702, %v1701
    %v1704 = vadd.f32 %v1697, %v1703
    %v1705 = vstv %s1673
    %v1706 = vmul.f32 %v1705, %v1672
    %s1707 = ssub.f32 1.0, %s1673
    %v1708 = vstv %s1707
    %v1709 = vmul.f32 %v1708, %v1704
    %v1710 = vadd.f32 %v1706, %v1709
    %s1711 = smax.f32 %s1673, %s1695
    %v1712 = vsel %vm1217, %v1710, 0.0
    %1713 = vadd.xlane.f32.xlu0 %v1712
    %v1714 = vpop.xlane.xlu0 %1713
    %v1715 = vrcp.pop %v1714
    %v1716 = vmul.f32 %v1710, %v1715
    %v1717 = vmul.f32 %v1716, 0.125
    %v1718 = vsel %vm1217, %v1717, 0.0
    %v1719 = vrot.slane %v1718, 4
    %v1720 = vadd.f32 %v1718, %v1719
    %v1721 = vrot.slane %v1720, 2
    %v1722 = vadd.f32 %v1720, %v1721
    %v1723 = vrot.slane %v1722, 1
    %v1724 = vadd.f32 %v1722, %v1723
    %v1725 = vsub.f32 %v1724, 0.125
    %v1726 = vand.u32 2147483647, %v1725
    %v1727 = vsel %vm1217, %v1726, -inf
    %1728 = vmax.xlane.f32.xlu0 %v1727
    %v1729 = vpop.xlane.xlu0 %1728
    %s1730 = vtos %v1729
    %p1731 = scmp.le.f32.partialorder %s1730, 1e-06
    %s1732 = scalar_select %p1731, 1, 0
    %s1733 = scvt.s32.f32 %s1732
    %v1734 = vstv %s1733
    %v1735 = vmul.f32 %v1734, %v1717
    %s1736 = ssub.f32 1.0, %s1733
    %v1737 = vrcp.pop %v1724
    %v1738 = vmul.f32 %v1717, %v1737
    %v1739 = vmul.f32 %v1738, 0.125
    %v1740 = vstv %s1736
    %v1741 = vmul.f32 %v1740, %v1739
    %v1742 = vadd.f32 %v1735, %v1741
    %v1743 = vstv %s1711
    %v1744 = vmul.f32 %v1743, %v1710
    %s1745 = ssub.f32 1.0, %s1711
    %v1746 = vstv %s1745
    %v1747 = vmul.f32 %v1746, %v1742
    %v1748 = vadd.f32 %v1744, %v1747
    %s1749 = smax.f32 %s1711, %s1733
    %v1750 = vsel %vm1217, %v1748, 0.0
    %1751 = vadd.xlane.f32.xlu0 %v1750
    %v1752 = vpop.xlane.xlu0 %1751
    %v1753 = vrcp.pop %v1752
    %v1754 = vmul.f32 %v1748, %v1753
    %v1755 = vmul.f32 %v1754, 0.125
    %v1756 = vsel %vm1217, %v1755, 0.0
    %v1757 = vrot.slane %v1756, 4
    %v1758 = vadd.f32 %v1756, %v1757
    %v1759 = vrot.slane %v1758, 2
    %v1760 = vadd.f32 %v1758, %v1759
    %v1761 = vrot.slane %v1760, 1
    %v1762 = vadd.f32 %v1760, %v1761
    %v1763 = vsub.f32 %v1762, 0.125
    %v1764 = vand.u32 2147483647, %v1763
    %v1765 = vsel %vm1217, %v1764, -inf
    %1766 = vmax.xlane.f32.xlu0 %v1765
    %v1767 = vpop.xlane.xlu0 %1766
    %s1768 = vtos %v1767
    %p1769 = scmp.le.f32.partialorder %s1768, 1e-06
    %s1770 = scalar_select %p1769, 1, 0
    %s1771 = scvt.s32.f32 %s1770
    %v1772 = vstv %s1771
    %v1773 = vmul.f32 %v1772, %v1755
    %s1774 = ssub.f32 1.0, %s1771
    %v1775 = vrcp.pop %v1762
    %v1776 = vmul.f32 %v1755, %v1775
    %v1777 = vmul.f32 %v1776, 0.125
    %v1778 = vstv %s1774
    %v1779 = vmul.f32 %v1778, %v1777
    %v1780 = vadd.f32 %v1773, %v1779
    %v1781 = vstv %s1749
    %v1782 = vmul.f32 %v1781, %v1748
    %s1783 = ssub.f32 1.0, %s1749
    %v1784 = vstv %s1783
    %v1785 = vmul.f32 %v1784, %v1780
    %v1786 = vadd.f32 %v1782, %v1785
    %s1787 = smax.f32 %s1749, %s1771
    %v1788 = vsel %vm1217, %v1786, 0.0
    %1789 = vadd.xlane.f32.xlu0 %v1788
    %v1790 = vpop.xlane.xlu0 %1789
    %v1791 = vrcp.pop %v1790
    %v1792 = vmul.f32 %v1786, %v1791
    %v1793 = vmul.f32 %v1792, 0.125
    %v1794 = vsel %vm1217, %v1793, 0.0
    %v1795 = vrot.slane %v1794, 4
    %v1796 = vadd.f32 %v1794, %v1795
    %v1797 = vrot.slane %v1796, 2
    %v1798 = vadd.f32 %v1796, %v1797
    %v1799 = vrot.slane %v1798, 1
    %v1800 = vadd.f32 %v1798, %v1799
    %v1801 = vsub.f32 %v1800, 0.125
    %v1802 = vand.u32 2147483647, %v1801
    %v1803 = vsel %vm1217, %v1802, -inf
    %1804 = vmax.xlane.f32.xlu0 %v1803
    %v1805 = vpop.xlane.xlu0 %1804
    %s1806 = vtos %v1805
    %p1807 = scmp.le.f32.partialorder %s1806, 1e-06
    %s1808 = scalar_select %p1807, 1, 0
    %s1809 = scvt.s32.f32 %s1808
    %v1810 = vstv %s1809
    %v1811 = vmul.f32 %v1810, %v1793
    %s1812 = ssub.f32 1.0, %s1809
    %v1813 = vrcp.pop %v1800
    %v1814 = vmul.f32 %v1793, %v1813
    %v1815 = vmul.f32 %v1814, 0.125
    %v1816 = vstv %s1812
    %v1817 = vmul.f32 %v1816, %v1815
    %v1818 = vadd.f32 %v1811, %v1817
    %v1819 = vstv %s1787
    %v1820 = vmul.f32 %v1819, %v1786
    %s1821 = ssub.f32 1.0, %s1787
    %v1822 = vstv %s1821
    %v1823 = vmul.f32 %v1822, %v1818
    %v1824 = vadd.f32 %v1820, %v1823
    %s1825 = smax.f32 %s1787, %s1809
    %v1826 = vsel %vm1217, %v1824, 0.0
    %1827 = vadd.xlane.f32.xlu0 %v1826
    %v1828 = vpop.xlane.xlu0 %1827
    %v1829 = vrcp.pop %v1828
    %v1830 = vmul.f32 %v1824, %v1829
    %v1831 = vmul.f32 %v1830, 0.125
    %v1832 = vsel %vm1217, %v1831, 0.0
    %v1833 = vrot.slane %v1832, 4
    %v1834 = vadd.f32 %v1832, %v1833
    %v1835 = vrot.slane %v1834, 2
    %v1836 = vadd.f32 %v1834, %v1835
    %v1837 = vrot.slane %v1836, 1
    %v1838 = vadd.f32 %v1836, %v1837
    %v1839 = vsub.f32 %v1838, 0.125
    %v1840 = vand.u32 2147483647, %v1839
    %v1841 = vsel %vm1217, %v1840, -inf
    %1842 = vmax.xlane.f32.xlu0 %v1841
    %v1843 = vpop.xlane.xlu0 %1842
    %s1844 = vtos %v1843
    %p1845 = scmp.le.f32.partialorder %s1844, 1e-06
    %s1846 = scalar_select %p1845, 1, 0
    %s1847 = scvt.s32.f32 %s1846
    %v1848 = vstv %s1847
    %v1849 = vmul.f32 %v1848, %v1831
    %s1850 = ssub.f32 1.0, %s1847
    %v1851 = vrcp.pop %v1838
    %v1852 = vmul.f32 %v1831, %v1851
    %v1853 = vmul.f32 %v1852, 0.125
    %v1854 = vstv %s1850
    %v1855 = vmul.f32 %v1854, %v1853
    %v1856 = vadd.f32 %v1849, %v1855
    %v1857 = vstv %s1825
    %v1858 = vmul.f32 %v1857, %v1824
    %s1859 = ssub.f32 1.0, %s1825
    %v1860 = vstv %s1859
    %v1861 = vmul.f32 %v1860, %v1856
    %v1862 = vadd.f32 %v1858, %v1861
    %s1863 = smax.f32 %s1825, %s1847
    %v1864 = vsel %vm1217, %v1862, 0.0
    %1865 = vadd.xlane.f32.xlu0 %v1864
    %v1866 = vpop.xlane.xlu0 %1865
    %v1867 = vrcp.pop %v1866
    %v1868 = vmul.f32 %v1862, %v1867
    %v1869 = vmul.f32 %v1868, 0.125
    %v1870 = vsel %vm1217, %v1869, 0.0
    %v1871 = vrot.slane %v1870, 4
    %v1872 = vadd.f32 %v1870, %v1871
    %v1873 = vrot.slane %v1872, 2
    %v1874 = vadd.f32 %v1872, %v1873
    %v1875 = vrot.slane %v1874, 1
    %v1876 = vadd.f32 %v1874, %v1875
    %v1877 = vsub.f32 %v1876, 0.125
    %v1878 = vand.u32 2147483647, %v1877
    %v1879 = vsel %vm1217, %v1878, -inf
    %1880 = vmax.xlane.f32.xlu0 %v1879
    %v1881 = vpop.xlane.xlu0 %1880
    %s1882 = vtos %v1881
    %p1883 = scmp.le.f32.partialorder %s1882, 1e-06
    %s1884 = scalar_select %p1883, 1, 0
    %s1885 = scvt.s32.f32 %s1884
    %v1886 = vstv %s1885
    %v1887 = vmul.f32 %v1886, %v1869
    %s1888 = ssub.f32 1.0, %s1885
    %v1889 = vrcp.pop %v1876
    %v1890 = vmul.f32 %v1869, %v1889
    %v1891 = vmul.f32 %v1890, 0.125
    %v1892 = vstv %s1888
    %v1893 = vmul.f32 %v1892, %v1891
    %v1894 = vadd.f32 %v1887, %v1893
    %v1895 = vstv %s1863
    %v1896 = vmul.f32 %v1895, %v1862
    %s1897 = ssub.f32 1.0, %s1863
    %v1898 = vstv %s1897
    %v1899 = vmul.f32 %v1898, %v1894
    %v1900 = vadd.f32 %v1896, %v1899
    %s1901 = smax.f32 %s1863, %s1885
    %v1902 = vsel %vm1217, %v1900, 0.0
    %1903 = vadd.xlane.f32.xlu0 %v1902
    %v1904 = vpop.xlane.xlu0 %1903
    %v1905 = vrcp.pop %v1904
    %v1906 = vmul.f32 %v1900, %v1905
    %v1907 = vmul.f32 %v1906, 0.125
    %v1908 = vsel %vm1217, %v1907, 0.0
    %v1909 = vrot.slane %v1908, 4
    %v1910 = vadd.f32 %v1908, %v1909
    %v1911 = vrot.slane %v1910, 2
    %v1912 = vadd.f32 %v1910, %v1911
    %v1913 = vrot.slane %v1912, 1
    %v1914 = vadd.f32 %v1912, %v1913
    %v1915 = vsub.f32 %v1914, 0.125
    %v1916 = vand.u32 2147483647, %v1915
    %v1917 = vsel %vm1217, %v1916, -inf
    %1918 = vmax.xlane.f32.xlu0 %v1917
    %v1919 = vpop.xlane.xlu0 %1918
    %s1920 = vtos %v1919
    %p1921 = scmp.le.f32.partialorder %s1920, 1e-06
    %s1922 = scalar_select %p1921, 1, 0
    %s1923 = scvt.s32.f32 %s1922
    %v1924 = vstv %s1923
    %v1925 = vmul.f32 %v1924, %v1907
    %s1926 = ssub.f32 1.0, %s1923
    %v1927 = vrcp.pop %v1914
    %v1928 = vmul.f32 %v1907, %v1927
    %v1929 = vmul.f32 %v1928, 0.125
    %v1930 = vstv %s1926
    %v1931 = vmul.f32 %v1930, %v1929
    %v1932 = vadd.f32 %v1925, %v1931
    %v1933 = vstv %s1901
    %v1934 = vmul.f32 %v1933, %v1900
    %s1935 = ssub.f32 1.0, %s1901
    %v1936 = vstv %s1935
    %v1937 = vmul.f32 %v1936, %v1932
    %v1938 = vadd.f32 %v1934, %v1937
    %s1939 = smax.f32 %s1901, %s1923
    %v1940 = vsel %vm1217, %v1938, 0.0
    %1941 = vadd.xlane.f32.xlu0 %v1940
    %v1942 = vpop.xlane.xlu0 %1941
    %v1943 = vrcp.pop %v1942
    %v1944 = vmul.f32 %v1938, %v1943
    %v1945 = vmul.f32 %v1944, 0.125
    %v1946 = vsel %vm1217, %v1945, 0.0
    %v1947 = vrot.slane %v1946, 4
    %v1948 = vadd.f32 %v1946, %v1947
    %v1949 = vrot.slane %v1948, 2
    %v1950 = vadd.f32 %v1948, %v1949
    %v1951 = vrot.slane %v1950, 1
    %v1952 = vadd.f32 %v1950, %v1951
    %v1953 = vsub.f32 %v1952, 0.125
    %v1954 = vand.u32 2147483647, %v1953
    %v1955 = vsel %vm1217, %v1954, -inf
    %1956 = vmax.xlane.f32.xlu0 %v1955
    %v1957 = vpop.xlane.xlu0 %1956
    %s1958 = vtos %v1957
    %p1959 = scmp.le.f32.partialorder %s1958, 1e-06
    %s1960 = scalar_select %p1959, 1, 0
    %s1961 = scvt.s32.f32 %s1960
    %v1962 = vstv %s1961
    %v1963 = vmul.f32 %v1962, %v1945
    %s1964 = ssub.f32 1.0, %s1961
    %v1965 = vrcp.pop %v1952
    %v1966 = vmul.f32 %v1945, %v1965
    %v1967 = vmul.f32 %v1966, 0.125
    %v1968 = vstv %s1964
    %v1969 = vmul.f32 %v1968, %v1967
    %v1970 = vadd.f32 %v1963, %v1969
    %v1971 = vstv %s1939
    %v1972 = vmul.f32 %v1971, %v1938
    %s1973 = ssub.f32 1.0, %s1939
    %v1974 = vstv %s1973
    %v1975 = vmul.f32 %v1974, %v1970
    %v1976 = vadd.f32 %v1972, %v1975
    %s1977 = smax.f32 %s1939, %s1961
    %v1978 = vsel %vm1217, %v1976, 0.0
    %1979 = vadd.xlane.f32.xlu0 %v1978
    %v1980 = vpop.xlane.xlu0 %1979
    %v1981 = vrcp.pop %v1980
    %v1982 = vmul.f32 %v1976, %v1981
    %v1983 = vmul.f32 %v1982, 0.125
    %v1984 = vsel %vm1217, %v1983, 0.0
    %v1985 = vrot.slane %v1984, 4
    %v1986 = vadd.f32 %v1984, %v1985
    %v1987 = vrot.slane %v1986, 2
    %v1988 = vadd.f32 %v1986, %v1987
    %v1989 = vrot.slane %v1988, 1
    %v1990 = vadd.f32 %v1988, %v1989
    %v1991 = vsub.f32 %v1990, 0.125
    %v1992 = vand.u32 2147483647, %v1991
    %v1993 = vsel %vm1217, %v1992, -inf
    %1994 = vmax.xlane.f32.xlu0 %v1993
    %v1995 = vpop.xlane.xlu0 %1994
    %s1996 = vtos %v1995
    %p1997 = scmp.le.f32.partialorder %s1996, 1e-06
    %s1998 = scalar_select %p1997, 1, 0
    %s1999 = scvt.s32.f32 %s1998
    %v2000 = vstv %s1999
    %v2001 = vmul.f32 %v2000, %v1983
    %s2002 = ssub.f32 1.0, %s1999
    %v2003 = vrcp.pop %v1990
    %v2004 = vmul.f32 %v1983, %v2003
    %v2005 = vmul.f32 %v2004, 0.125
    %v2006 = vstv %s2002
    %v2007 = vmul.f32 %v2006, %v2005
    %v2008 = vadd.f32 %v2001, %v2007
    %v2009 = vstv %s1977
    %v2010 = vmul.f32 %v2009, %v1976
    %s2011 = ssub.f32 1.0, %s1977
    %v2012 = vstv %s2011
    %v2013 = vmul.f32 %v2012, %v2008
    %v2014 = vadd.f32 %v2010, %v2013
    %v2015 = vsel %vm1217, %v2014, 0.0
    %2016 = vadd.xlane.f32.xlu0 %v2015
    %v2017 = vpop.xlane.xlu0 %2016
    %v2018 = vrcp.pop %v2017
    %v2019 = vmul.f32 %v2014, %v2018
    %v2020 = vsel %vm1217, %v2019, 0.0
    %v2021 = vrot.slane %v2020, 4
    %v2022 = vadd.f32 %v2020, %v2021
    %v2023 = vrot.slane %v2022, 2
    %v2024 = vadd.f32 %v2022, %v2023
    %v2025 = vrot.slane %v2024, 1
    %v2026 = vadd.f32 %v2024, %v2025
    %v2027 = vrcp.pop %v2026
    %v2028 = vmul.f32 %v2019, %v2027
    %v2029 = vlaneseq
    %v2030 = vshrl.u32 %v2029, 7
    %vm2031 = vcmp.eq.s32.totalorder %v2030, %v405
    %v2032 = vsel %vm2031, 1, 0
    %v2033 = vcvt.s32.f32 %v2032
    %v2034 = vsub.f32 %v2028, %v2033
    %v2035 = vmul.f32 %v2034, %v2034
    %v2036 = vsel %vm1217, %v2035, 0.0
    %2037 = vadd.xlane.f32.xlu0 %v2036
    %v2038 = vpop.xlane.xlu0 %2037
    %v2039 = vrot.slane %v2038, 4
    %v2040 = vadd.f32 %v2038, %v2039
    %v2041 = vrot.slane %v2040, 2
    %v2042 = vadd.f32 %v2040, %v2041
    %v2043 = vrot.slane %v2042, 1
    %v2044 = vadd.f32 %v2042, %v2043
    %s2045 = vtos %v2044
    %v2046 = vstv %s2045
    %v2047 = vrsqrt.pop %v2046
    %v2048 = vmul.f32 %v2046, %v2047
    %vm2049 = vcmp.eq.f32.partialorder %v2046, inf
    %v2050 = vsel %vm2049, %v2046, %v2048
    %vm2051 = vcmp.eq.f32.partialorder %v2046, 0.0
    %v2052 = vand.u32 %v2046, 2147483648
    %v2053 = vsel %vm2051, %v2052, %v2050
    %s2054 = vtos %v2053
    %2055 = vst.msk [vmem:[#allocation8] sm:$0xff] %vm1217, %v2028
    %s2056 = scalar_lea.smem [#allocation5], 0
    %2057 = sst [smem:[%s2056]] %s1133
    %s2058 = scalar_lea.smem [#allocation7], 0
    %2059 = sst [smem:[%s2058]] %s2054
    %s2060 = sadd.f32 %s1133, %s2054
    %s2061 = scalar_lea.smem [#allocation2], 0
    %2062 = sst [smem:[%s2061]] %s2060
    // Predicated region
    $region42: #{emdot_forward.1} parent=1 // pred_check
      _
    $region43: #{emdot_forward.1} parent=1 // pred_check_branch
      %2064 = sbr.rel (0) target = $region45
    $region44: #{emdot_forward.1} parent=1 // pred_region
      %s2066 = ssub.s32 16, 16
      %2067 = vsyncadd [#allocation4], %s2066
      %2070 = dma.smem_to_hbm [#allocation2], 16, %s10, [#allocation4]
    $region45: #{emdot_forward.1} parent=1 // pred_fallthru
      _
    // Predicated region
    $region46: #{emdot_forward.1} parent=1 // pred_check
      _
    $region47: #{emdot_forward.1} parent=1 // pred_check_branch
      %2072 = sbr.rel (0) target = $region49
    $region48: #{emdot_forward.1} parent=1 // pred_region
      %s2074 = ssub.s32 16, 16
      %2075 = vsyncadd [#allocation6], %s2074
      %2078 = dma.smem_to_hbm [#allocation5], 16, %s11, [#allocation6]
    $region49: #{emdot_forward.1} parent=1 // pred_fallthru
      _
    // Predicated region
    $region50: #{emdot_forward.1} parent=1 // pred_check
      _
    $region51: #{emdot_forward.1} parent=1 // pred_check_branch
      %2080 = sbr.rel (0) target = $region53
    $region52: #{emdot_forward.1} parent=1 // pred_region
      %s2082 = ssub.s32 16, 16
      %2083 = vsyncadd [#allocation6], %s2082
      %2086 = dma.smem_to_hbm [#allocation7], 16, %s12, [#allocation6]
    $region53: #{emdot_forward.1} parent=1 // pred_fallthru
      _
    // Predicated region
    $region54: #{emdot_forward.1} parent=1 // pred_check
      _
    $region55: #{emdot_forward.1} parent=1 // pred_check_branch
      %2088 = sbr.rel (0) target = $region57
    $region56: #{emdot_forward.1} parent=1 // pred_region
      %s2090 = ssub.s32 128, 128
      %2091 = vsyncadd [#allocation3], %s2090
      %s2093 = sshll.u32 [#allocation8], 4
      %s2094 = int_to_ptr.vmem [resolvable:$true] %s2093
      %2096 = dma.vmem_to_hbm [thread:$0]  %s2094, 128, %s13, [#allocation3]
    $region57: #{emdot_forward.1} parent=1 // pred_fallthru
      _
    // Predicated region
    $region58: #{emdot_forward.1} parent=1 // pred_check
      _
    $region59: #{emdot_forward.1} parent=1 // pred_check_branch
      %2098 = sbr.rel (0) target = $region61
    $region60: #{emdot_forward.1} parent=1 // pred_region
      %s2100 = ssub.s32 128, 128
      %2101 = vsyncadd [#allocation10], %s2100
      %s2103 = sshll.u32 [#allocation9], 4
      %s2104 = int_to_ptr.vmem [resolvable:$true] %s2103
      %2106 = dma.vmem_to_hbm [thread:$0]  %s2104, 128, %s14, [#allocation10]
    $region61: #{emdot_forward.1} parent=1 // pred_fallthru
      _
    // Predicated region
    $region62: #{emdot_forward.1} parent=1 // pred_check
      _
    $region63: #{emdot_forward.1} parent=1 // pred_check_branch
      %2108 = sbr.rel (0) target = $region65
    $region64: #{emdot_forward.1} parent=1 // pred_region
      %2109 = dma.done [#allocation4], 16
    $region65: #{emdot_forward.1} parent=1 // pred_fallthru
      _
    // Predicated region
    $region66: #{emdot_forward.1} parent=1 // pred_check
      _
    $region67: #{emdot_forward.1} parent=1 // pred_check_branch
      %2111 = sbr.rel (0) target = $region69
    $region68: #{emdot_forward.1} parent=1 // pred_region
      %2112 = dma.done [#allocation6], 16
    $region69: #{emdot_forward.1} parent=1 // pred_fallthru
      _
    // Predicated region
    $region70: #{emdot_forward.1} parent=1 // pred_check
      _
    $region71: #{emdot_forward.1} parent=1 // pred_check_branch
      %2114 = sbr.rel (0) target = $region73
    $region72: #{emdot_forward.1} parent=1 // pred_region
      %2115 = dma.done [#allocation6], 16
    $region73: #{emdot_forward.1} parent=1 // pred_fallthru
      _
    // Predicated region
    $region74: #{emdot_forward.1} parent=1 // pred_check
      _
    $region75: #{emdot_forward.1} parent=1 // pred_check_branch
      %2117 = sbr.rel (0) target = $region77
    $region76: #{emdot_forward.1} parent=1 // pred_region
      %2118 = dma.done [#allocation3], 128
    $region77: #{emdot_forward.1} parent=1 // pred_fallthru
      _
    // Predicated region
    $region78: #{emdot_forward.1} parent=1 // pred_check
      _
    $region79: #{emdot_forward.1} parent=1 // pred_check_branch
      %2120 = sbr.rel (0) target = $region81
    $region80: #{emdot_forward.1} parent=1 // pred_region
      %2121 = dma.done [#allocation10], 128
    $region81: #{emdot_forward.1} parent=1 // pred_fallthru
      _
    %2122 = sfence
    %2123 = vsyncpa [#allocation3], 1
    %2124 = vsyncpa [#allocation10], 1
    %2125 = vsyncpa [#allocation4], 1
    %2126 = vsyncpa [#allocation6], 1

</llo_original>
